<compile_context>
chip_gen: v6e
topology: v6e:2x2x1
jax: 0.10.0
libtpu: 0.0.40
codegen_flags: <defaults>
</compile_context>

<pallas_src>
import functools

import jax
import jax.numpy as jnp
import numpy as np
from jax.experimental import pallas as pl
from jax.experimental.pallas import tpu as pltpu


def _round_up(x, m):
    return (x + m - 1) // m * m


def _tpu_generation():
    """Coarse per-generation tiling knobs (conservative when unknown)."""
    try:
        kind = jax.devices()[0].device_kind.lower()
    except Exception:
        kind = ""
    single_tc = any(s in kind for s in
                    ("v5e", "v5 lite", "v5lite", "v6e", "v6 lite", "v6lite"))
    if single_tc:
        # v5e / v6e: 1 TensorCore, 128 MiB VMEM -> one big block, few steps.
        return {"num_cores": 1, "vmem_limit": 96 * 2**20, "target_rows": 8192}
    # v7x (2 TC x 64 MiB) and unknown parts: stay well under 64 MiB per core
    # and keep an even number of grid steps so both cores get work.
    return {"num_cores": 2, "vmem_limit": 40 * 2**20, "target_rows": 4096}


def _choose_block_rows(B, T, row_bytes, fixed_bytes, vmem_budget,
                       num_cores, target_rows):
    """Largest (N*W)-row count per grid step that is layout-legal and fits VMEM."""
    legal = [c for c in range(1, B + 1)
             if B % c == 0 and ((c * T) % 8 == 0 or c == B)]
    row_cap = max(target_rows, T)
    fits = [c for c in legal
            if c * T <= row_cap and fixed_bytes + c * T * row_bytes <= vmem_budget]
    if not fits:
        # Smallest legal block (full-extent fallback is always layout-legal);
        # may exceed the budget for pathological (B, T) -- see TODO on T-tiling.
        return min(legal)
    if num_cores > 1:
        split = [c for c in fits if (B // c) % num_cores == 0]
        if split:
            return max(split)      # even per-core work split on 2-TC parts
        # No candidate splits across cores (e.g. B == 1): megacore split is
        # effectively disabled; fall through to the biggest fitting block.
    return max(fits)


def _single_stage_kernel(num_layers, T, F, Fp, C3,
                         x_ref, w_in_ref, b_in_ref,
                         wd_ref, bd_ref, w1_ref, b1_ref,
                         w_out_ref, b_out_ref, o_ref):
    f32, bf16 = jnp.float32, jnp.bfloat16
    M = x_ref.shape[0]               # = Bb * T rows in this block
    C8 = o_ref.shape[1]              # stored output channels (>= Cout)

    # Within-batch time index of each flattened row (block boundaries always
    # coincide with batch boundaries; rows are ordered (batch, time)).
    t_idx = jax.lax.broadcasted_iota(jnp.int32, (M, 1), 0) % T

    def shift_time(z, s):
        # y[b, t] = z[b, t + s], zero outside [0, T), applied on the flattened
        # (batch*time) sublane axis.  Rows that would wrap across a batch
        # boundary are exactly the rows the mask zeroes, so the roll is safe.
        y = pltpu.roll(z, (-s) % M, axis=0)            # XLU sublane rotate
        mask = t_idx < (T - s) if s > 0 else t_idx >= (-s)
        return jnp.where(mask, y, 0.0)

    def tap(z, k):
        # Extract the k-th F-wide tap column block of the fused conv result and
        # left-align it into an Fp-wide slab.  Lanes [F:Fp] may carry
        # neighbouring-tap junk; it is annihilated by the zero-padded rows of
        # the following 1x1-conv weight, so it never reaches the output.
        off = k * F
        if off % 128 == 0:                             # lane-aligned: free slice
            return z[:, off:off + Fp]
        zr = pltpu.roll(z, (C3 - off) % C3, axis=1)    # XLU lane rotate
        return zr[:, :Fp]

    # conv_in: 1x1 conv == channel matmul (x is already bf16).
    h = jnp.dot(x_ref[...], w_in_ref[...], preferred_element_type=f32) + b_in_ref[...]

    # Dilated residual layers.
    for l in range(num_layers):
        d = 2 ** l
        # Fused 3-tap dilated conv: one (M,Fp) @ (Fp,C3) matmul, then combine
        # time-shifted taps.
        z = jnp.dot(h.astype(bf16), wd_ref[l], preferred_element_type=f32)
        acc = (tap(z, 1)
               + shift_time(tap(z, 0), -d)
               + shift_time(tap(z, 2), d)
               + bd_ref[l])
        y = jnp.maximum(acc, 0.0)                                    # ReLU
        y = jnp.dot(y.astype(bf16), w1_ref[l],
                    preferred_element_type=f32) + b1_ref[l]          # 1x1 conv
        # Dropout (p=0.0 / eval mode) is an identity -> no-op here.
        h = h + y                                                    # residual

    # conv_out: 1x1 conv; only the first C8 (>= Cout) lanes are stored.
    out = jnp.dot(h.astype(bf16), w_out_ref[...],
                  preferred_element_type=f32) + b_out_ref[...]
    o_ref[...] = out[:, :C8].astype(o_ref.dtype)


def single_stage_pallas(x_nchw, params, num_layers):
    N, Cin, T, W = x_nchw.shape
    F = params["w_in"].shape[0]
    Cout = params["w_out"].shape[0]
    L = num_layers
    assert 2 ** (L - 1) < T, "max dilation must be < T for this kernel"

    f32, bf16 = jnp.float32, jnp.bfloat16
    Fp = _round_up(F, 128)           # lane-padded filter dim
    C3 = _round_up(3 * F, 128)       # packed fused-3-tap width (<= 3*Fp)
    Cp = _round_up(Cout, 128)        # matmul width for conv_out
    C8 = _round_up(Cout, 8)          # stored output channels (sublane-aligned)

    B = N * W
    gen = _tpu_generation()

    # (N, Cin, T, W) -> (N*W*T, Cin) bf16; row = (n*W + w)*T + t, so t = row % T.
    x2d = jnp.transpose(x_nchw, (0, 3, 2, 1)).reshape(B * T, Cin).astype(bf16)

    # ---- Re-pack PyTorch OIHW weights for channel-last matmuls (+ zero pad). --
    w_in = jnp.pad(params["w_in"][:, :, 0, 0].T, ((0, 0), (0, Fp - F))).astype(bf16)
    b_in = jnp.pad(params["b_in"], (0, Fp - F))[None, :].astype(f32)

    wd = jnp.transpose(params["wd"][..., 0], (0, 3, 2, 1))          # (L,3,F,F) [l,k,ci,co]
    wd = jnp.pad(wd, ((0, 0), (0, 0), (0, Fp - F), (0, 0)))         # pad ci -> (L,3,Fp,F)
    wd_cat = jnp.transpose(wd, (0, 2, 1, 3)).reshape(L, Fp, 3 * F)  # [l, ci, (k, co)]
    wd_cat = jnp.pad(wd_cat, ((0, 0), (0, 0), (0, C3 - 3 * F))).astype(bf16)

    bd = jnp.pad(params["bd"], ((0, 0), (0, Fp - F)))[:, None, :].astype(f32)
    w1 = jnp.transpose(params["w1"][:, :, :, 0, 0], (0, 2, 1))
    w1 = jnp.pad(w1, ((0, 0), (0, Fp - F), (0, Fp - F))).astype(bf16)
    b1 = jnp.pad(params["b1"], ((0, 0), (0, Fp - F)))[:, None, :].astype(f32)
    w_out = jnp.pad(params["w_out"][:, :, 0, 0].T,
                    ((0, Fp - F), (0, Cp - Cout))).astype(bf16)
    b_out = jnp.pad(params["b_out"], (0, Cp - Cout))[None, :].astype(f32)

    # ---- Generation-aware block sizing + VMEM budgeting. ----------------------
    weight_bytes = (2 * (w_in.size + wd_cat.size + w1.size + w_out.size)
                    + 4 * (b_in.size + bd.size + b1.size + b_out.size))
    row_bytes = (2 * 2 * Cin                   # x block (bf16, double-buffered)
                 + 2 * 4 * 128                 # out block (f32, lane-padded in VMEM, dbuf)
                 + 6 * 4 * Fp + 2 * 4 * C3)    # live f32 temporaries (h, taps, acc, y, z)
    fixed_bytes = 2 * weight_bytes + (2 << 20)           # dbuf fallback + slack
    budget = int(0.65 * gen["vmem_limit"])
    Bb = _choose_block_rows(B, T, row_bytes, fixed_bytes, budget,
                            gen["num_cores"], gen["target_rows"])
    M = Bb * T
    grid = (B // Bb,)

    kernel = functools.partial(_single_stage_kernel, L, T, F, Fp, C3)

    flops = int(2 * B * T * (Cin * Fp + L * (Fp * C3 + Fp * Fp) + Fp * Cp))
    bytes_accessed = int(x2d.size * 2 + B * T * C8 * 4 + weight_bytes)

    def call(single_buffer_weights):
        def wspec(shape):
            # Constant index_map -> the block is fetched once for the whole
            # grid; single-buffering halves its VMEM footprint.
            idx = (lambda b: (0, 0)) if len(shape) == 2 else (lambda b: (0, 0, 0))
            if single_buffer_weights:
                return pl.BlockSpec(shape, idx, pipeline_mode=pl.Buffered(1))
            return pl.BlockSpec(shape, idx)

        return pl.pallas_call(
            kernel,
            out_shape=jax.ShapeDtypeStruct((B * T, C8), f32),
            grid_spec=pltpu.PrefetchScalarGridSpec(
                num_scalar_prefetch=0,
                grid=grid,
                in_specs=[
                    pl.BlockSpec((M, Cin), lambda b: (b, 0)),
                    wspec((Cin, Fp)),
                    wspec((1, Fp)),
                    wspec((L, Fp, C3)),
                    wspec((L, 1, Fp)),
                    wspec((L, Fp, Fp)),
                    wspec((L, 1, Fp)),
                    wspec((Fp, Cp)),
                    wspec((1, Cp)),
                ],
                out_specs=pl.BlockSpec((M, C8), lambda b: (b, 0)),
            ),
            compiler_params=pltpu.CompilerParams(
                dimension_semantics=("parallel",),
                vmem_limit_bytes=gen["vmem_limit"],
            ),
            cost_estimate=pl.CostEstimate(
                flops=flops, transcendentals=0, bytes_accessed=bytes_accessed),
        )(x2d, w_in, b_in, wd_cat, bd, w1, b1, w_out, b_out)

    try:
        out2d = jax.block_until_ready(call(True))
    except Exception:
        # pl.Buffered(1) not supported by this jax / Mosaic version ->
        # fall back to default double-buffered constant weights (identical math).
        out2d = jax.block_until_ready(call(False))

    # (B*T, C8) -> (N, Cout, T, W); slice/transpose are cheap XLA ops outside.
    out = out2d[:, :Cout].reshape(N, W, T, Cout)
    return jnp.transpose(out, (0, 3, 2, 1))


def single_stage_ref(x, params, num_layers):
    """Pure-JAX reference with exact PyTorch conv2d semantics (NCHW, f32)."""
    def conv(x, w, b, pad=(0, 0), dil=(1, 1)):
        y = jax.lax.conv_general_dilated(
            x, w, window_strides=(1, 1),
            padding=((pad[0], pad[0]), (pad[1], pad[1])),
            rhs_dilation=dil,
            dimension_numbers=("NCHW", "OIHW", "NCHW"))
        return y + b[None, :, None, None]

    h = conv(x, params["w_in"], params["b_in"])
    for l in range(num_layers):
        d = 2 ** l
        y = conv(h, params["wd"][l], params["bd"][l], pad=(d, 0), dil=(d, 1))
        y = jnp.maximum(y, 0.0)
        y = conv(y, params["w1"][l], params["b1"][l])
        h = h + y
    return conv(h, params["w_out"], params["b_out"])


if __name__ == "__main__":
    # Small shapes consistent with the module: x is (N, in_channels, T, W).
    N, Cin, T, W = 2, 8, 16, 2
    F, L, Cout = 32, 4, 5              # num_filters, num_layers, out_channels

    key = jax.random.PRNGKey(0)
    ks = jax.random.split(key, 9)
    s = 0.1
    # Parameters in native PyTorch layout (O, I, kh, kw), deterministic init.
    params = {
        "w_in":  s * jax.random.normal(ks[0], (F, Cin, 1, 1), jnp.float32),
        "b_in":  s * jax.random.normal(ks[1], (F,), jnp.float32),
        "wd":    s * jax.random.normal(ks[2], (L, F, F, 3, 1), jnp.float32),
        "bd":    s * jax.random.normal(ks[3], (L, F), jnp.float32),
        "w1":    s * jax.random.normal(ks[4], (L, F, F, 1, 1), jnp.float32),
        "b1":    s * jax.random.normal(ks[5], (L, F), jnp.float32),
        "w_out": s * jax.random.normal(ks[6], (Cout, F, 1, 1), jnp.float32),
        "b_out": s * jax.random.normal(ks[7], (Cout,), jnp.float32),
    }
    x = jax.random.normal(ks[8], (N, Cin, T, W), jnp.float32)

    out = jax.block_until_ready(single_stage_pallas(x, params, L))
    ref = jax.block_until_ready(single_stage_ref(x, params, L))
    assert out.shape == (N, Cout, T, W)
    # bf16 matmul inputs with f32 accumulation / f32 stores -> loosened tolerance.
    np.testing.assert_allclose(np.asarray(out), np.asarray(ref), rtol=2e-2, atol=2e-2)
    print("KERNEL_OK")
</pallas_src>

<mosaic_0001>
module attributes {stable_mosaic.version = 11 : i64} {
  func.func @_single_stage_kernel(%arg0: i32, %arg1: memref<32x8xbf16, #tpu.memory_space<vmem>>, %arg2: memref<8x128xbf16, #tpu.memory_space<vmem>>, %arg3: memref<1x128xf32, #tpu.memory_space<vmem>>, %arg4: memref<4x128x128xbf16, #tpu.memory_space<vmem>>, %arg5: memref<4x1x128xf32, #tpu.memory_space<vmem>>, %arg6: memref<4x128x128xbf16, #tpu.memory_space<vmem>>, %arg7: memref<4x1x128xf32, #tpu.memory_space<vmem>>, %arg8: memref<128x128xbf16, #tpu.memory_space<vmem>>, %arg9: memref<1x128xf32, #tpu.memory_space<vmem>>, %arg10: memref<32x8xf32, #tpu.memory_space<vmem>>) attributes {dimension_semantics = [#tpu.dimension_semantics<parallel>], iteration_bounds = array<i64: 2>, scalar_prefetch = 0 : i64, scratch_operands = 0 : i64, tpu.core_type = #tpu.core_type<tc>, window_params = [{transform_indices = @transform_0, window_bounds = array<i64: 32, 8>}, {pipeline_mode = #tpu.pipeline_mode<synchronous>, transform_indices = @transform_1, window_bounds = array<i64: 8, 128>}, {pipeline_mode = #tpu.pipeline_mode<synchronous>, transform_indices = @transform_2, window_bounds = array<i64: 1, 128>}, {pipeline_mode = #tpu.pipeline_mode<synchronous>, transform_indices = @transform_3, window_bounds = array<i64: 4, 128, 128>}, {pipeline_mode = #tpu.pipeline_mode<synchronous>, transform_indices = @transform_4, window_bounds = array<i64: 4, 1, 128>}, {pipeline_mode = #tpu.pipeline_mode<synchronous>, transform_indices = @transform_5, window_bounds = array<i64: 4, 128, 128>}, {pipeline_mode = #tpu.pipeline_mode<synchronous>, transform_indices = @transform_6, window_bounds = array<i64: 4, 1, 128>}, {pipeline_mode = #tpu.pipeline_mode<synchronous>, transform_indices = @transform_7, window_bounds = array<i64: 128, 128>}, {pipeline_mode = #tpu.pipeline_mode<synchronous>, transform_indices = @transform_8, window_bounds = array<i64: 1, 128>}, {transform_indices = @transform_9, window_bounds = array<i64: 32, 8>}]} {
    %0 = tpu.iota {dimensions = array<i32: 0>} : vector<32x1xi32>
    %c16_i32 = arith.constant 16 : i32
    %c0_i32 = arith.constant 0 : i32
    %1 = arith.cmpi eq, %c16_i32, %c0_i32 : i32
    %c1_i32 = arith.constant 1 : i32
    %2 = arith.select %1, %c1_i32, %c16_i32 : i32
    %3 = vector.broadcast %2 : i32 to vector<32x1xi32>
    %4 = arith.remsi %0, %3 : vector<32x1xi32>
    %c0_i32_0 = arith.constant 0 : i32
    %5 = vector.broadcast %c0_i32_0 : i32 to vector<32x1xi32>
    %6 = arith.cmpi ne, %4, %5 : vector<32x1xi32>
    %c0_i32_1 = arith.constant 0 : i32
    %7 = vector.broadcast %c0_i32_1 : i32 to vector<32x1xi32>
    %8 = arith.cmpi slt, %4, %7 : vector<32x1xi32>
    %c0_i32_2 = arith.constant 0 : i32
    %9 = arith.cmpi slt, %2, %c0_i32_2 : i32
    %10 = vector.broadcast %9 : i1 to vector<32x1xi1>
    %11 = vector.broadcast %10 : vector<32x1xi1> to vector<32x1xi1>
    %12 = arith.xori %8, %11 : vector<32x1xi1>
    %13 = arith.andi %12, %6 : vector<32x1xi1>
    %14 = vector.broadcast %2 : i32 to vector<32x1xi32>
    %15 = arith.addi %4, %14 : vector<32x1xi32>
    %16 = arith.select %13, %15, %4 : vector<32x1xi1>, vector<32x1xi32>
    %c0 = arith.constant 0 : index
    %c0_3 = arith.constant 0 : index
    %17 = vector.load %arg1[%c0, %c0_3] : memref<32x8xbf16, #tpu.memory_space<vmem>>, vector<32x8xbf16>
    %c0_4 = arith.constant 0 : index
    %c0_5 = arith.constant 0 : index
    %18 = vector.load %arg2[%c0_4, %c0_5] : memref<8x128xbf16, #tpu.memory_space<vmem>>, vector<8x128xbf16>
    %cst = arith.constant dense<0.000000e+00> : vector<32x128xf32>
    %19 = tpu.matmul %17, %18, %cst {dimension_numbers = #tpu.dot_dimension_numbers<[1], [0], [0], [1], [0, 0, 1, 1], [], []>} : vector<32x8xbf16>, vector<8x128xbf16>, vector<32x128xf32> -> vector<32x128xf32>
    %c0_6 = arith.constant 0 : index
    %c0_7 = arith.constant 0 : index
    %20 = vector.load %arg3[%c0_6, %c0_7] : memref<1x128xf32, #tpu.memory_space<vmem>>, vector<1x128xf32>
    %21 = vector.broadcast %20 : vector<1x128xf32> to vector<32x128xf32>
    %22 = arith.addf %19, %21 : vector<32x128xf32>
    %23 = arith.truncf %22 : vector<32x128xf32> to vector<32x128xbf16>
    %c0_8 = arith.constant 0 : index
    %c0_9 = arith.constant 0 : index
    %c0_10 = arith.constant 0 : index
    %24 = vector.load %arg4[%c0_8, %c0_9, %c0_10] : memref<4x128x128xbf16, #tpu.memory_space<vmem>>, vector<1x128x128xbf16>
    %25 = vector.shape_cast %24 : vector<1x128x128xbf16> to vector<128x128xbf16>
    %cst_11 = arith.constant dense<0.000000e+00> : vector<32x128xf32>
    %26 = tpu.matmul %23, %25, %cst_11 {dimension_numbers = #tpu.dot_dimension_numbers<[1], [0], [0], [1], [0, 0, 1, 1], [], []>} : vector<32x128xbf16>, vector<128x128xbf16>, vector<32x128xf32> -> vector<32x128xf32>
    %c96_i32 = arith.constant 96 : i32
    %27 = tpu.dynamic_rotate %26 by %c96_i32 dim 1 : vector<32x128xf32>, i32 -> vector<32x128xf32>
    %c1_i32_12 = arith.constant 1 : i32
    %28 = tpu.dynamic_rotate %26 by %c1_i32_12 dim 0 : vector<32x128xf32>, i32 -> vector<32x128xf32>
    %c1_i32_13 = arith.constant 1 : i32
    %29 = vector.broadcast %c1_i32_13 : i32 to vector<32x1xi32>
    %30 = arith.cmpi sge, %16, %29 : vector<32x1xi32>
    %cst_14 = arith.constant 0.000000e+00 : f32
    %31 = vector.shape_cast %30 : vector<32x1xi1> to vector<32x1xi1>
    %32 = vector.broadcast %31 : vector<32x1xi1> to vector<32x128xi1>
    %33 = vector.broadcast %cst_14 : f32 to vector<32x128xf32>
    %34 = arith.select %32, %28, %33 : vector<32x128xi1>, vector<32x128xf32>
    %35 = arith.addf %27, %34 : vector<32x128xf32>
    %c64_i32 = arith.constant 64 : i32
    %36 = tpu.dynamic_rotate %26 by %c64_i32 dim 1 : vector<32x128xf32>, i32 -> vector<32x128xf32>
    %c31_i32 = arith.constant 31 : i32
    %37 = tpu.dynamic_rotate %36 by %c31_i32 dim 0 : vector<32x128xf32>, i32 -> vector<32x128xf32>
    %c15_i32 = arith.constant 15 : i32
    %38 = vector.broadcast %c15_i32 : i32 to vector<32x1xi32>
    %39 = arith.cmpi slt, %16, %38 : vector<32x1xi32>
    %cst_15 = arith.constant 0.000000e+00 : f32
    %40 = vector.shape_cast %39 : vector<32x1xi1> to vector<32x1xi1>
    %41 = vector.broadcast %40 : vector<32x1xi1> to vector<32x128xi1>
    %42 = vector.broadcast %cst_15 : f32 to vector<32x128xf32>
    %43 = arith.select %41, %37, %42 : vector<32x128xi1>, vector<32x128xf32>
    %44 = arith.addf %35, %43 : vector<32x128xf32>
    %c0_16 = arith.constant 0 : index
    %c0_17 = arith.constant 0 : index
    %c0_18 = arith.constant 0 : index
    %45 = vector.load %arg5[%c0_16, %c0_17, %c0_18] : memref<4x1x128xf32, #tpu.memory_space<vmem>>, vector<1x1x128xf32>
    %46 = vector.shape_cast %45 : vector<1x1x128xf32> to vector<1x128xf32>
    %47 = vector.broadcast %46 : vector<1x128xf32> to vector<32x128xf32>
    %48 = arith.addf %44, %47 : vector<32x128xf32>
    %cst_19 = arith.constant 0.000000e+00 : f32
    %49 = vector.broadcast %cst_19 : f32 to vector<32x128xf32>
    %50 = arith.maximumf %48, %49 : vector<32x128xf32>
    %51 = arith.truncf %50 : vector<32x128xf32> to vector<32x128xbf16>
    %c0_20 = arith.constant 0 : index
    %c0_21 = arith.constant 0 : index
    %c0_22 = arith.constant 0 : index
    %52 = vector.load %arg6[%c0_20, %c0_21, %c0_22] : memref<4x128x128xbf16, #tpu.memory_space<vmem>>, vector<1x128x128xbf16>
    %53 = vector.shape_cast %52 : vector<1x128x128xbf16> to vector<128x128xbf16>
    %cst_23 = arith.constant dense<0.000000e+00> : vector<32x128xf32>
    %54 = tpu.matmul %51, %53, %cst_23 {dimension_numbers = #tpu.dot_dimension_numbers<[1], [0], [0], [1], [0, 0, 1, 1], [], []>} : vector<32x128xbf16>, vector<128x128xbf16>, vector<32x128xf32> -> vector<32x128xf32>
    %c0_24 = arith.constant 0 : index
    %c0_25 = arith.constant 0 : index
    %c0_26 = arith.constant 0 : index
    %55 = vector.load %arg7[%c0_24, %c0_25, %c0_26] : memref<4x1x128xf32, #tpu.memory_space<vmem>>, vector<1x1x128xf32>
    %56 = vector.shape_cast %55 : vector<1x1x128xf32> to vector<1x128xf32>
    %57 = vector.broadcast %56 : vector<1x128xf32> to vector<32x128xf32>
    %58 = arith.addf %54, %57 : vector<32x128xf32>
    %59 = arith.addf %22, %58 : vector<32x128xf32>
    %60 = arith.truncf %59 : vector<32x128xf32> to vector<32x128xbf16>
    %c1 = arith.constant 1 : index
    %c0_27 = arith.constant 0 : index
    %c0_28 = arith.constant 0 : index
    %61 = vector.load %arg4[%c1, %c0_27, %c0_28] : memref<4x128x128xbf16, #tpu.memory_space<vmem>>, vector<1x128x128xbf16>
    %62 = vector.shape_cast %61 : vector<1x128x128xbf16> to vector<128x128xbf16>
    %cst_29 = arith.constant dense<0.000000e+00> : vector<32x128xf32>
    %63 = tpu.matmul %60, %62, %cst_29 {dimension_numbers = #tpu.dot_dimension_numbers<[1], [0], [0], [1], [0, 0, 1, 1], [], []>} : vector<32x128xbf16>, vector<128x128xbf16>, vector<32x128xf32> -> vector<32x128xf32>
    %c96_i32_30 = arith.constant 96 : i32
    %64 = tpu.dynamic_rotate %63 by %c96_i32_30 dim 1 : vector<32x128xf32>, i32 -> vector<32x128xf32>
    %c2_i32 = arith.constant 2 : i32
    %65 = tpu.dynamic_rotate %63 by %c2_i32 dim 0 : vector<32x128xf32>, i32 -> vector<32x128xf32>
    %c2_i32_31 = arith.constant 2 : i32
    %66 = vector.broadcast %c2_i32_31 : i32 to vector<32x1xi32>
    %67 = arith.cmpi sge, %16, %66 : vector<32x1xi32>
    %cst_32 = arith.constant 0.000000e+00 : f32
    %68 = vector.shape_cast %67 : vector<32x1xi1> to vector<32x1xi1>
    %69 = vector.broadcast %68 : vector<32x1xi1> to vector<32x128xi1>
    %70 = vector.broadcast %cst_32 : f32 to vector<32x128xf32>
    %71 = arith.select %69, %65, %70 : vector<32x128xi1>, vector<32x128xf32>
    %72 = arith.addf %64, %71 : vector<32x128xf32>
    %c64_i32_33 = arith.constant 64 : i32
    %73 = tpu.dynamic_rotate %63 by %c64_i32_33 dim 1 : vector<32x128xf32>, i32 -> vector<32x128xf32>
    %c30_i32 = arith.constant 30 : i32
    %74 = tpu.dynamic_rotate %73 by %c30_i32 dim 0 : vector<32x128xf32>, i32 -> vector<32x128xf32>
    %c14_i32 = arith.constant 14 : i32
    %75 = vector.broadcast %c14_i32 : i32 to vector<32x1xi32>
    %76 = arith.cmpi slt, %16, %75 : vector<32x1xi32>
    %cst_34 = arith.constant 0.000000e+00 : f32
    %77 = vector.shape_cast %76 : vector<32x1xi1> to vector<32x1xi1>
    %78 = vector.broadcast %77 : vector<32x1xi1> to vector<32x128xi1>
    %79 = vector.broadcast %cst_34 : f32 to vector<32x128xf32>
    %80 = arith.select %78, %74, %79 : vector<32x128xi1>, vector<32x128xf32>
    %81 = arith.addf %72, %80 : vector<32x128xf32>
    %c1_35 = arith.constant 1 : index
    %c0_36 = arith.constant 0 : index
    %c0_37 = arith.constant 0 : index
    %82 = vector.load %arg5[%c1_35, %c0_36, %c0_37] : memref<4x1x128xf32, #tpu.memory_space<vmem>>, vector<1x1x128xf32>
    %83 = vector.shape_cast %82 : vector<1x1x128xf32> to vector<1x128xf32>
    %84 = vector.broadcast %83 : vector<1x128xf32> to vector<32x128xf32>
    %85 = arith.addf %81, %84 : vector<32x128xf32>
    %cst_38 = arith.constant 0.000000e+00 : f32
    %86 = vector.broadcast %cst_38 : f32 to vector<32x128xf32>
    %87 = arith.maximumf %85, %86 : vector<32x128xf32>
    %88 = arith.truncf %87 : vector<32x128xf32> to vector<32x128xbf16>
    %c1_39 = arith.constant 1 : index
    %c0_40 = arith.constant 0 : index
    %c0_41 = arith.constant 0 : index
    %89 = vector.load %arg6[%c1_39, %c0_40, %c0_41] : memref<4x128x128xbf16, #tpu.memory_space<vmem>>, vector<1x128x128xbf16>
    %90 = vector.shape_cast %89 : vector<1x128x128xbf16> to vector<128x128xbf16>
    %cst_42 = arith.constant dense<0.000000e+00> : vector<32x128xf32>
    %91 = tpu.matmul %88, %90, %cst_42 {dimension_numbers = #tpu.dot_dimension_numbers<[1], [0], [0], [1], [0, 0, 1, 1], [], []>} : vector<32x128xbf16>, vector<128x128xbf16>, vector<32x128xf32> -> vector<32x128xf32>
    %c1_43 = arith.constant 1 : index
    %c0_44 = arith.constant 0 : index
    %c0_45 = arith.constant 0 : index
    %92 = vector.load %arg7[%c1_43, %c0_44, %c0_45] : memref<4x1x128xf32, #tpu.memory_space<vmem>>, vector<1x1x128xf32>
    %93 = vector.shape_cast %92 : vector<1x1x128xf32> to vector<1x128xf32>
    %94 = vector.broadcast %93 : vector<1x128xf32> to vector<32x128xf32>
    %95 = arith.addf %91, %94 : vector<32x128xf32>
    %96 = arith.addf %59, %95 : vector<32x128xf32>
    %97 = arith.truncf %96 : vector<32x128xf32> to vector<32x128xbf16>
    %c2 = arith.constant 2 : index
    %c0_46 = arith.constant 0 : index
    %c0_47 = arith.constant 0 : index
    %98 = vector.load %arg4[%c2, %c0_46, %c0_47] : memref<4x128x128xbf16, #tpu.memory_space<vmem>>, vector<1x128x128xbf16>
    %99 = vector.shape_cast %98 : vector<1x128x128xbf16> to vector<128x128xbf16>
    %cst_48 = arith.constant dense<0.000000e+00> : vector<32x128xf32>
    %100 = tpu.matmul %97, %99, %cst_48 {dimension_numbers = #tpu.dot_dimension_numbers<[1], [0], [0], [1], [0, 0, 1, 1], [], []>} : vector<32x128xbf16>, vector<128x128xbf16>, vector<32x128xf32> -> vector<32x128xf32>
    %c96_i32_49 = arith.constant 96 : i32
    %101 = tpu.dynamic_rotate %100 by %c96_i32_49 dim 1 : vector<32x128xf32>, i32 -> vector<32x128xf32>
    %c4_i32 = arith.constant 4 : i32
    %102 = tpu.dynamic_rotate %100 by %c4_i32 dim 0 : vector<32x128xf32>, i32 -> vector<32x128xf32>
    %c4_i32_50 = arith.constant 4 : i32
    %103 = vector.broadcast %c4_i32_50 : i32 to vector<32x1xi32>
    %104 = arith.cmpi sge, %16, %103 : vector<32x1xi32>
    %cst_51 = arith.constant 0.000000e+00 : f32
    %105 = vector.shape_cast %104 : vector<32x1xi1> to vector<32x1xi1>
    %106 = vector.broadcast %105 : vector<32x1xi1> to vector<32x128xi1>
    %107 = vector.broadcast %cst_51 : f32 to vector<32x128xf32>
    %108 = arith.select %106, %102, %107 : vector<32x128xi1>, vector<32x128xf32>
    %109 = arith.addf %101, %108 : vector<32x128xf32>
    %c64_i32_52 = arith.constant 64 : i32
    %110 = tpu.dynamic_rotate %100 by %c64_i32_52 dim 1 : vector<32x128xf32>, i32 -> vector<32x128xf32>
    %c28_i32 = arith.constant 28 : i32
    %111 = tpu.dynamic_rotate %110 by %c28_i32 dim 0 : vector<32x128xf32>, i32 -> vector<32x128xf32>
    %c12_i32 = arith.constant 12 : i32
    %112 = vector.broadcast %c12_i32 : i32 to vector<32x1xi32>
    %113 = arith.cmpi slt, %16, %112 : vector<32x1xi32>
    %cst_53 = arith.constant 0.000000e+00 : f32
    %114 = vector.shape_cast %113 : vector<32x1xi1> to vector<32x1xi1>
    %115 = vector.broadcast %114 : vector<32x1xi1> to vector<32x128xi1>
    %116 = vector.broadcast %cst_53 : f32 to vector<32x128xf32>
    %117 = arith.select %115, %111, %116 : vector<32x128xi1>, vector<32x128xf32>
    %118 = arith.addf %109, %117 : vector<32x128xf32>
    %c2_54 = arith.constant 2 : index
    %c0_55 = arith.constant 0 : index
    %c0_56 = arith.constant 0 : index
    %119 = vector.load %arg5[%c2_54, %c0_55, %c0_56] : memref<4x1x128xf32, #tpu.memory_space<vmem>>, vector<1x1x128xf32>
    %120 = vector.shape_cast %119 : vector<1x1x128xf32> to vector<1x128xf32>
    %121 = vector.broadcast %120 : vector<1x128xf32> to vector<32x128xf32>
    %122 = arith.addf %118, %121 : vector<32x128xf32>
    %cst_57 = arith.constant 0.000000e+00 : f32
    %123 = vector.broadcast %cst_57 : f32 to vector<32x128xf32>
    %124 = arith.maximumf %122, %123 : vector<32x128xf32>
    %125 = arith.truncf %124 : vector<32x128xf32> to vector<32x128xbf16>
    %c2_58 = arith.constant 2 : index
    %c0_59 = arith.constant 0 : index
    %c0_60 = arith.constant 0 : index
    %126 = vector.load %arg6[%c2_58, %c0_59, %c0_60] : memref<4x128x128xbf16, #tpu.memory_space<vmem>>, vector<1x128x128xbf16>
    %127 = vector.shape_cast %126 : vector<1x128x128xbf16> to vector<128x128xbf16>
    %cst_61 = arith.constant dense<0.000000e+00> : vector<32x128xf32>
    %128 = tpu.matmul %125, %127, %cst_61 {dimension_numbers = #tpu.dot_dimension_numbers<[1], [0], [0], [1], [0, 0, 1, 1], [], []>} : vector<32x128xbf16>, vector<128x128xbf16>, vector<32x128xf32> -> vector<32x128xf32>
    %c2_62 = arith.constant 2 : index
    %c0_63 = arith.constant 0 : index
    %c0_64 = arith.constant 0 : index
    %129 = vector.load %arg7[%c2_62, %c0_63, %c0_64] : memref<4x1x128xf32, #tpu.memory_space<vmem>>, vector<1x1x128xf32>
    %130 = vector.shape_cast %129 : vector<1x1x128xf32> to vector<1x128xf32>
    %131 = vector.broadcast %130 : vector<1x128xf32> to vector<32x128xf32>
    %132 = arith.addf %128, %131 : vector<32x128xf32>
    %133 = arith.addf %96, %132 : vector<32x128xf32>
    %134 = arith.truncf %133 : vector<32x128xf32> to vector<32x128xbf16>
    %c3 = arith.constant 3 : index
    %c0_65 = arith.constant 0 : index
    %c0_66 = arith.constant 0 : index
    %135 = vector.load %arg4[%c3, %c0_65, %c0_66] : memref<4x128x128xbf16, #tpu.memory_space<vmem>>, vector<1x128x128xbf16>
    %136 = vector.shape_cast %135 : vector<1x128x128xbf16> to vector<128x128xbf16>
    %cst_67 = arith.constant dense<0.000000e+00> : vector<32x128xf32>
    %137 = tpu.matmul %134, %136, %cst_67 {dimension_numbers = #tpu.dot_dimension_numbers<[1], [0], [0], [1], [0, 0, 1, 1], [], []>} : vector<32x128xbf16>, vector<128x128xbf16>, vector<32x128xf32> -> vector<32x128xf32>
    %c96_i32_68 = arith.constant 96 : i32
    %138 = tpu.dynamic_rotate %137 by %c96_i32_68 dim 1 : vector<32x128xf32>, i32 -> vector<32x128xf32>
    %c8_i32 = arith.constant 8 : i32
    %139 = tpu.dynamic_rotate %137 by %c8_i32 dim 0 : vector<32x128xf32>, i32 -> vector<32x128xf32>
    %c8_i32_69 = arith.constant 8 : i32
    %140 = vector.broadcast %c8_i32_69 : i32 to vector<32x1xi32>
    %141 = arith.cmpi sge, %16, %140 : vector<32x1xi32>
    %cst_70 = arith.constant 0.000000e+00 : f32
    %142 = vector.shape_cast %141 : vector<32x1xi1> to vector<32x1xi1>
    %143 = vector.broadcast %142 : vector<32x1xi1> to vector<32x128xi1>
    %144 = vector.broadcast %cst_70 : f32 to vector<32x128xf32>
    %145 = arith.select %143, %139, %144 : vector<32x128xi1>, vector<32x128xf32>
    %146 = arith.addf %138, %145 : vector<32x128xf32>
    %c64_i32_71 = arith.constant 64 : i32
    %147 = tpu.dynamic_rotate %137 by %c64_i32_71 dim 1 : vector<32x128xf32>, i32 -> vector<32x128xf32>
    %c24_i32 = arith.constant 24 : i32
    %148 = tpu.dynamic_rotate %147 by %c24_i32 dim 0 : vector<32x128xf32>, i32 -> vector<32x128xf32>
    %c8_i32_72 = arith.constant 8 : i32
    %149 = vector.broadcast %c8_i32_72 : i32 to vector<32x1xi32>
    %150 = arith.cmpi slt, %16, %149 : vector<32x1xi32>
    %cst_73 = arith.constant 0.000000e+00 : f32
    %151 = vector.shape_cast %150 : vector<32x1xi1> to vector<32x1xi1>
    %152 = vector.broadcast %151 : vector<32x1xi1> to vector<32x128xi1>
    %153 = vector.broadcast %cst_73 : f32 to vector<32x128xf32>
    %154 = arith.select %152, %148, %153 : vector<32x128xi1>, vector<32x128xf32>
    %155 = arith.addf %146, %154 : vector<32x128xf32>
    %c3_74 = arith.constant 3 : index
    %c0_75 = arith.constant 0 : index
    %c0_76 = arith.constant 0 : index
    %156 = vector.load %arg5[%c3_74, %c0_75, %c0_76] : memref<4x1x128xf32, #tpu.memory_space<vmem>>, vector<1x1x128xf32>
    %157 = vector.shape_cast %156 : vector<1x1x128xf32> to vector<1x128xf32>
    %158 = vector.broadcast %157 : vector<1x128xf32> to vector<32x128xf32>
    %159 = arith.addf %155, %158 : vector<32x128xf32>
    %cst_77 = arith.constant 0.000000e+00 : f32
    %160 = vector.broadcast %cst_77 : f32 to vector<32x128xf32>
    %161 = arith.maximumf %159, %160 : vector<32x128xf32>
    %162 = arith.truncf %161 : vector<32x128xf32> to vector<32x128xbf16>
    %c3_78 = arith.constant 3 : index
    %c0_79 = arith.constant 0 : index
    %c0_80 = arith.constant 0 : index
    %163 = vector.load %arg6[%c3_78, %c0_79, %c0_80] : memref<4x128x128xbf16, #tpu.memory_space<vmem>>, vector<1x128x128xbf16>
    %164 = vector.shape_cast %163 : vector<1x128x128xbf16> to vector<128x128xbf16>
    %cst_81 = arith.constant dense<0.000000e+00> : vector<32x128xf32>
    %165 = tpu.matmul %162, %164, %cst_81 {dimension_numbers = #tpu.dot_dimension_numbers<[1], [0], [0], [1], [0, 0, 1, 1], [], []>} : vector<32x128xbf16>, vector<128x128xbf16>, vector<32x128xf32> -> vector<32x128xf32>
    %c3_82 = arith.constant 3 : index
    %c0_83 = arith.constant 0 : index
    %c0_84 = arith.constant 0 : index
    %166 = vector.load %arg7[%c3_82, %c0_83, %c0_84] : memref<4x1x128xf32, #tpu.memory_space<vmem>>, vector<1x1x128xf32>
    %167 = vector.shape_cast %166 : vector<1x1x128xf32> to vector<1x128xf32>
    %168 = vector.broadcast %167 : vector<1x128xf32> to vector<32x128xf32>
    %169 = arith.addf %165, %168 : vector<32x128xf32>
    %170 = arith.addf %133, %169 : vector<32x128xf32>
    %171 = arith.truncf %170 : vector<32x128xf32> to vector<32x128xbf16>
    %c0_85 = arith.constant 0 : index
    %c0_86 = arith.constant 0 : index
    %172 = vector.load %arg8[%c0_85, %c0_86] : memref<128x128xbf16, #tpu.memory_space<vmem>>, vector<128x128xbf16>
    %cst_87 = arith.constant dense<0.000000e+00> : vector<32x128xf32>
    %173 = tpu.matmul %171, %172, %cst_87 {dimension_numbers = #tpu.dot_dimension_numbers<[1], [0], [0], [1], [0, 0, 1, 1], [], []>} : vector<32x128xbf16>, vector<128x128xbf16>, vector<32x128xf32> -> vector<32x128xf32>
    %c0_88 = arith.constant 0 : index
    %c0_89 = arith.constant 0 : index
    %174 = vector.load %arg9[%c0_88, %c0_89] : memref<1x128xf32, #tpu.memory_space<vmem>>, vector<1x128xf32>
    %175 = vector.broadcast %174 : vector<1x128xf32> to vector<32x128xf32>
    %176 = arith.addf %173, %175 : vector<32x128xf32>
    %177 = vector.extract_strided_slice %176 {offsets = [0, 0], sizes = [32, 8], strides = [1, 1]} : vector<32x128xf32> to vector<32x8xf32>
    %c0_90 = arith.constant 0 : index
    %c0_91 = arith.constant 0 : index
    %178 = vector.load %arg10[%c0_90, %c0_91] : memref<32x8xf32, #tpu.memory_space<vmem>>, vector<32x8xf32>
    tpu.vector_store %arg10[%c0_90, %c0_91], %177 {strides = array<i32>} : memref<32x8xf32, #tpu.memory_space<vmem>>, vector<32x8xf32>,
    return
  }
  func.func @transform_0(%arg0: i32) -> (i32, i32) {
    %c0_i32 = arith.constant 0 : i32
    %c0_i32_0 = arith.constant 0 : i32
    return %arg0, %c0_i32 : i32, i32
  }
  func.func @transform_1(%arg0: i32) -> (i32, i32) {
    %c0_i32 = arith.constant 0 : i32
    %c0_i32_0 = arith.constant 0 : i32
    %c0_i32_1 = arith.constant 0 : i32
    return %c0_i32, %c0_i32_0 : i32, i32
  }
  func.func @transform_2(%arg0: i32) -> (i32, i32) {
    %c0_i32 = arith.constant 0 : i32
    %c0_i32_0 = arith.constant 0 : i32
    %c0_i32_1 = arith.constant 0 : i32
    return %c0_i32, %c0_i32_0 : i32, i32
  }
  func.func @transform_3(%arg0: i32) -> (i32, i32, i32) {
    %c0_i32 = arith.constant 0 : i32
    %c0_i32_0 = arith.constant 0 : i32
    %c0_i32_1 = arith.constant 0 : i32
    %c0_i32_2 = arith.constant 0 : i32
    return %c0_i32, %c0_i32_0, %c0_i32_1 : i32, i32, i32
  }
  func.func @transform_4(%arg0: i32) -> (i32, i32, i32) {
    %c0_i32 = arith.constant 0 : i32
    %c0_i32_0 = arith.constant 0 : i32
    %c0_i32_1 = arith.constant 0 : i32
    %c0_i32_2 = arith.constant 0 : i32
    return %c0_i32, %c0_i32_0, %c0_i32_1 : i32, i32, i32
  }
  func.func @transform_5(%arg0: i32) -> (i32, i32, i32) {
    %c0_i32 = arith.constant 0 : i32
    %c0_i32_0 = arith.constant 0 : i32
    %c0_i32_1 = arith.constant 0 : i32
    %c0_i32_2 = arith.constant 0 : i32
    return %c0_i32, %c0_i32_0, %c0_i32_1 : i32, i32, i32
  }
  func.func @transform_6(%arg0: i32) -> (i32, i32, i32) {
    %c0_i32 = arith.constant 0 : i32
    %c0_i32_0 = arith.constant 0 : i32
    %c0_i32_1 = arith.constant 0 : i32
    %c0_i32_2 = arith.constant 0 : i32
    return %c0_i32, %c0_i32_0, %c0_i32_1 : i32, i32, i32
  }
  func.func @transform_7(%arg0: i32) -> (i32, i32) {
    %c0_i32 = arith.constant 0 : i32
    %c0_i32_0 = arith.constant 0 : i32
    %c0_i32_1 = arith.constant 0 : i32
    return %c0_i32, %c0_i32_0 : i32, i32
  }
  func.func @transform_8(%arg0: i32) -> (i32, i32) {
    %c0_i32 = arith.constant 0 : i32
    %c0_i32_0 = arith.constant 0 : i32
    %c0_i32_1 = arith.constant 0 : i32
    return %c0_i32, %c0_i32_0 : i32, i32
  }
  func.func @transform_9(%arg0: i32) -> (i32, i32) {
    %c0_i32 = arith.constant 0 : i32
    %c0_i32_0 = arith.constant 0 : i32
    return %arg0, %c0_i32 : i32, i32
  }
}

module attributes {stable_mosaic.version = 11 : i64} {
  func.func @_single_stage_kernel(%arg0: i32, %arg1: memref<32x8xbf16, #tpu.memory_space<vmem>>, %arg2: memref<8x128xbf16, #tpu.memory_space<vmem>>, %arg3: memref<1x128xf32, #tpu.memory_space<vmem>>, %arg4: memref<4x128x128xbf16, #tpu.memory_space<vmem>>, %arg5: memref<4x1x128xf32, #tpu.memory_space<vmem>>, %arg6: memref<4x128x128xbf16, #tpu.memory_space<vmem>>, %arg7: memref<4x1x128xf32, #tpu.memory_space<vmem>>, %arg8: memref<128x128xbf16, #tpu.memory_space<vmem>>, %arg9: memref<1x128xf32, #tpu.memory_space<vmem>>, %arg10: memref<32x8xf32, #tpu.memory_space<vmem>>) attributes {dimension_semantics = [#tpu.dimension_semantics<parallel>], iteration_bounds = array<i64: 2>, scalar_prefetch = 0 : i64, scratch_operands = 0 : i64, tpu.core_type = #tpu.core_type<tc>, window_params = [{transform_indices = @transform_0, window_bounds = array<i64: 32, 8>}, {pipeline_mode = #tpu.pipeline_mode<synchronous>, transform_indices = @transform_1, window_bounds = array<i64: 8, 128>}, {pipeline_mode = #tpu.pipeline_mode<synchronous>, transform_indices = @transform_2, window_bounds = array<i64: 1, 128>}, {pipeline_mode = #tpu.pipeline_mode<synchronous>, transform_indices = @transform_3, window_bounds = array<i64: 4, 128, 128>}, {pipeline_mode = #tpu.pipeline_mode<synchronous>, transform_indices = @transform_4, window_bounds = array<i64: 4, 1, 128>}, {pipeline_mode = #tpu.pipeline_mode<synchronous>, transform_indices = @transform_5, window_bounds = array<i64: 4, 128, 128>}, {pipeline_mode = #tpu.pipeline_mode<synchronous>, transform_indices = @transform_6, window_bounds = array<i64: 4, 1, 128>}, {pipeline_mode = #tpu.pipeline_mode<synchronous>, transform_indices = @transform_7, window_bounds = array<i64: 128, 128>}, {pipeline_mode = #tpu.pipeline_mode<synchronous>, transform_indices = @transform_8, window_bounds = array<i64: 1, 128>}, {transform_indices = @transform_9, window_bounds = array<i64: 32, 8>}]} {
    %0 = tpu.iota {dimensions = array<i32: 0>} : vector<32x1xi32>
    %c16_i32 = arith.constant 16 : i32
    %c0_i32 = arith.constant 0 : i32
    %1 = arith.cmpi eq, %c16_i32, %c0_i32 : i32
    %c1_i32 = arith.constant 1 : i32
    %2 = arith.select %1, %c1_i32, %c16_i32 : i32
    %3 = vector.broadcast %2 : i32 to vector<32x1xi32>
    %4 = arith.remsi %0, %3 : vector<32x1xi32>
    %c0_i32_0 = arith.constant 0 : i32
    %5 = vector.broadcast %c0_i32_0 : i32 to vector<32x1xi32>
    %6 = arith.cmpi ne, %4, %5 : vector<32x1xi32>
    %c0_i32_1 = arith.constant 0 : i32
    %7 = vector.broadcast %c0_i32_1 : i32 to vector<32x1xi32>
    %8 = arith.cmpi slt, %4, %7 : vector<32x1xi32>
    %c0_i32_2 = arith.constant 0 : i32
    %9 = arith.cmpi slt, %2, %c0_i32_2 : i32
    %10 = vector.broadcast %9 : i1 to vector<32x1xi1>
    %11 = vector.broadcast %10 : vector<32x1xi1> to vector<32x1xi1>
    %12 = arith.xori %8, %11 : vector<32x1xi1>
    %13 = arith.andi %12, %6 : vector<32x1xi1>
    %14 = vector.broadcast %2 : i32 to vector<32x1xi32>
    %15 = arith.addi %4, %14 : vector<32x1xi32>
    %16 = arith.select %13, %15, %4 : vector<32x1xi1>, vector<32x1xi32>
    %c0 = arith.constant 0 : index
    %c0_3 = arith.constant 0 : index
    %17 = vector.load %arg1[%c0, %c0_3] : memref<32x8xbf16, #tpu.memory_space<vmem>>, vector<32x8xbf16>
    %c0_4 = arith.constant 0 : index
    %c0_5 = arith.constant 0 : index
    %18 = vector.load %arg2[%c0_4, %c0_5] : memref<8x128xbf16, #tpu.memory_space<vmem>>, vector<8x128xbf16>
    %cst = arith.constant dense<0.000000e+00> : vector<32x128xf32>
    %19 = tpu.matmul %17, %18, %cst {dimension_numbers = #tpu.dot_dimension_numbers<[1], [0], [0], [1], [0, 0, 1, 1], [], []>} : vector<32x8xbf16>, vector<8x128xbf16>, vector<32x128xf32> -> vector<32x128xf32>
    %c0_6 = arith.constant 0 : index
    %c0_7 = arith.constant 0 : index
    %20 = vector.load %arg3[%c0_6, %c0_7] : memref<1x128xf32, #tpu.memory_space<vmem>>, vector<1x128xf32>
    %21 = vector.broadcast %20 : vector<1x128xf32> to vector<32x128xf32>
    %22 = arith.addf %19, %21 : vector<32x128xf32>
    %23 = arith.truncf %22 : vector<32x128xf32> to vector<32x128xbf16>
    %c0_8 = arith.constant 0 : index
    %c0_9 = arith.constant 0 : index
    %c0_10 = arith.constant 0 : index
    %24 = vector.load %arg4[%c0_8, %c0_9, %c0_10] : memref<4x128x128xbf16, #tpu.memory_space<vmem>>, vector<1x128x128xbf16>
    %25 = vector.shape_cast %24 : vector<1x128x128xbf16> to vector<128x128xbf16>
    %cst_11 = arith.constant dense<0.000000e+00> : vector<32x128xf32>
    %26 = tpu.matmul %23, %25, %cst_11 {dimension_numbers = #tpu.dot_dimension_numbers<[1], [0], [0], [1], [0, 0, 1, 1], [], []>} : vector<32x128xbf16>, vector<128x128xbf16>, vector<32x128xf32> -> vector<32x128xf32>
    %c96_i32 = arith.constant 96 : i32
    %27 = tpu.dynamic_rotate %26 by %c96_i32 dim 1 : vector<32x128xf32>, i32 -> vector<32x128xf32>
    %c1_i32_12 = arith.constant 1 : i32
    %28 = tpu.dynamic_rotate %26 by %c1_i32_12 dim 0 : vector<32x128xf32>, i32 -> vector<32x128xf32>
    %c1_i32_13 = arith.constant 1 : i32
    %29 = vector.broadcast %c1_i32_13 : i32 to vector<32x1xi32>
    %30 = arith.cmpi sge, %16, %29 : vector<32x1xi32>
    %cst_14 = arith.constant 0.000000e+00 : f32
    %31 = vector.shape_cast %30 : vector<32x1xi1> to vector<32x1xi1>
    %32 = vector.broadcast %31 : vector<32x1xi1> to vector<32x128xi1>
    %33 = vector.broadcast %cst_14 : f32 to vector<32x128xf32>
    %34 = arith.select %32, %28, %33 : vector<32x128xi1>, vector<32x128xf32>
    %35 = arith.addf %27, %34 : vector<32x128xf32>
    %c64_i32 = arith.constant 64 : i32
    %36 = tpu.dynamic_rotate %26 by %c64_i32 dim 1 : vector<32x128xf32>, i32 -> vector<32x128xf32>
    %c31_i32 = arith.constant 31 : i32
    %37 = tpu.dynamic_rotate %36 by %c31_i32 dim 0 : vector<32x128xf32>, i32 -> vector<32x128xf32>
    %c15_i32 = arith.constant 15 : i32
    %38 = vector.broadcast %c15_i32 : i32 to vector<32x1xi32>
    %39 = arith.cmpi slt, %16, %38 : vector<32x1xi32>
    %cst_15 = arith.constant 0.000000e+00 : f32
    %40 = vector.shape_cast %39 : vector<32x1xi1> to vector<32x1xi1>
    %41 = vector.broadcast %40 : vector<32x1xi1> to vector<32x128xi1>
    %42 = vector.broadcast %cst_15 : f32 to vector<32x128xf32>
    %43 = arith.select %41, %37, %42 : vector<32x128xi1>, vector<32x128xf32>
    %44 = arith.addf %35, %43 : vector<32x128xf32>
    %c0_16 = arith.constant 0 : index
    %c0_17 = arith.constant 0 : index
    %c0_18 = arith.constant 0 : index
    %45 = vector.load %arg5[%c0_16, %c0_17, %c0_18] : memref<4x1x128xf32, #tpu.memory_space<vmem>>, vector<1x1x128xf32>
    %46 = vector.shape_cast %45 : vector<1x1x128xf32> to vector<1x128xf32>
    %47 = vector.broadcast %46 : vector<1x128xf32> to vector<32x128xf32>
    %48 = arith.addf %44, %47 : vector<32x128xf32>
    %cst_19 = arith.constant 0.000000e+00 : f32
    %49 = vector.broadcast %cst_19 : f32 to vector<32x128xf32>
    %50 = arith.maximumf %48, %49 : vector<32x128xf32>
    %51 = arith.truncf %50 : vector<32x128xf32> to vector<32x128xbf16>
    %c0_20 = arith.constant 0 : index
    %c0_21 = arith.constant 0 : index
    %c0_22 = arith.constant 0 : index
    %52 = vector.load %arg6[%c0_20, %c0_21, %c0_22] : memref<4x128x128xbf16, #tpu.memory_space<vmem>>, vector<1x128x128xbf16>
    %53 = vector.shape_cast %52 : vector<1x128x128xbf16> to vector<128x128xbf16>
    %cst_23 = arith.constant dense<0.000000e+00> : vector<32x128xf32>
    %54 = tpu.matmul %51, %53, %cst_23 {dimension_numbers = #tpu.dot_dimension_numbers<[1], [0], [0], [1], [0, 0, 1, 1], [], []>} : vector<32x128xbf16>, vector<128x128xbf16>, vector<32x128xf32> -> vector<32x128xf32>
    %c0_24 = arith.constant 0 : index
    %c0_25 = arith.constant 0 : index
    %c0_26 = arith.constant 0 : index
    %55 = vector.load %arg7[%c0_24, %c0_25, %c0_26] : memref<4x1x128xf32, #tpu.memory_space<vmem>>, vector<1x1x128xf32>
    %56 = vector.shape_cast %55 : vector<1x1x128xf32> to vector<1x128xf32>
    %57 = vector.broadcast %56 : vector<1x128xf32> to vector<32x128xf32>
    %58 = arith.addf %54, %57 : vector<32x128xf32>
    %59 = arith.addf %22, %58 : vector<32x128xf32>
    %60 = arith.truncf %59 : vector<32x128xf32> to vector<32x128xbf16>
    %c1 = arith.constant 1 : index
    %c0_27 = arith.constant 0 : index
    %c0_28 = arith.constant 0 : index
    %61 = vector.load %arg4[%c1, %c0_27, %c0_28] : memref<4x128x128xbf16, #tpu.memory_space<vmem>>, vector<1x128x128xbf16>
    %62 = vector.shape_cast %61 : vector<1x128x128xbf16> to vector<128x128xbf16>
    %cst_29 = arith.constant dense<0.000000e+00> : vector<32x128xf32>
    %63 = tpu.matmul %60, %62, %cst_29 {dimension_numbers = #tpu.dot_dimension_numbers<[1], [0], [0], [1], [0, 0, 1, 1], [], []>} : vector<32x128xbf16>, vector<128x128xbf16>, vector<32x128xf32> -> vector<32x128xf32>
    %c96_i32_30 = arith.constant 96 : i32
    %64 = tpu.dynamic_rotate %63 by %c96_i32_30 dim 1 : vector<32x128xf32>, i32 -> vector<32x128xf32>
    %c2_i32 = arith.constant 2 : i32
    %65 = tpu.dynamic_rotate %63 by %c2_i32 dim 0 : vector<32x128xf32>, i32 -> vector<32x128xf32>
    %c2_i32_31 = arith.constant 2 : i32
    %66 = vector.broadcast %c2_i32_31 : i32 to vector<32x1xi32>
    %67 = arith.cmpi sge, %16, %66 : vector<32x1xi32>
    %cst_32 = arith.constant 0.000000e+00 : f32
    %68 = vector.shape_cast %67 : vector<32x1xi1> to vector<32x1xi1>
    %69 = vector.broadcast %68 : vector<32x1xi1> to vector<32x128xi1>
    %70 = vector.broadcast %cst_32 : f32 to vector<32x128xf32>
    %71 = arith.select %69, %65, %70 : vector<32x128xi1>, vector<32x128xf32>
    %72 = arith.addf %64, %71 : vector<32x128xf32>
    %c64_i32_33 = arith.constant 64 : i32
    %73 = tpu.dynamic_rotate %63 by %c64_i32_33 dim 1 : vector<32x128xf32>, i32 -> vector<32x128xf32>
    %c30_i32 = arith.constant 30 : i32
    %74 = tpu.dynamic_rotate %73 by %c30_i32 dim 0 : vector<32x128xf32>, i32 -> vector<32x128xf32>
    %c14_i32 = arith.constant 14 : i32
    %75 = vector.broadcast %c14_i32 : i32 to vector<32x1xi32>
    %76 = arith.cmpi slt, %16, %75 : vector<32x1xi32>
    %cst_34 = arith.constant 0.000000e+00 : f32
    %77 = vector.shape_cast %76 : vector<32x1xi1> to vector<32x1xi1>
    %78 = vector.broadcast %77 : vector<32x1xi1> to vector<32x128xi1>
    %79 = vector.broadcast %cst_34 : f32 to vector<32x128xf32>
    %80 = arith.select %78, %74, %79 : vector<32x128xi1>, vector<32x128xf32>
    %81 = arith.addf %72, %80 : vector<32x128xf32>
    %c1_35 = arith.constant 1 : index
    %c0_36 = arith.constant 0 : index
    %c0_37 = arith.constant 0 : index
    %82 = vector.load %arg5[%c1_35, %c0_36, %c0_37] : memref<4x1x128xf32, #tpu.memory_space<vmem>>, vector<1x1x128xf32>
    %83 = vector.shape_cast %82 : vector<1x1x128xf32> to vector<1x128xf32>
    %84 = vector.broadcast %83 : vector<1x128xf32> to vector<32x128xf32>
    %85 = arith.addf %81, %84 : vector<32x128xf32>
    %cst_38 = arith.constant 0.000000e+00 : f32
    %86 = vector.broadcast %cst_38 : f32 to vector<32x128xf32>
    %87 = arith.maximumf %85, %86 : vector<32x128xf32>
    %88 = arith.truncf %87 : vector<32x128xf32> to vector<32x128xbf16>
    %c1_39 = arith.constant 1 : index
    %c0_40 = arith.constant 0 : index
    %c0_41 = arith.constant 0 : index
    %89 = vector.load %arg6[%c1_39, %c0_40, %c0_41] : memref<4x128x128xbf16, #tpu.memory_space<vmem>>, vector<1x128x128xbf16>
    %90 = vector.shape_cast %89 : vector<1x128x128xbf16> to vector<128x128xbf16>
    %cst_42 = arith.constant dense<0.000000e+00> : vector<32x128xf32>
    %91 = tpu.matmul %88, %90, %cst_42 {dimension_numbers = #tpu.dot_dimension_numbers<[1], [0], [0], [1], [0, 0, 1, 1], [], []>} : vector<32x128xbf16>, vector<128x128xbf16>, vector<32x128xf32> -> vector<32x128xf32>
    %c1_43 = arith.constant 1 : index
    %c0_44 = arith.constant 0 : index
    %c0_45 = arith.constant 0 : index
    %92 = vector.load %arg7[%c1_43, %c0_44, %c0_45] : memref<4x1x128xf32, #tpu.memory_space<vmem>>, vector<1x1x128xf32>
    %93 = vector.shape_cast %92 : vector<1x1x128xf32> to vector<1x128xf32>
    %94 = vector.broadcast %93 : vector<1x128xf32> to vector<32x128xf32>
    %95 = arith.addf %91, %94 : vector<32x128xf32>
    %96 = arith.addf %59, %95 : vector<32x128xf32>
    %97 = arith.truncf %96 : vector<32x128xf32> to vector<32x128xbf16>
    %c2 = arith.constant 2 : index
    %c0_46 = arith.constant 0 : index
    %c0_47 = arith.constant 0 : index
    %98 = vector.load %arg4[%c2, %c0_46, %c0_47] : memref<4x128x128xbf16, #tpu.memory_space<vmem>>, vector<1x128x128xbf16>
    %99 = vector.shape_cast %98 : vector<1x128x128xbf16> to vector<128x128xbf16>
    %cst_48 = arith.constant dense<0.000000e+00> : vector<32x128xf32>
    %100 = tpu.matmul %97, %99, %cst_48 {dimension_numbers = #tpu.dot_dimension_numbers<[1], [0], [0], [1], [0, 0, 1, 1], [], []>} : vector<32x128xbf16>, vector<128x128xbf16>, vector<32x128xf32> -> vector<32x128xf32>
    %c96_i32_49 = arith.constant 96 : i32
    %101 = tpu.dynamic_rotate %100 by %c96_i32_49 dim 1 : vector<32x128xf32>, i32 -> vector<32x128xf32>
    %c4_i32 = arith.constant 4 : i32
    %102 = tpu.dynamic_rotate %100 by %c4_i32 dim 0 : vector<32x128xf32>, i32 -> vector<32x128xf32>
    %c4_i32_50 = arith.constant 4 : i32
    %103 = vector.broadcast %c4_i32_50 : i32 to vector<32x1xi32>
    %104 = arith.cmpi sge, %16, %103 : vector<32x1xi32>
    %cst_51 = arith.constant 0.000000e+00 : f32
    %105 = vector.shape_cast %104 : vector<32x1xi1> to vector<32x1xi1>
    %106 = vector.broadcast %105 : vector<32x1xi1> to vector<32x128xi1>
    %107 = vector.broadcast %cst_51 : f32 to vector<32x128xf32>
    %108 = arith.select %106, %102, %107 : vector<32x128xi1>, vector<32x128xf32>
    %109 = arith.addf %101, %108 : vector<32x128xf32>
    %c64_i32_52 = arith.constant 64 : i32
    %110 = tpu.dynamic_rotate %100 by %c64_i32_52 dim 1 : vector<32x128xf32>, i32 -> vector<32x128xf32>
    %c28_i32 = arith.constant 28 : i32
    %111 = tpu.dynamic_rotate %110 by %c28_i32 dim 0 : vector<32x128xf32>, i32 -> vector<32x128xf32>
    %c12_i32 = arith.constant 12 : i32
    %112 = vector.broadcast %c12_i32 : i32 to vector<32x1xi32>
    %113 = arith.cmpi slt, %16, %112 : vector<32x1xi32>
    %cst_53 = arith.constant 0.000000e+00 : f32
    %114 = vector.shape_cast %113 : vector<32x1xi1> to vector<32x1xi1>
    %115 = vector.broadcast %114 : vector<32x1xi1> to vector<32x128xi1>
    %116 = vector.broadcast %cst_53 : f32 to vector<32x128xf32>
    %117 = arith.select %115, %111, %116 : vector<32x128xi1>, vector<32x128xf32>
    %118 = arith.addf %109, %117 : vector<32x128xf32>
    %c2_54 = arith.constant 2 : index
    %c0_55 = arith.constant 0 : index
    %c0_56 = arith.constant 0 : index
    %119 = vector.load %arg5[%c2_54, %c0_55, %c0_56] : memref<4x1x128xf32, #tpu.memory_space<vmem>>, vector<1x1x128xf32>
    %120 = vector.shape_cast %119 : vector<1x1x128xf32> to vector<1x128xf32>
    %121 = vector.broadcast %120 : vector<1x128xf32> to vector<32x128xf32>
    %122 = arith.addf %118, %121 : vector<32x128xf32>
    %cst_57 = arith.constant 0.000000e+00 : f32
    %123 = vector.broadcast %cst_57 : f32 to vector<32x128xf32>
    %124 = arith.maximumf %122, %123 : vector<32x128xf32>
    %125 = arith.truncf %124 : vector<32x128xf32> to vector<32x128xbf16>
    %c2_58 = arith.constant 2 : index
    %c0_59 = arith.constant 0 : index
    %c0_60 = arith.constant 0 : index
    %126 = vector.load %arg6[%c2_58, %c0_59, %c0_60] : memref<4x128x128xbf16, #tpu.memory_space<vmem>>, vector<1x128x128xbf16>
    %127 = vector.shape_cast %126 : vector<1x128x128xbf16> to vector<128x128xbf16>
    %cst_61 = arith.constant dense<0.000000e+00> : vector<32x128xf32>
    %128 = tpu.matmul %125, %127, %cst_61 {dimension_numbers = #tpu.dot_dimension_numbers<[1], [0], [0], [1], [0, 0, 1, 1], [], []>} : vector<32x128xbf16>, vector<128x128xbf16>, vector<32x128xf32> -> vector<32x128xf32>
    %c2_62 = arith.constant 2 : index
    %c0_63 = arith.constant 0 : index
    %c0_64 = arith.constant 0 : index
    %129 = vector.load %arg7[%c2_62, %c0_63, %c0_64] : memref<4x1x128xf32, #tpu.memory_space<vmem>>, vector<1x1x128xf32>
    %130 = vector.shape_cast %129 : vector<1x1x128xf32> to vector<1x128xf32>
    %131 = vector.broadcast %130 : vector<1x128xf32> to vector<32x128xf32>
    %132 = arith.addf %128, %131 : vector<32x128xf32>
    %133 = arith.addf %96, %132 : vector<32x128xf32>
    %134 = arith.truncf %133 : vector<32x128xf32> to vector<32x128xbf16>
    %c3 = arith.constant 3 : index
    %c0_65 = arith.constant 0 : index
    %c0_66 = arith.constant 0 : index
    %135 = vector.load %arg4[%c3, %c0_65, %c0_66] : memref<4x128x128xbf16, #tpu.memory_space<vmem>>, vector<1x128x128xbf16>
    %136 = vector.shape_cast %135 : vector<1x128x128xbf16> to vector<128x128xbf16>
    %cst_67 = arith.constant dense<0.000000e+00> : vector<32x128xf32>
    %137 = tpu.matmul %134, %136, %cst_67 {dimension_numbers = #tpu.dot_dimension_numbers<[1], [0], [0], [1], [0, 0, 1, 1], [], []>} : vector<32x128xbf16>, vector<128x128xbf16>, vector<32x128xf32> -> vector<32x128xf32>
    %c96_i32_68 = arith.constant 96 : i32
    %138 = tpu.dynamic_rotate %137 by %c96_i32_68 dim 1 : vector<32x128xf32>, i32 -> vector<32x128xf32>
    %c8_i32 = arith.constant 8 : i32
    %139 = tpu.dynamic_rotate %137 by %c8_i32 dim 0 : vector<32x128xf32>, i32 -> vector<32x128xf32>
    %c8_i32_69 = arith.constant 8 : i32
    %140 = vector.broadcast %c8_i32_69 : i32 to vector<32x1xi32>
    %141 = arith.cmpi sge, %16, %140 : vector<32x1xi32>
    %cst_70 = arith.constant 0.000000e+00 : f32
    %142 = vector.shape_cast %141 : vector<32x1xi1> to vector<32x1xi1>
    %143 = vector.broadcast %142 : vector<32x1xi1> to vector<32x128xi1>
    %144 = vector.broadcast %cst_70 : f32 to vector<32x128xf32>
    %145 = arith.select %143, %139, %144 : vector<32x128xi1>, vector<32x128xf32>
    %146 = arith.addf %138, %145 : vector<32x128xf32>
    %c64_i32_71 = arith.constant 64 : i32
    %147 = tpu.dynamic_rotate %137 by %c64_i32_71 dim 1 : vector<32x128xf32>, i32 -> vector<32x128xf32>
    %c24_i32 = arith.constant 24 : i32
    %148 = tpu.dynamic_rotate %147 by %c24_i32 dim 0 : vector<32x128xf32>, i32 -> vector<32x128xf32>
    %c8_i32_72 = arith.constant 8 : i32
    %149 = vector.broadcast %c8_i32_72 : i32 to vector<32x1xi32>
    %150 = arith.cmpi slt, %16, %149 : vector<32x1xi32>
    %cst_73 = arith.constant 0.000000e+00 : f32
    %151 = vector.shape_cast %150 : vector<32x1xi1> to vector<32x1xi1>
    %152 = vector.broadcast %151 : vector<32x1xi1> to vector<32x128xi1>
    %153 = vector.broadcast %cst_73 : f32 to vector<32x128xf32>
    %154 = arith.select %152, %148, %153 : vector<32x128xi1>, vector<32x128xf32>
    %155 = arith.addf %146, %154 : vector<32x128xf32>
    %c3_74 = arith.constant 3 : index
    %c0_75 = arith.constant 0 : index
    %c0_76 = arith.constant 0 : index
    %156 = vector.load %arg5[%c3_74, %c0_75, %c0_76] : memref<4x1x128xf32, #tpu.memory_space<vmem>>, vector<1x1x128xf32>
    %157 = vector.shape_cast %156 : vector<1x1x128xf32> to vector<1x128xf32>
    %158 = vector.broadcast %157 : vector<1x128xf32> to vector<32x128xf32>
    %159 = arith.addf %155, %158 : vector<32x128xf32>
    %cst_77 = arith.constant 0.000000e+00 : f32
    %160 = vector.broadcast %cst_77 : f32 to vector<32x128xf32>
    %161 = arith.maximumf %159, %160 : vector<32x128xf32>
    %162 = arith.truncf %161 : vector<32x128xf32> to vector<32x128xbf16>
    %c3_78 = arith.constant 3 : index
    %c0_79 = arith.constant 0 : index
    %c0_80 = arith.constant 0 : index
    %163 = vector.load %arg6[%c3_78, %c0_79, %c0_80] : memref<4x128x128xbf16, #tpu.memory_space<vmem>>, vector<1x128x128xbf16>
    %164 = vector.shape_cast %163 : vector<1x128x128xbf16> to vector<128x128xbf16>
    %cst_81 = arith.constant dense<0.000000e+00> : vector<32x128xf32>
    %165 = tpu.matmul %162, %164, %cst_81 {dimension_numbers = #tpu.dot_dimension_numbers<[1], [0], [0], [1], [0, 0, 1, 1], [], []>} : vector<32x128xbf16>, vector<128x128xbf16>, vector<32x128xf32> -> vector<32x128xf32>
    %c3_82 = arith.constant 3 : index
    %c0_83 = arith.constant 0 : index
    %c0_84 = arith.constant 0 : index
    %166 = vector.load %arg7[%c3_82, %c0_83, %c0_84] : memref<4x1x128xf32, #tpu.memory_space<vmem>>, vector<1x1x128xf32>
    %167 = vector.shape_cast %166 : vector<1x1x128xf32> to vector<1x128xf32>
    %168 = vector.broadcast %167 : vector<1x128xf32> to vector<32x128xf32>
    %169 = arith.addf %165, %168 : vector<32x128xf32>
    %170 = arith.addf %133, %169 : vector<32x128xf32>
    %171 = arith.truncf %170 : vector<32x128xf32> to vector<32x128xbf16>
    %c0_85 = arith.constant 0 : index
    %c0_86 = arith.constant 0 : index
    %172 = vector.load %arg8[%c0_85, %c0_86] : memref<128x128xbf16, #tpu.memory_space<vmem>>, vector<128x128xbf16>
    %cst_87 = arith.constant dense<0.000000e+00> : vector<32x128xf32>
    %173 = tpu.matmul %171, %172, %cst_87 {dimension_numbers = #tpu.dot_dimension_numbers<[1], [0], [0], [1], [0, 0, 1, 1], [], []>} : vector<32x128xbf16>, vector<128x128xbf16>, vector<32x128xf32> -> vector<32x128xf32>
    %c0_88 = arith.constant 0 : index
    %c0_89 = arith.constant 0 : index
    %174 = vector.load %arg9[%c0_88, %c0_89] : memref<1x128xf32, #tpu.memory_space<vmem>>, vector<1x128xf32>
    %175 = vector.broadcast %174 : vector<1x128xf32> to vector<32x128xf32>
    %176 = arith.addf %173, %175 : vector<32x128xf32>
    %177 = vector.extract_strided_slice %176 {offsets = [0, 0], sizes = [32, 8], strides = [1, 1]} : vector<32x128xf32> to vector<32x8xf32>
    %c0_90 = arith.constant 0 : index
    %c0_91 = arith.constant 0 : index
    %178 = vector.load %arg10[%c0_90, %c0_91] : memref<32x8xf32, #tpu.memory_space<vmem>>, vector<32x8xf32>
    tpu.vector_store %arg10[%c0_90, %c0_91], %177 {strides = array<i32>} : memref<32x8xf32, #tpu.memory_space<vmem>>, vector<32x8xf32>,
    return
  }
  func.func @transform_0(%arg0: i32) -> (i32, i32) {
    %c0_i32 = arith.constant 0 : i32
    %c0_i32_0 = arith.constant 0 : i32
    return %arg0, %c0_i32 : i32, i32
  }
  func.func @transform_1(%arg0: i32) -> (i32, i32) {
    %c0_i32 = arith.constant 0 : i32
    %c0_i32_0 = arith.constant 0 : i32
    %c0_i32_1 = arith.constant 0 : i32
    return %c0_i32, %c0_i32_0 : i32, i32
  }
  func.func @transform_2(%arg0: i32) -> (i32, i32) {
    %c0_i32 = arith.constant 0 : i32
    %c0_i32_0 = arith.constant 0 : i32
    %c0_i32_1 = arith.constant 0 : i32
    return %c0_i32, %c0_i32_0 : i32, i32
  }
  func.func @transform_3(%arg0: i32) -> (i32, i32, i32) {
    %c0_i32 = arith.constant 0 : i32
    %c0_i32_0 = arith.constant 0 : i32
    %c0_i32_1 = arith.constant 0 : i32
    %c0_i32_2 = arith.constant 0 : i32
    return %c0_i32, %c0_i32_0, %c0_i32_1 : i32, i32, i32
  }
  func.func @transform_4(%arg0: i32) -> (i32, i32, i32) {
    %c0_i32 = arith.constant 0 : i32
    %c0_i32_0 = arith.constant 0 : i32
    %c0_i32_1 = arith.constant 0 : i32
    %c0_i32_2 = arith.constant 0 : i32
    return %c0_i32, %c0_i32_0, %c0_i32_1 : i32, i32, i32
  }
  func.func @transform_5(%arg0: i32) -> (i32, i32, i32) {
    %c0_i32 = arith.constant 0 : i32
    %c0_i32_0 = arith.constant 0 : i32
    %c0_i32_1 = arith.constant 0 : i32
    %c0_i32_2 = arith.constant 0 : i32
    return %c0_i32, %c0_i32_0, %c0_i32_1 : i32, i32, i32
  }
  func.func @transform_6(%arg0: i32) -> (i32, i32, i32) {
    %c0_i32 = arith.constant 0 : i32
    %c0_i32_0 = arith.constant 0 : i32
    %c0_i32_1 = arith.constant 0 : i32
    %c0_i32_2 = arith.constant 0 : i32
    return %c0_i32, %c0_i32_0, %c0_i32_1 : i32, i32, i32
  }
  func.func @transform_7(%arg0: i32) -> (i32, i32) {
    %c0_i32 = arith.constant 0 : i32
    %c0_i32_0 = arith.constant 0 : i32
    %c0_i32_1 = arith.constant 0 : i32
    return %c0_i32, %c0_i32_0 : i32, i32
  }
  func.func @transform_8(%arg0: i32) -> (i32, i32) {
    %c0_i32 = arith.constant 0 : i32
    %c0_i32_0 = arith.constant 0 : i32
    %c0_i32_1 = arith.constant 0 : i32
    return %c0_i32, %c0_i32_0 : i32, i32
  }
  func.func @transform_9(%arg0: i32) -> (i32, i32) {
    %c0_i32 = arith.constant 0 : i32
    %c0_i32_0 = arith.constant 0 : i32
    return %arg0, %c0_i32 : i32, i32
  }
}

</mosaic_0001>

<llo_original>
// kernel: tpu_custom_call.1
$region0: #{tpu_custom_call.1}
  #allocation0 [shape = 'u32[]', space=smem, size = 0x4, offset = 0x4, fixed_abs, tag = 'smem constant byte address 0x4 - core index']
  #allocation1 [shape = 'u32[144,128]{1,0:T(1,128)}', space=vmem, size = 0x12000, scoped, tag = 'internal scratch']
  %s0 = inlined_call_operand.vmem [shape: bf16[64,8], index: 0, kind: input, shape index: {}]
  %s1 = inlined_call_operand.vmem [shape: bf16[8,128], index: 1, kind: input, shape index: {}]
  %s2 = inlined_call_operand.vmem [shape: f32[1,128], index: 2, kind: input, shape index: {}]
  %s3 = inlined_call_operand.hbm [shape: bf16[4,128,128], index: 3, kind: input, shape index: {}]
  %s4 = inlined_call_operand.vmem [shape: f32[4,1,128], index: 4, kind: input, shape index: {}]
  %s5 = inlined_call_operand.hbm [shape: bf16[4,128,128], index: 5, kind: input, shape index: {}]
  %s6 = inlined_call_operand.vmem [shape: f32[4,1,128], index: 6, kind: input, shape index: {}]
  %s7 = inlined_call_operand.hbm [shape: bf16[128,128], index: 7, kind: input, shape index: {}]
  %s8 = inlined_call_operand.vmem [shape: f32[1,128], index: 8, kind: input, shape index: {}]
  %s9 = inlined_call_operand.vmem [shape: f32[64,8], index: 9, kind: output, shape index: {}]
  %s10 = sld [smem:[#allocation0]]
  $region81: #{tpu_custom_call.1} parent=0
    _
  %s12 = ssub.s32 1, %s10
  %s13 = scalar_select 0, %s12, %s10
  $region1: #{tpu_custom_call.1} parent=0
    #allocation2 [shape = 'u8[131072]{0}', space=vmem, size = 0x20000, scoped, tag = 'input window, operand 3, single buffered']
    #allocation3 [shape = 's32[2]{0}', space=sflag, size = 0x8, scoped, tag = 'scoped memory for tpu_custom_call.1']
    #allocation4 [shape = 'u8[131072]{0}', space=vmem, size = 0x20000, scoped, tag = 'input window, operand 5, single buffered']
    #allocation5 [shape = 's32[1]{0}', space=sflag, size = 0x4, scoped, tag = 'scoped memory for tpu_custom_call.1']
    #allocation6 [shape = 'u8[32768]{0}', space=vmem, size = 0x8000, scoped, tag = 'input window, operand 7, single buffered']
    %14 = vsyncpa [#allocation3], 0
    %15 = vsyncpa [#allocation5], 0
    loop: start=0, step=1, limit=4
    $region2: #{tpu_custom_call.1} parent=1 // loop_pre_header
      _
    $region3: #{tpu_custom_call.1} parent=1 // loop_header
      %s17 = sphi 0, %s21
      %p18 = scmp.ge.s32.totalorder %s17, 4
      %s27 = sphi 0, %s29
      %s30 = sphi 0, %s27
      %s31 = sphi 0, %s30
      %s47 = sphi 0, %s31
      %s51 = sphi 0, %s51
      %s53 = sphi 0, %s51
      %s54 = sphi 0, %s53
      %s68 = sphi 0, %s54
      %s72 = sphi 0, %s72
      %s74 = sphi 0, %s72
      %s75 = sphi 0, %s74
      %s89 = sphi 0, %s75
      %s93 = sphi 0, %s93
      %s95 = sphi 0, %s93
      %s96 = sphi 0, %s95
      %s110 = sphi 0, %s96
      %s114 = sphi 0, %s114
      %s116 = sphi 0, %s114
      %s117 = sphi 0, %s116
      %s131 = sphi 0, %s117
      %s135 = sphi 0, %s135
      %s137 = sphi 0, %s135
      %s138 = sphi 0, %s137
      %s152 = sphi 0, %s138
      %s156 = sphi 0, %s156
      %s158 = sphi 0, %s156
      %s159 = sphi 0, %s158
      %s173 = sphi 0, %s159
      %s177 = sphi 0, %s177
      %s179 = sphi 0, %s177
      %s180 = sphi 0, %s179
      %s194 = sphi 0, %s180
      %s198 = sphi 0, %s198
      %s200 = sphi 0, %s198
      %s201 = sphi 0, %s200
      %s215 = sphi 0, %s201
      %s221 = sphi 0, %s223
      %s224 = sphi 0, %s221
      %s225 = sphi 0, %s224
      %s241 = sphi 0, %s225
    $region4: #{tpu_custom_call.1} parent=1 // loop_header_branch
      %20 = sbr.rel (%p18) target = $region8
    $region5: #{tpu_custom_call.1} parent=1 // loop_body
      %s22 = ssub.s32 %s17, 1
      %s23 = ssub.s32 %s17, 2
      %s24 = sadd.s32 %s17, 1
      %s25 = ssub.s32 %s17, %s24
      %p26 = scmp.eq.s32.totalorder %s25, 0
      %s28 = sadd.s32 %s27, 1
      %s29 = scalar_select %p26, %s27, %s28
      %p32 = pneg %p26
      %p33 = scmp.eq.s32.totalorder %s17, 1
      %p34 = por %p32, %p33
      %p35 = scmp.ne.s32.totalorder %s27, %s30
      %p36 = scmp.eq.s32.totalorder %s17, 0
      %p37 = por %p35, %p36
      %p38 = scmp.ne.s32.totalorder %s27, %s30
      %p39 = scmp.eq.s32.totalorder %s22, 1
      %p40 = por %p38, %p39
      %p41 = scmp.ne.s32.totalorder %s30, %s31
      %p42 = scmp.eq.s32.totalorder %s22, 0
      %p43 = por %p41, %p42
      %p44 = scmp.ne.s32.totalorder %s30, %s31
      %p45 = scmp.eq.s32.totalorder %s23, 1
      %p46 = por %p44, %p45
      %p48 = scmp.ne.s32.totalorder %s31, %s47
      %p49 = scmp.eq.s32.totalorder %s23, 0
      %p50 = por %p48, %p49
      %s52 = sadd.s32 %s51, 1
      %p55 = scmp.eq.s32.totalorder %s17, 1
      %p56 = scmp.ne.s32.totalorder %s51, %s53
      %p57 = scmp.eq.s32.totalorder %s17, 0
      %p58 = por %p56, %p57
      %p59 = scmp.ne.s32.totalorder %s51, %s53
      %p60 = scmp.eq.s32.totalorder %s22, 1
      %p61 = por %p59, %p60
      %p62 = scmp.ne.s32.totalorder %s53, %s54
      %p63 = scmp.eq.s32.totalorder %s22, 0
      %p64 = por %p62, %p63
      %p65 = scmp.ne.s32.totalorder %s53, %s54
      %p66 = scmp.eq.s32.totalorder %s23, 1
      %p67 = por %p65, %p66
      %p69 = scmp.ne.s32.totalorder %s54, %s68
      %p70 = scmp.eq.s32.totalorder %s23, 0
      %p71 = por %p69, %p70
      %s73 = sadd.s32 %s72, 1
      %p76 = scmp.eq.s32.totalorder %s17, 1
      %p77 = scmp.ne.s32.totalorder %s72, %s74
      %p78 = scmp.eq.s32.totalorder %s17, 0
      %p79 = por %p77, %p78
      %p80 = scmp.ne.s32.totalorder %s72, %s74
      %p81 = scmp.eq.s32.totalorder %s22, 1
      %p82 = por %p80, %p81
      %p83 = scmp.ne.s32.totalorder %s74, %s75
      %p84 = scmp.eq.s32.totalorder %s22, 0
      %p85 = por %p83, %p84
      %p86 = scmp.ne.s32.totalorder %s74, %s75
      %p87 = scmp.eq.s32.totalorder %s23, 1
      %p88 = por %p86, %p87
      %p90 = scmp.ne.s32.totalorder %s75, %s89
      %p91 = scmp.eq.s32.totalorder %s23, 0
      %p92 = por %p90, %p91
      %s94 = sadd.s32 %s93, 1
      %p97 = scmp.eq.s32.totalorder %s17, 1
      %p98 = scmp.ne.s32.totalorder %s93, %s95
      %p99 = scmp.eq.s32.totalorder %s17, 0
      %p100 = por %p98, %p99
      %p101 = scmp.ne.s32.totalorder %s93, %s95
      %p102 = scmp.eq.s32.totalorder %s22, 1
      %p103 = por %p101, %p102
      %p104 = scmp.ne.s32.totalorder %s95, %s96
      %p105 = scmp.eq.s32.totalorder %s22, 0
      %p106 = por %p104, %p105
      %p107 = scmp.ne.s32.totalorder %s95, %s96
      %p108 = scmp.eq.s32.totalorder %s23, 1
      %p109 = por %p107, %p108
      %p111 = scmp.ne.s32.totalorder %s96, %s110
      %p112 = scmp.eq.s32.totalorder %s23, 0
      %p113 = por %p111, %p112
      %s115 = sadd.s32 %s114, 1
      %p118 = scmp.eq.s32.totalorder %s17, 1
      %p119 = scmp.ne.s32.totalorder %s114, %s116
      %p120 = scmp.eq.s32.totalorder %s17, 0
      %p121 = por %p119, %p120
      %p122 = scmp.ne.s32.totalorder %s114, %s116
      %p123 = scmp.eq.s32.totalorder %s22, 1
      %p124 = por %p122, %p123
      %p125 = scmp.ne.s32.totalorder %s116, %s117
      %p126 = scmp.eq.s32.totalorder %s22, 0
      %p127 = por %p125, %p126
      %p128 = scmp.ne.s32.totalorder %s116, %s117
      %p129 = scmp.eq.s32.totalorder %s23, 1
      %p130 = por %p128, %p129
      %p132 = scmp.ne.s32.totalorder %s117, %s131
      %p133 = scmp.eq.s32.totalorder %s23, 0
      %p134 = por %p132, %p133
      %s136 = sadd.s32 %s135, 1
      %p139 = scmp.eq.s32.totalorder %s17, 1
      %p140 = scmp.ne.s32.totalorder %s135, %s137
      %p141 = scmp.eq.s32.totalorder %s17, 0
      %p142 = por %p140, %p141
      %p143 = scmp.ne.s32.totalorder %s135, %s137
      %p144 = scmp.eq.s32.totalorder %s22, 1
      %p145 = por %p143, %p144
      %p146 = scmp.ne.s32.totalorder %s137, %s138
      %p147 = scmp.eq.s32.totalorder %s22, 0
      %p148 = por %p146, %p147
      %p149 = scmp.ne.s32.totalorder %s137, %s138
      %p150 = scmp.eq.s32.totalorder %s23, 1
      %p151 = por %p149, %p150
      %p153 = scmp.ne.s32.totalorder %s138, %s152
      %p154 = scmp.eq.s32.totalorder %s23, 0
      %p155 = por %p153, %p154
      %s157 = sadd.s32 %s156, 1
      %p160 = scmp.eq.s32.totalorder %s17, 1
      %p161 = scmp.ne.s32.totalorder %s156, %s158
      %p162 = scmp.eq.s32.totalorder %s17, 0
      %p163 = por %p161, %p162
      %p164 = scmp.ne.s32.totalorder %s156, %s158
      %p165 = scmp.eq.s32.totalorder %s22, 1
      %p166 = por %p164, %p165
      %p167 = scmp.ne.s32.totalorder %s158, %s159
      %p168 = scmp.eq.s32.totalorder %s22, 0
      %p169 = por %p167, %p168
      %p170 = scmp.ne.s32.totalorder %s158, %s159
      %p171 = scmp.eq.s32.totalorder %s23, 1
      %p172 = por %p170, %p171
      %p174 = scmp.ne.s32.totalorder %s159, %s173
      %p175 = scmp.eq.s32.totalorder %s23, 0
      %p176 = por %p174, %p175
      %s178 = sadd.s32 %s177, 1
      %p181 = scmp.eq.s32.totalorder %s17, 1
      %p182 = scmp.ne.s32.totalorder %s177, %s179
      %p183 = scmp.eq.s32.totalorder %s17, 0
      %p184 = por %p182, %p183
      %p185 = scmp.ne.s32.totalorder %s177, %s179
      %p186 = scmp.eq.s32.totalorder %s22, 1
      %p187 = por %p185, %p186
      %p188 = scmp.ne.s32.totalorder %s179, %s180
      %p189 = scmp.eq.s32.totalorder %s22, 0
      %p190 = por %p188, %p189
      %p191 = scmp.ne.s32.totalorder %s179, %s180
      %p192 = scmp.eq.s32.totalorder %s23, 1
      %p193 = por %p191, %p192
      %p195 = scmp.ne.s32.totalorder %s180, %s194
      %p196 = scmp.eq.s32.totalorder %s23, 0
      %p197 = por %p195, %p196
      %s199 = sadd.s32 %s198, 1
      %p202 = scmp.eq.s32.totalorder %s17, 1
      %p203 = scmp.ne.s32.totalorder %s198, %s200
      %p204 = scmp.eq.s32.totalorder %s17, 0
      %p205 = por %p203, %p204
      %p206 = scmp.ne.s32.totalorder %s198, %s200
      %p207 = scmp.eq.s32.totalorder %s22, 1
      %p208 = por %p206, %p207
      %p209 = scmp.ne.s32.totalorder %s200, %s201
      %p210 = scmp.eq.s32.totalorder %s22, 0
      %p211 = por %p209, %p210
      %p212 = scmp.ne.s32.totalorder %s200, %s201
      %p213 = scmp.eq.s32.totalorder %s23, 1
      %p214 = por %p212, %p213
      %p216 = scmp.ne.s32.totalorder %s201, %s215
      %p217 = scmp.eq.s32.totalorder %s23, 0
      %p218 = por %p216, %p217
      %s219 = ssub.s32 %s17, %s24
      %p220 = scmp.eq.s32.totalorder %s219, 0
      %s222 = sadd.s32 %s221, 1
      %s223 = scalar_select %p220, %s221, %s222
      %p226 = pneg %p220
      %p227 = scmp.eq.s32.totalorder %s17, 1
      %p228 = por %p226, %p227
      %p229 = scmp.ne.s32.totalorder %s221, %s224
      %p230 = scmp.eq.s32.totalorder %s17, 0
      %p231 = por %p229, %p230
      %p232 = scmp.ne.s32.totalorder %s221, %s224
      %p233 = scmp.eq.s32.totalorder %s22, 1
      %p234 = por %p232, %p233
      %p235 = scmp.ne.s32.totalorder %s224, %s225
      %p236 = scmp.eq.s32.totalorder %s22, 0
      %p237 = por %p235, %p236
      %p238 = scmp.ne.s32.totalorder %s224, %s225
      %p239 = scmp.eq.s32.totalorder %s23, 1
      %p240 = por %p238, %p239
      %p242 = scmp.ne.s32.totalorder %s225, %s241
      %p243 = scmp.eq.s32.totalorder %s23, 0
      %p244 = por %p242, %p243
      %p245 = scmp.le.s32.totalorder 1, %s17
      %p246 = scmp.lt.s32.totalorder %s17, 3
      %p247 = pnand %p245, %p246
      %p248 = pneg %p247
      // Predicated region
      $region9: #{tpu_custom_call.1} parent=5 // pred_check
        _
      $region10: #{tpu_custom_call.1} parent=5 // pred_check_branch
        %250 = sbr.rel (%p247) target = $region12
      $region11: #{tpu_custom_call.1} parent=5 // pred_region
        %s251 = ssub.s32 %s17, 1
        // Predicated region
        $region13: #{tpu_custom_call.1} parent=11 // pred_check
          %p252 = pneg %p64
        $region14: #{tpu_custom_call.1} parent=11 // pred_check_branch
          %254 = sbr.rel (%p252) target = $region16
        $region15: #{tpu_custom_call.1} parent=11 // pred_region
          _
        $region16: #{tpu_custom_call.1} parent=11 // pred_fallthru
          _
        // Predicated region
        $region17: #{tpu_custom_call.1} parent=11 // pred_check
          %p255 = pneg %p85
        $region18: #{tpu_custom_call.1} parent=11 // pred_check_branch
          %257 = sbr.rel (%p255) target = $region20
        $region19: #{tpu_custom_call.1} parent=11 // pred_region
          _
        $region20: #{tpu_custom_call.1} parent=11 // pred_fallthru
          _
        // Predicated region
        $region21: #{tpu_custom_call.1} parent=11 // pred_check
          %p258 = pneg %p106
        $region22: #{tpu_custom_call.1} parent=11 // pred_check_branch
          %260 = sbr.rel (%p258) target = $region24
        $region23: #{tpu_custom_call.1} parent=11 // pred_region
          %s262 = ssub.s32 4096, 4096
          %263 = vsyncadd [#allocation3], %s262
          %s264 = sshll.u32 [#allocation2], 4
          %s265 = int_to_ptr.vmem [resolvable:$true] %s264
          %270 = dma.hbm_to_vmem [thread:$0]  %s3, 4096, %s265, [#allocation3], 64, 64, 4
        $region24: #{tpu_custom_call.1} parent=11 // pred_fallthru
          _
        // Predicated region
        $region25: #{tpu_custom_call.1} parent=11 // pred_check
          %p271 = pneg %p127
        $region26: #{tpu_custom_call.1} parent=11 // pred_check_branch
          %273 = sbr.rel (%p271) target = $region28
        $region27: #{tpu_custom_call.1} parent=11 // pred_region
          _
        $region28: #{tpu_custom_call.1} parent=11 // pred_fallthru
          _
        // Predicated region
        $region29: #{tpu_custom_call.1} parent=11 // pred_check
          %p274 = pneg %p148
        $region30: #{tpu_custom_call.1} parent=11 // pred_check_branch
          %276 = sbr.rel (%p274) target = $region32
        $region31: #{tpu_custom_call.1} parent=11 // pred_region
          %s278 = ssub.s32 4096, 4096
          %279 = vsyncadd [#allocation5], %s278
          %s280 = sshll.u32 [#allocation4], 4
          %s281 = int_to_ptr.vmem [resolvable:$true] %s280
          %286 = dma.hbm_to_vmem [thread:$0]  %s5, 4096, %s281, [#allocation5], 64, 64, 4
        $region32: #{tpu_custom_call.1} parent=11 // pred_fallthru
          _
        // Predicated region
        $region33: #{tpu_custom_call.1} parent=11 // pred_check
          %p287 = pneg %p169
        $region34: #{tpu_custom_call.1} parent=11 // pred_check_branch
          %289 = sbr.rel (%p287) target = $region36
        $region35: #{tpu_custom_call.1} parent=11 // pred_region
          _
        $region36: #{tpu_custom_call.1} parent=11 // pred_fallthru
          _
        // Predicated region
        $region37: #{tpu_custom_call.1} parent=11 // pred_check
          %p290 = pneg %p190
        $region38: #{tpu_custom_call.1} parent=11 // pred_check_branch
          %292 = sbr.rel (%p290) target = $region40
        $region39: #{tpu_custom_call.1} parent=11 // pred_region
          %s294 = ssub.s32 1024, 1024
          %295 = vsyncadd [#allocation5], %s294
          %s296 = sshll.u32 [#allocation6], 4
          %s297 = int_to_ptr.vmem [resolvable:$true] %s296
          %302 = dma.hbm_to_vmem [thread:$0]  %s7, 1024, %s297, [#allocation5], 64, 64, 4
        $region40: #{tpu_custom_call.1} parent=11 // pred_fallthru
          _
        // Predicated region
        $region41: #{tpu_custom_call.1} parent=11 // pred_check
          %p303 = pneg %p211
        $region42: #{tpu_custom_call.1} parent=11 // pred_check_branch
          %305 = sbr.rel (%p303) target = $region44
        $region43: #{tpu_custom_call.1} parent=11 // pred_region
          _
        $region44: #{tpu_custom_call.1} parent=11 // pred_fallthru
          _
      $region12: #{tpu_custom_call.1} parent=5 // pred_fallthru
        _
      %p306 = scmp.lt.s32.totalorder %s17, 2
      // Predicated region
      $region45: #{tpu_custom_call.1} parent=5 // pred_check
        %p307 = pneg %p306
      $region46: #{tpu_custom_call.1} parent=5 // pred_check_branch
        %309 = sbr.rel (%p307) target = $region48
      $region47: #{tpu_custom_call.1} parent=5 // pred_region
        // Predicated region
        $region49: #{tpu_custom_call.1} parent=47 // pred_check
          %p310 = pneg %p37
        $region50: #{tpu_custom_call.1} parent=47 // pred_check_branch
          %312 = sbr.rel (%p310) target = $region52
        $region51: #{tpu_custom_call.1} parent=47 // pred_region
          %s313 = smul.u32 4, %s17
          %p314 = scmp.lt.s32.totalorder %s313, 7
          %s315 = scalar_select %p314, %s313, 7
          %s316 = smul.addr %s315, 4
          %s317 = scalar_lea.vmem %s0, %s316
          %s318 = smul.u32 4, %s17
        $region52: #{tpu_custom_call.1} parent=47 // pred_fallthru
          _
      $region48: #{tpu_custom_call.1} parent=5 // pred_fallthru
        _
      %p319 = scmp.le.s32.totalorder 1, %s17
      %p320 = scmp.lt.s32.totalorder %s17, 3
      %p321 = pnand %p319, %p320
      %p322 = pneg %p321
      // Predicated region
      $region53: #{tpu_custom_call.1} parent=5 // pred_check
        _
      $region54: #{tpu_custom_call.1} parent=5 // pred_check_branch
        %324 = sbr.rel (%p321) target = $region56
      $region55: #{tpu_custom_call.1} parent=5 // pred_region
        %s325 = ssub.s32 %s17, 1
        // Predicated region
        $region57: #{tpu_custom_call.1} parent=55 // pred_check
          %p326 = pneg %p106
        $region58: #{tpu_custom_call.1} parent=55 // pred_check_branch
          %328 = sbr.rel (%p326) target = $region60
        $region59: #{tpu_custom_call.1} parent=55 // pred_region
          %329 = dma.done [#allocation3], 4096
        $region60: #{tpu_custom_call.1} parent=55 // pred_fallthru
          _
        // Predicated region
        $region61: #{tpu_custom_call.1} parent=55 // pred_check
          %p330 = pneg %p148
        $region62: #{tpu_custom_call.1} parent=55 // pred_check_branch
          %332 = sbr.rel (%p330) target = $region64
        $region63: #{tpu_custom_call.1} parent=55 // pred_region
          %333 = dma.done [#allocation5], 4096
        $region64: #{tpu_custom_call.1} parent=55 // pred_fallthru
          _
        // Predicated region
        $region65: #{tpu_custom_call.1} parent=55 // pred_check
          %p334 = pneg %p190
        $region66: #{tpu_custom_call.1} parent=55 // pred_check_branch
          %336 = sbr.rel (%p334) target = $region68
        $region67: #{tpu_custom_call.1} parent=55 // pred_region
          %337 = dma.done [#allocation5], 1024
        $region68: #{tpu_custom_call.1} parent=55 // pred_fallthru
          _
        %s338 = smul.u32 4, %s22
        %p339 = scmp.lt.s32.totalorder %s338, 7
        %s340 = scalar_select %p339, %s338, 7
        %s341 = smul.addr %s340, 4
        %s342 = scalar_lea.vmem %s0, %s341
        %p343 = pneg %p43
        %p344 = pneg %p40
        %p345 = pneg %p64
        %p346 = pneg %p61
        %p347 = pneg %p85
        %p348 = pneg %p82
        %p349 = pneg %p106
        %p350 = pneg %p103
        %p351 = pneg %p127
        %p352 = pneg %p124
        %p353 = pneg %p148
        %p354 = pneg %p145
        %p355 = pneg %p169
        %p356 = pneg %p166
        %p357 = pneg %p190
        %p358 = pneg %p187
        %p359 = pneg %p211
        %p360 = pneg %p208
        %p361 = pneg %p237
        %p362 = pneg %p234
        %s363 = smul.u32 4, %s22
        %p364 = scmp.lt.s32.totalorder %s363, 7
        %s365 = scalar_select %p364, %s363, 7
        %s366 = smul.addr %s365, 8
        %s367 = scalar_lea.vmem %s9, %s366
        %s368 = smul.u32 4, %s22
        %p369 = scmp.lt.s32.totalorder %s368, 7
        %s370 = scalar_select %p369, %s368, 7
        %s371 = smul.addr %s370, 4
        %s372 = scalar_lea.vmem %s0, %s371
        %s373 = smul.u32 4, %s22
        %s374 = smul.u32 4, %s22
        %p375 = scmp.lt.s32.totalorder %s374, 7
        %s376 = scalar_select %p375, %s374, 7
        %s377 = smul.addr %s376, 8
        %s378 = scalar_lea.vmem %s9, %s377
        %s379 = smul.u32 4, %s22
        %v381 = vlaneseq
        %v382 = vshrl.u32 %v381, 7
        %v383 = vadd.s32 %v382, 8
        %v384 = vadd.s32 %v382, 16
        %v385 = vadd.s32 %v382, 24
        %vm386 = vcmp.lt.s32.totalorder %v382, 0
        %v387 = vsub.s32 0, %v382
        %v388 = vsel %vm386, %v387, %v382
        %v389 = vshrl.u32 %v388, 4
        %v390 = vand.u32 %v388, 15
        %v391 = vsub.s32 0, %v390
        %v392 = vsel %vm386, %v391, %v390
        %vm393 = vcmp.lt.s32.totalorder %v383, 0
        %v394 = vsub.s32 0, %v383
        %v395 = vsel %vm393, %v394, %v383
        %v396 = vshrl.u32 %v395, 4
        %v397 = vand.u32 %v395, 15
        %v398 = vsub.s32 0, %v397
        %v399 = vsel %vm393, %v398, %v397
        %vm400 = vcmp.lt.s32.totalorder %v384, 0
        %v401 = vsub.s32 0, %v384
        %v402 = vsel %vm400, %v401, %v384
        %v403 = vshrl.u32 %v402, 4
        %v404 = vand.u32 %v402, 15
        %v405 = vsub.s32 0, %v404
        %v406 = vsel %vm400, %v405, %v404
        %vm407 = vcmp.lt.s32.totalorder %v385, 0
        %v408 = vsub.s32 0, %v385
        %v409 = vsel %vm407, %v408, %v385
        %v410 = vshrl.u32 %v409, 4
        %v411 = vand.u32 %v409, 15
        %v412 = vsub.s32 0, %v411
        %v413 = vsel %vm407, %v412, %v411
        %vm414 = vcmp.ne.s32.totalorder %v392, 0
        %vm415 = vcmp.ne.s32.totalorder %v399, 0
        %vm416 = vcmp.ne.s32.totalorder %v406, 0
        %vm417 = vcmp.ne.s32.totalorder %v413, 0
        %vm418 = vcmp.lt.s32.totalorder %v392, 0
        %vm419 = vcmp.lt.s32.totalorder %v399, 0
        %vm420 = vcmp.lt.s32.totalorder %v406, 0
        %vm421 = vcmp.lt.s32.totalorder %v413, 0
        %vm422 = vmand %vm418, %vm414
        %vm423 = vmand %vm419, %vm415
        %vm424 = vmand %vm420, %vm416
        %vm425 = vmand %vm421, %vm417
        %v426 = vadd.s32 %v392, 16
        %v427 = vadd.s32 %v399, 16
        %v428 = vadd.s32 %v406, 16
        %v429 = vadd.s32 %v413, 16
        %v430 = vsel %vm422, %v426, %v392
        %v431 = vsel %vm423, %v427, %v399
        %v432 = vsel %vm424, %v428, %v406
        %v433 = vsel %vm425, %v429, %v413
        %v434 = vld [vmem:[%s372] sm:$0xf]
        %v435 = vld [vmem:[%s372 + $0x4] sm:$0xf]
        %v436 = vld [vmem:[%s372 + $0x8] sm:$0xf]
        %v437 = vld [vmem:[%s372 + $0xc] sm:$0xf]
        %v438 = vld [vmem:[%s1] sm:$0xf]
        %v439 = vld [vmem:[%s2] sm:$0x1]
        %v441 = vlaneseq
        %v442 = vshrl.u32 %v441, 7
        %v443 = vsub.s32 0, %v442
        %v444 = vrot.slane %v439, %v443
        %v450 = vunpack.c.l.b16 %v434
        %v451 = vunpack.c.l.b16 %v435
        %v452 = vunpack.c.l.b16 %v436
        %v453 = vunpack.c.l.b16 %v437
        %v454 = vpack.c.b16 %v451, %v450
        %v455 = vpack.c.b16 %v453, %v452
        %vm456 = vcmask 64512
        %v458 = vsel %vm456, %v454, 0
        %v461 = vsel %vm456, %v455, 0
        %vm463 = vcmask 1043456
        %v465 = vsel %vm463, %v438, 0
        %467 = vmatprep.subr.bf16.mxu0 0
        %468 = vmatpush1.bf16.msra.mxu0 0
        %469 = vmatprep.subr.bf16.mxu0 0
        %470 = vmatpush1.bf16.msra.mxu0 0
        %471 = vmatprep.subr.bf16.mxu0 0
        %472 = vmatpush1.bf16.msra.mxu0 0
        %473 = vmatprep.subr.bf16.mxu0 0
        %474 = vmatpush1.bf16.msra.mxu0 0
        %475 = vmatprep.subr.bf16.mxu0 0
        %476 = vmatpush1.bf16.msra.mxu0 0
        %477 = vmatprep.subr.bf16.mxu0 0
        %478 = vmatpush1.bf16.msra.mxu0 0
        %479 = vmatprep.subr.bf16.mxu0 0
        %480 = vmatpush1.bf16.msra.mxu0 0
        %481 = vmatprep.subr.bf16.mxu0 0
        %482 = vmatpush1.bf16.msra.mxu0 %v465
        %483 = vmatprep.subr.bf16.mxu0 0
        %484 = vmatpush2.bf16.msra.mxu0 0
        %485 = vmatprep.subr.bf16.mxu0 0
        %486 = vmatpush2.bf16.msra.mxu0 0
        %487 = vmatprep.subr.bf16.mxu0 0
        %488 = vmatpush2.bf16.msra.mxu0 0
        %489 = vmatprep.subr.bf16.mxu0 0
        %490 = vmatpush2.bf16.msra.mxu0 0
        %491 = vmatprep.subr.bf16.mxu0 0
        %492 = vmatpush2.bf16.msra.mxu0 0
        %493 = vmatprep.subr.bf16.mxu0 0
        %494 = vmatpush2.bf16.msra.mxu0 0
        %495 = vmatprep.subr.bf16.mxu0 0
        %496 = vmatpush2.bf16.msra.mxu0 0
        %497 = vmatprep.subr.bf16.mxu0 0
        %498 = vmatpush2.bf16.msra.mxu0 0
        %499 = vmatprep.mubr.bf16.mxu0 0
        %500 = vmatmul.mubr.bf16.gmra.mxu0 %v458
        %v501 = vpop.f32.mrf.mxu0
        %v502 = vadd.f32 %v444, %v501
        %v503 = vpop.f32.mrf.mxu0
        %v504 = vpop.f32.mrf.mxu0
        %v505 = vadd.f32 %v444, %v504
        %v506 = vpop.f32.mrf.mxu0
        %507 = vmatprep.mubr.bf16.mxu0 0
        %508 = vmatmul.mubr.bf16.gmra.mxu0 %v461
        %v509 = vpop.f32.mrf.mxu0
        %v510 = vadd.f32 %v444, %v509
        %v511 = vpop.f32.mrf.mxu0
        %v512 = vpop.f32.mrf.mxu0
        %v513 = vadd.f32 %v444, %v512
        %v514 = vpop.f32.mrf.mxu0
        %515 = vdwg.mxu0
        %v516 = vpack.c.bf16 %v505, %v502
        %v517 = vpack.c.bf16 %v513, %v510
        %v518 = vld [vmem:[#allocation2] sm:$0xf]
        %v519 = vld [vmem:[#allocation2 + $0x4] sm:$0xf]
        %v520 = vld [vmem:[#allocation2 + $0x8] sm:$0xf]
        %v521 = vld [vmem:[#allocation2 + $0xc] sm:$0xf]
        %v522 = vld [vmem:[#allocation2 + $0x10] sm:$0xf]
        %v523 = vld [vmem:[#allocation2 + $0x14] sm:$0xf]
        %v524 = vld [vmem:[#allocation2 + $0x18] sm:$0xf]
        %v525 = vld [vmem:[#allocation2 + $0x1c] sm:$0xf]
        %v526 = vld [vmem:[#allocation2 + $0x20] sm:$0xf]
        %v527 = vld [vmem:[#allocation2 + $0x24] sm:$0xf]
        %v528 = vld [vmem:[#allocation2 + $0x28] sm:$0xf]
        %v529 = vld [vmem:[#allocation2 + $0x2c] sm:$0xf]
        %v530 = vld [vmem:[#allocation2 + $0x30] sm:$0xf]
        %v531 = vld [vmem:[#allocation2 + $0x34] sm:$0xf]
        %v532 = vld [vmem:[#allocation2 + $0x38] sm:$0xf]
        %v533 = vld [vmem:[#allocation2 + $0x3c] sm:$0xf]
        %v550 = vunpack.c.l.b16 %v518
        %v551 = vunpack.c.l.b16 %v519
        %v552 = vunpack.c.l.b16 %v520
        %v553 = vunpack.c.l.b16 %v521
        %v554 = vunpack.c.l.b16 %v522
        %v555 = vunpack.c.l.b16 %v523
        %v556 = vunpack.c.l.b16 %v524
        %v557 = vunpack.c.l.b16 %v525
        %v558 = vunpack.c.l.b16 %v526
        %v559 = vunpack.c.l.b16 %v527
        %v560 = vunpack.c.l.b16 %v528
        %v561 = vunpack.c.l.b16 %v529
        %v562 = vunpack.c.l.b16 %v530
        %v563 = vunpack.c.l.b16 %v531
        %v564 = vunpack.c.l.b16 %v532
        %v565 = vunpack.c.l.b16 %v533
        %v566 = vpack.c.b16 %v551, %v550
        %v567 = vpack.c.b16 %v553, %v552
        %v568 = vpack.c.b16 %v555, %v554
        %v569 = vpack.c.b16 %v557, %v556
        %v570 = vpack.c.b16 %v559, %v558
        %v571 = vpack.c.b16 %v561, %v560
        %v572 = vpack.c.b16 %v563, %v562
        %v573 = vpack.c.b16 %v565, %v564
        %582 = vmatprep.subr.bf16.mxu0 0
        %583 = vmatpush1.bf16.msra.mxu0 %v573
        %584 = vmatprep.subr.bf16.mxu0 0
        %585 = vmatpush1.bf16.msra.mxu0 %v572
        %586 = vmatprep.subr.bf16.mxu0 0
        %587 = vmatpush1.bf16.msra.mxu0 %v571
        %588 = vmatprep.subr.bf16.mxu0 0
        %589 = vmatpush1.bf16.msra.mxu0 %v570
        %590 = vmatprep.subr.bf16.mxu0 0
        %591 = vmatpush1.bf16.msra.mxu0 %v569
        %592 = vmatprep.subr.bf16.mxu0 0
        %593 = vmatpush1.bf16.msra.mxu0 %v568
        %594 = vmatprep.subr.bf16.mxu0 0
        %595 = vmatpush1.bf16.msra.mxu0 %v567
        %596 = vmatprep.subr.bf16.mxu0 0
        %597 = vmatpush1.bf16.msra.mxu0 %v566
        %598 = vmatprep.subr.bf16.mxu0 0
        %599 = vmatpush2.bf16.msra.mxu0 0
        %600 = vmatprep.subr.bf16.mxu0 0
        %601 = vmatpush2.bf16.msra.mxu0 0
        %602 = vmatprep.subr.bf16.mxu0 0
        %603 = vmatpush2.bf16.msra.mxu0 0
        %604 = vmatprep.subr.bf16.mxu0 0
        %605 = vmatpush2.bf16.msra.mxu0 0
        %606 = vmatprep.subr.bf16.mxu0 0
        %607 = vmatpush2.bf16.msra.mxu0 0
        %608 = vmatprep.subr.bf16.mxu0 0
        %609 = vmatpush2.bf16.msra.mxu0 0
        %610 = vmatprep.subr.bf16.mxu0 0
        %611 = vmatpush2.bf16.msra.mxu0 0
        %612 = vmatprep.subr.bf16.mxu0 0
        %613 = vmatpush2.bf16.msra.mxu0 0
        %614 = vmatprep.mubr.bf16.mxu0 0
        %615 = vmatmul.mubr.bf16.gmra.mxu0 %v516
        %v616 = vpop.f32.mrf.mxu0
        %v617 = vadd.f32 0.0, %v616
        %v618 = vpop.f32.mrf.mxu0
        %v619 = vpop.f32.mrf.mxu0
        %v620 = vadd.f32 0.0, %v619
        %v621 = vpop.f32.mrf.mxu0
        %622 = vmatprep.mubr.bf16.mxu0 0
        %623 = vmatmul.mubr.bf16.gmra.mxu0 %v517
        %v624 = vpop.f32.mrf.mxu0
        %v625 = vadd.f32 0.0, %v624
        %v626 = vpop.f32.mrf.mxu0
        %v627 = vpop.f32.mrf.mxu0
        %v628 = vadd.f32 0.0, %v627
        %v629 = vpop.f32.mrf.mxu0
        %630 = vdwg.mxu0
        %631 = vrot.lane.b32.xlu0 %v617, 96
        %v632 = vpop.permute.xlu0 %631
        %633 = vrot.lane.b32.xlu0 %v620, 96
        %v634 = vpop.permute.xlu0 %633
        %635 = vrot.lane.b32.xlu0 %v625, 96
        %v636 = vpop.permute.xlu0 %635
        %637 = vrot.lane.b32.xlu0 %v628, 96
        %v638 = vpop.permute.xlu0 %637
        %v639 = vrot.slane %v617, 7
        %v640 = vrot.slane %v620, 7
        %v641 = vrot.slane %v625, 7
        %v642 = vrot.slane %v628, 7
        %vm643 = vcmp.lt.s32.totalorder %v382, 1
        %v644 = vsel %vm643, %v641, %v642
        %v645 = vsel %vm643, %v640, %v641
        %v646 = vsel %vm643, %v639, %v640
        %v647 = vsel %vm643, %v642, %v639
        %vm648 = vcmp.ge.s32.totalorder %v430, 1
        %vm649 = vcmp.ge.s32.totalorder %v431, 1
        %vm650 = vcmp.ge.s32.totalorder %v432, 1
        %vm651 = vcmp.ge.s32.totalorder %v433, 1
        %v652 = vsel %vm648, 1, 0
        %v653 = vsel %vm649, 1, 0
        %v654 = vsel %vm650, 1, 0
        %v655 = vsel %vm651, 1, 0
        %vm656 = vcmp.eq.s32.totalorder %v652, 1
        %vm657 = vcmp.eq.s32.totalorder %v653, 1
        %vm658 = vcmp.eq.s32.totalorder %v654, 1
        %vm659 = vcmp.eq.s32.totalorder %v655, 1
        %v660 = vsel %vm656, %v647, 0.0
        %v661 = vsel %vm657, %v646, 0.0
        %v662 = vsel %vm658, %v645, 0.0
        %v663 = vsel %vm659, %v644, 0.0
        %v664 = vadd.f32 %v632, %v660
        %v665 = vadd.f32 %v634, %v661
        %v666 = vadd.f32 %v636, %v662
        %v667 = vadd.f32 %v638, %v663
        %668 = vrot.lane.b32.xlu0 %v617, 64
        %v669 = vpop.permute.xlu0 %668
        %670 = vrot.lane.b32.xlu0 %v620, 64
        %v671 = vpop.permute.xlu0 %670
        %672 = vrot.lane.b32.xlu0 %v625, 64
        %v673 = vpop.permute.xlu0 %672
        %674 = vrot.lane.b32.xlu0 %v628, 64
        %v675 = vpop.permute.xlu0 %674
        %v676 = vrot.slane %v669, 1
        %v677 = vrot.slane %v671, 1
        %v678 = vrot.slane %v673, 1
        %v679 = vrot.slane %v675, 1
        %vm680 = vcmp.lt.s32.totalorder %v382, 7
        %v681 = vsel %vm680, %v678, %v679
        %v682 = vsel %vm680, %v677, %v678
        %v683 = vsel %vm680, %v676, %v677
        %v684 = vsel %vm680, %v679, %v676
        %vm685 = vcmp.lt.s32.totalorder %v430, 15
        %vm686 = vcmp.lt.s32.totalorder %v431, 15
        %vm687 = vcmp.lt.s32.totalorder %v432, 15
        %vm688 = vcmp.lt.s32.totalorder %v433, 15
        %v689 = vsel %vm685, 1, 0
        %v690 = vsel %vm686, 1, 0
        %v691 = vsel %vm687, 1, 0
        %v692 = vsel %vm688, 1, 0
        %vm693 = vcmp.eq.s32.totalorder %v689, 1
        %vm694 = vcmp.eq.s32.totalorder %v690, 1
        %vm695 = vcmp.eq.s32.totalorder %v691, 1
        %vm696 = vcmp.eq.s32.totalorder %v692, 1
        %v697 = vsel %vm693, %v683, 0.0
        %v698 = vsel %vm694, %v682, 0.0
        %v699 = vsel %vm695, %v681, 0.0
        %v700 = vsel %vm696, %v684, 0.0
        %v701 = vadd.f32 %v664, %v697
        %v702 = vadd.f32 %v665, %v698
        %v703 = vadd.f32 %v666, %v699
        %v704 = vadd.f32 %v667, %v700
        %v705 = vld [vmem:[%s4] sm:$0x1]
        %v707 = vlaneseq
        %v708 = vshrl.u32 %v707, 7
        %v709 = vsub.s32 0, %v708
        %v710 = vrot.slane %v705, %v709
        %v712 = vadd.f32 %v701, %v710
        %v713 = vadd.f32 %v702, %v710
        %v714 = vadd.f32 %v703, %v710
        %v715 = vadd.f32 %v704, %v710
        %v716 = vmax.f32 %v712, 0.0
        %v717 = vmax.f32 %v713, 0.0
        %v718 = vmax.f32 %v714, 0.0
        %v719 = vmax.f32 %v715, 0.0
        %v720 = vpack.c.bf16 %v717, %v716
        %v721 = vpack.c.bf16 %v719, %v718
        %v722 = vld [vmem:[#allocation4] sm:$0xf]
        %v723 = vld [vmem:[#allocation4 + $0x4] sm:$0xf]
        %v724 = vld [vmem:[#allocation4 + $0x8] sm:$0xf]
        %v725 = vld [vmem:[#allocation4 + $0xc] sm:$0xf]
        %v726 = vld [vmem:[#allocation4 + $0x10] sm:$0xf]
        %v727 = vld [vmem:[#allocation4 + $0x14] sm:$0xf]
        %v728 = vld [vmem:[#allocation4 + $0x18] sm:$0xf]
        %v729 = vld [vmem:[#allocation4 + $0x1c] sm:$0xf]
        %v730 = vld [vmem:[#allocation4 + $0x20] sm:$0xf]
        %v731 = vld [vmem:[#allocation4 + $0x24] sm:$0xf]
        %v732 = vld [vmem:[#allocation4 + $0x28] sm:$0xf]
        %v733 = vld [vmem:[#allocation4 + $0x2c] sm:$0xf]
        %v734 = vld [vmem:[#allocation4 + $0x30] sm:$0xf]
        %v735 = vld [vmem:[#allocation4 + $0x34] sm:$0xf]
        %v736 = vld [vmem:[#allocation4 + $0x38] sm:$0xf]
        %v737 = vld [vmem:[#allocation4 + $0x3c] sm:$0xf]
        %v738 = vld [vmem:[%s6] sm:$0x1]
        %v740 = vlaneseq
        %v741 = vshrl.u32 %v740, 7
        %v742 = vsub.s32 0, %v741
        %v743 = vrot.slane %v738, %v742
        %v761 = vunpack.c.l.b16 %v722
        %v762 = vunpack.c.l.b16 %v723
        %v763 = vunpack.c.l.b16 %v724
        %v764 = vunpack.c.l.b16 %v725
        %v765 = vunpack.c.l.b16 %v726
        %v766 = vunpack.c.l.b16 %v727
        %v767 = vunpack.c.l.b16 %v728
        %v768 = vunpack.c.l.b16 %v729
        %v769 = vunpack.c.l.b16 %v730
        %v770 = vunpack.c.l.b16 %v731
        %v771 = vunpack.c.l.b16 %v732
        %v772 = vunpack.c.l.b16 %v733
        %v773 = vunpack.c.l.b16 %v734
        %v774 = vunpack.c.l.b16 %v735
        %v775 = vunpack.c.l.b16 %v736
        %v776 = vunpack.c.l.b16 %v737
        %v777 = vpack.c.b16 %v762, %v761
        %v778 = vpack.c.b16 %v764, %v763
        %v779 = vpack.c.b16 %v766, %v765
        %v780 = vpack.c.b16 %v768, %v767
        %v781 = vpack.c.b16 %v770, %v769
        %v782 = vpack.c.b16 %v772, %v771
        %v783 = vpack.c.b16 %v774, %v773
        %v784 = vpack.c.b16 %v776, %v775
        %793 = vmatprep.subr.bf16.mxu0 0
        %794 = vmatpush1.bf16.msra.mxu0 %v784
        %795 = vmatprep.subr.bf16.mxu0 0
        %796 = vmatpush1.bf16.msra.mxu0 %v783
        %797 = vmatprep.subr.bf16.mxu0 0
        %798 = vmatpush1.bf16.msra.mxu0 %v782
        %799 = vmatprep.subr.bf16.mxu0 0
        %800 = vmatpush1.bf16.msra.mxu0 %v781
        %801 = vmatprep.subr.bf16.mxu0 0
        %802 = vmatpush1.bf16.msra.mxu0 %v780
        %803 = vmatprep.subr.bf16.mxu0 0
        %804 = vmatpush1.bf16.msra.mxu0 %v779
        %805 = vmatprep.subr.bf16.mxu0 0
        %806 = vmatpush1.bf16.msra.mxu0 %v778
        %807 = vmatprep.subr.bf16.mxu0 0
        %808 = vmatpush1.bf16.msra.mxu0 %v777
        %809 = vmatprep.subr.bf16.mxu0 0
        %810 = vmatpush2.bf16.msra.mxu0 0
        %811 = vmatprep.subr.bf16.mxu0 0
        %812 = vmatpush2.bf16.msra.mxu0 0
        %813 = vmatprep.subr.bf16.mxu0 0
        %814 = vmatpush2.bf16.msra.mxu0 0
        %815 = vmatprep.subr.bf16.mxu0 0
        %816 = vmatpush2.bf16.msra.mxu0 0
        %817 = vmatprep.subr.bf16.mxu0 0
        %818 = vmatpush2.bf16.msra.mxu0 0
        %819 = vmatprep.subr.bf16.mxu0 0
        %820 = vmatpush2.bf16.msra.mxu0 0
        %821 = vmatprep.subr.bf16.mxu0 0
        %822 = vmatpush2.bf16.msra.mxu0 0
        %823 = vmatprep.subr.bf16.mxu0 0
        %824 = vmatpush2.bf16.msra.mxu0 0
        %825 = vmatprep.mubr.bf16.mxu0 0
        %826 = vmatmul.mubr.bf16.gmra.mxu0 %v720
        %v827 = vpop.f32.mrf.mxu0
        %v828 = vadd.f32 %v743, %v827
        %v829 = vpop.f32.mrf.mxu0
        %v830 = vpop.f32.mrf.mxu0
        %v831 = vadd.f32 %v743, %v830
        %v832 = vpop.f32.mrf.mxu0
        %833 = vmatprep.mubr.bf16.mxu0 0
        %834 = vmatmul.mubr.bf16.gmra.mxu0 %v721
        %v835 = vpop.f32.mrf.mxu0
        %v836 = vadd.f32 %v743, %v835
        %v837 = vpop.f32.mrf.mxu0
        %v838 = vpop.f32.mrf.mxu0
        %v839 = vadd.f32 %v743, %v838
        %v840 = vpop.f32.mrf.mxu0
        %841 = vdwg.mxu0
        %v842 = vadd.f32 %v502, %v828
        %v843 = vadd.f32 %v505, %v831
        %v844 = vadd.f32 %v510, %v836
        %v845 = vadd.f32 %v513, %v839
        %v846 = vpack.c.bf16 %v843, %v842
        %v847 = vpack.c.bf16 %v845, %v844
        %s848 = scalar_lea.vmem [#allocation2], 64
        %v849 = vld [vmem:[%s848] sm:$0xf]
        %v850 = vld [vmem:[%s848 + $0x4] sm:$0xf]
        %v851 = vld [vmem:[%s848 + $0x8] sm:$0xf]
        %v852 = vld [vmem:[%s848 + $0xc] sm:$0xf]
        %v853 = vld [vmem:[%s848 + $0x10] sm:$0xf]
        %v854 = vld [vmem:[%s848 + $0x14] sm:$0xf]
        %v855 = vld [vmem:[%s848 + $0x18] sm:$0xf]
        %v856 = vld [vmem:[%s848 + $0x1c] sm:$0xf]
        %v857 = vld [vmem:[%s848 + $0x20] sm:$0xf]
        %v858 = vld [vmem:[%s848 + $0x24] sm:$0xf]
        %v859 = vld [vmem:[%s848 + $0x28] sm:$0xf]
        %v860 = vld [vmem:[%s848 + $0x2c] sm:$0xf]
        %v861 = vld [vmem:[%s848 + $0x30] sm:$0xf]
        %v862 = vld [vmem:[%s848 + $0x34] sm:$0xf]
        %v863 = vld [vmem:[%s848 + $0x38] sm:$0xf]
        %v864 = vld [vmem:[%s848 + $0x3c] sm:$0xf]
        %v881 = vunpack.c.l.b16 %v849
        %v882 = vunpack.c.l.b16 %v850
        %v883 = vunpack.c.l.b16 %v851
        %v884 = vunpack.c.l.b16 %v852
        %v885 = vunpack.c.l.b16 %v853
        %v886 = vunpack.c.l.b16 %v854
        %v887 = vunpack.c.l.b16 %v855
        %v888 = vunpack.c.l.b16 %v856
        %v889 = vunpack.c.l.b16 %v857
        %v890 = vunpack.c.l.b16 %v858
        %v891 = vunpack.c.l.b16 %v859
        %v892 = vunpack.c.l.b16 %v860
        %v893 = vunpack.c.l.b16 %v861
        %v894 = vunpack.c.l.b16 %v862
        %v895 = vunpack.c.l.b16 %v863
        %v896 = vunpack.c.l.b16 %v864
        %v897 = vpack.c.b16 %v882, %v881
        %v898 = vpack.c.b16 %v884, %v883
        %v899 = vpack.c.b16 %v886, %v885
        %v900 = vpack.c.b16 %v888, %v887
        %v901 = vpack.c.b16 %v890, %v889
        %v902 = vpack.c.b16 %v892, %v891
        %v903 = vpack.c.b16 %v894, %v893
        %v904 = vpack.c.b16 %v896, %v895
        %913 = vmatprep.subr.bf16.mxu0 0
        %914 = vmatpush1.bf16.msra.mxu0 %v904
        %915 = vmatprep.subr.bf16.mxu0 0
        %916 = vmatpush1.bf16.msra.mxu0 %v903
        %917 = vmatprep.subr.bf16.mxu0 0
        %918 = vmatpush1.bf16.msra.mxu0 %v902
        %919 = vmatprep.subr.bf16.mxu0 0
        %920 = vmatpush1.bf16.msra.mxu0 %v901
        %921 = vmatprep.subr.bf16.mxu0 0
        %922 = vmatpush1.bf16.msra.mxu0 %v900
        %923 = vmatprep.subr.bf16.mxu0 0
        %924 = vmatpush1.bf16.msra.mxu0 %v899
        %925 = vmatprep.subr.bf16.mxu0 0
        %926 = vmatpush1.bf16.msra.mxu0 %v898
        %927 = vmatprep.subr.bf16.mxu0 0
        %928 = vmatpush1.bf16.msra.mxu0 %v897
        %929 = vmatprep.subr.bf16.mxu0 0
        %930 = vmatpush2.bf16.msra.mxu0 0
        %931 = vmatprep.subr.bf16.mxu0 0
        %932 = vmatpush2.bf16.msra.mxu0 0
        %933 = vmatprep.subr.bf16.mxu0 0
        %934 = vmatpush2.bf16.msra.mxu0 0
        %935 = vmatprep.subr.bf16.mxu0 0
        %936 = vmatpush2.bf16.msra.mxu0 0
        %937 = vmatprep.subr.bf16.mxu0 0
        %938 = vmatpush2.bf16.msra.mxu0 0
        %939 = vmatprep.subr.bf16.mxu0 0
        %940 = vmatpush2.bf16.msra.mxu0 0
        %941 = vmatprep.subr.bf16.mxu0 0
        %942 = vmatpush2.bf16.msra.mxu0 0
        %943 = vmatprep.subr.bf16.mxu0 0
        %944 = vmatpush2.bf16.msra.mxu0 0
        %945 = vmatprep.mubr.bf16.mxu0 0
        %946 = vmatmul.mubr.bf16.gmra.mxu0 %v846
        %v947 = vpop.f32.mrf.mxu0
        %v948 = vadd.f32 0.0, %v947
        %v949 = vpop.f32.mrf.mxu0
        %v950 = vpop.f32.mrf.mxu0
        %v951 = vadd.f32 0.0, %v950
        %v952 = vpop.f32.mrf.mxu0
        %953 = vmatprep.mubr.bf16.mxu0 0
        %954 = vmatmul.mubr.bf16.gmra.mxu0 %v847
        %v955 = vpop.f32.mrf.mxu0
        %v956 = vadd.f32 0.0, %v955
        %v957 = vpop.f32.mrf.mxu0
        %v958 = vpop.f32.mrf.mxu0
        %v959 = vadd.f32 0.0, %v958
        %v960 = vpop.f32.mrf.mxu0
        %961 = vdwg.mxu0
        %962 = vrot.lane.b32.xlu0 %v948, 96
        %v963 = vpop.permute.xlu0 %962
        %964 = vrot.lane.b32.xlu0 %v951, 96
        %v965 = vpop.permute.xlu0 %964
        %966 = vrot.lane.b32.xlu0 %v956, 96
        %v967 = vpop.permute.xlu0 %966
        %968 = vrot.lane.b32.xlu0 %v959, 96
        %v969 = vpop.permute.xlu0 %968
        %v970 = vrot.slane %v948, 6
        %v971 = vrot.slane %v951, 6
        %v972 = vrot.slane %v956, 6
        %v973 = vrot.slane %v959, 6
        %vm974 = vcmp.lt.s32.totalorder %v382, 2
        %v975 = vsel %vm974, %v972, %v973
        %v976 = vsel %vm974, %v971, %v972
        %v977 = vsel %vm974, %v970, %v971
        %v978 = vsel %vm974, %v973, %v970
        %vm979 = vcmp.ge.s32.totalorder %v430, 2
        %vm980 = vcmp.ge.s32.totalorder %v431, 2
        %vm981 = vcmp.ge.s32.totalorder %v432, 2
        %vm982 = vcmp.ge.s32.totalorder %v433, 2
        %v983 = vsel %vm979, 1, 0
        %v984 = vsel %vm980, 1, 0
        %v985 = vsel %vm981, 1, 0
        %v986 = vsel %vm982, 1, 0
        %vm987 = vcmp.eq.s32.totalorder %v983, 1
        %vm988 = vcmp.eq.s32.totalorder %v984, 1
        %vm989 = vcmp.eq.s32.totalorder %v985, 1
        %vm990 = vcmp.eq.s32.totalorder %v986, 1
        %v991 = vsel %vm987, %v978, 0.0
        %v992 = vsel %vm988, %v977, 0.0
        %v993 = vsel %vm989, %v976, 0.0
        %v994 = vsel %vm990, %v975, 0.0
        %v995 = vadd.f32 %v963, %v991
        %v996 = vadd.f32 %v965, %v992
        %v997 = vadd.f32 %v967, %v993
        %v998 = vadd.f32 %v969, %v994
        %999 = vrot.lane.b32.xlu0 %v948, 64
        %v1000 = vpop.permute.xlu0 %999
        %1001 = vrot.lane.b32.xlu0 %v951, 64
        %v1002 = vpop.permute.xlu0 %1001
        %1003 = vrot.lane.b32.xlu0 %v956, 64
        %v1004 = vpop.permute.xlu0 %1003
        %1005 = vrot.lane.b32.xlu0 %v959, 64
        %v1006 = vpop.permute.xlu0 %1005
        %v1007 = vrot.slane %v1000, 2
        %v1008 = vrot.slane %v1002, 2
        %v1009 = vrot.slane %v1004, 2
        %v1010 = vrot.slane %v1006, 2
        %vm1011 = vcmp.lt.s32.totalorder %v382, 6
        %v1012 = vsel %vm1011, %v1009, %v1010
        %v1013 = vsel %vm1011, %v1008, %v1009
        %v1014 = vsel %vm1011, %v1007, %v1008
        %v1015 = vsel %vm1011, %v1010, %v1007
        %vm1016 = vcmp.lt.s32.totalorder %v430, 14
        %vm1017 = vcmp.lt.s32.totalorder %v431, 14
        %vm1018 = vcmp.lt.s32.totalorder %v432, 14
        %vm1019 = vcmp.lt.s32.totalorder %v433, 14
        %v1020 = vsel %vm1016, 1, 0
        %v1021 = vsel %vm1017, 1, 0
        %v1022 = vsel %vm1018, 1, 0
        %v1023 = vsel %vm1019, 1, 0
        %vm1024 = vcmp.eq.s32.totalorder %v1020, 1
        %vm1025 = vcmp.eq.s32.totalorder %v1021, 1
        %vm1026 = vcmp.eq.s32.totalorder %v1022, 1
        %vm1027 = vcmp.eq.s32.totalorder %v1023, 1
        %v1028 = vsel %vm1024, %v1014, 0.0
        %v1029 = vsel %vm1025, %v1013, 0.0
        %v1030 = vsel %vm1026, %v1012, 0.0
        %v1031 = vsel %vm1027, %v1015, 0.0
        %v1032 = vadd.f32 %v995, %v1028
        %v1033 = vadd.f32 %v996, %v1029
        %v1034 = vadd.f32 %v997, %v1030
        %v1035 = vadd.f32 %v998, %v1031
        %s1036 = scalar_lea.vmem %s4, 1
        %v1037 = vld [vmem:[%s1036] sm:$0x1]
        %v1039 = vlaneseq
        %v1040 = vshrl.u32 %v1039, 7
        %v1041 = vsub.s32 0, %v1040
        %v1042 = vrot.slane %v1037, %v1041
        %v1044 = vadd.f32 %v1032, %v1042
        %v1045 = vadd.f32 %v1033, %v1042
        %v1046 = vadd.f32 %v1034, %v1042
        %v1047 = vadd.f32 %v1035, %v1042
        %v1048 = vmax.f32 %v1044, 0.0
        %v1049 = vmax.f32 %v1045, 0.0
        %v1050 = vmax.f32 %v1046, 0.0
        %v1051 = vmax.f32 %v1047, 0.0
        %v1052 = vpack.c.bf16 %v1049, %v1048
        %v1053 = vpack.c.bf16 %v1051, %v1050
        %s1054 = scalar_lea.vmem [#allocation4], 64
        %v1055 = vld [vmem:[%s1054] sm:$0xf]
        %v1056 = vld [vmem:[%s1054 + $0x4] sm:$0xf]
        %v1057 = vld [vmem:[%s1054 + $0x8] sm:$0xf]
        %v1058 = vld [vmem:[%s1054 + $0xc] sm:$0xf]
        %v1059 = vld [vmem:[%s1054 + $0x10] sm:$0xf]
        %v1060 = vld [vmem:[%s1054 + $0x14] sm:$0xf]
        %v1061 = vld [vmem:[%s1054 + $0x18] sm:$0xf]
        %v1062 = vld [vmem:[%s1054 + $0x1c] sm:$0xf]
        %v1063 = vld [vmem:[%s1054 + $0x20] sm:$0xf]
        %v1064 = vld [vmem:[%s1054 + $0x24] sm:$0xf]
        %v1065 = vld [vmem:[%s1054 + $0x28] sm:$0xf]
        %v1066 = vld [vmem:[%s1054 + $0x2c] sm:$0xf]
        %v1067 = vld [vmem:[%s1054 + $0x30] sm:$0xf]
        %v1068 = vld [vmem:[%s1054 + $0x34] sm:$0xf]
        %v1069 = vld [vmem:[%s1054 + $0x38] sm:$0xf]
        %v1070 = vld [vmem:[%s1054 + $0x3c] sm:$0xf]
        %s1071 = scalar_lea.vmem %s6, 1
        %v1072 = vld [vmem:[%s1071] sm:$0x1]
        %v1074 = vlaneseq
        %v1075 = vshrl.u32 %v1074, 7
        %v1076 = vsub.s32 0, %v1075
        %v1077 = vrot.slane %v1072, %v1076
        %v1095 = vunpack.c.l.b16 %v1055
        %v1096 = vunpack.c.l.b16 %v1056
        %v1097 = vunpack.c.l.b16 %v1057
        %v1098 = vunpack.c.l.b16 %v1058
        %v1099 = vunpack.c.l.b16 %v1059
        %v1100 = vunpack.c.l.b16 %v1060
        %v1101 = vunpack.c.l.b16 %v1061
        %v1102 = vunpack.c.l.b16 %v1062
        %v1103 = vunpack.c.l.b16 %v1063
        %v1104 = vunpack.c.l.b16 %v1064
        %v1105 = vunpack.c.l.b16 %v1065
        %v1106 = vunpack.c.l.b16 %v1066
        %v1107 = vunpack.c.l.b16 %v1067
        %v1108 = vunpack.c.l.b16 %v1068
        %v1109 = vunpack.c.l.b16 %v1069
        %v1110 = vunpack.c.l.b16 %v1070
        %v1111 = vpack.c.b16 %v1096, %v1095
        %v1112 = vpack.c.b16 %v1098, %v1097
        %v1113 = vpack.c.b16 %v1100, %v1099
        %v1114 = vpack.c.b16 %v1102, %v1101
        %v1115 = vpack.c.b16 %v1104, %v1103
        %v1116 = vpack.c.b16 %v1106, %v1105
        %v1117 = vpack.c.b16 %v1108, %v1107
        %v1118 = vpack.c.b16 %v1110, %v1109
        %1127 = vmatprep.subr.bf16.mxu0 0
        %1128 = vmatpush1.bf16.msra.mxu0 %v1118
        %1129 = vmatprep.subr.bf16.mxu0 0
        %1130 = vmatpush1.bf16.msra.mxu0 %v1117
        %1131 = vmatprep.subr.bf16.mxu0 0
        %1132 = vmatpush1.bf16.msra.mxu0 %v1116
        %1133 = vmatprep.subr.bf16.mxu0 0
        %1134 = vmatpush1.bf16.msra.mxu0 %v1115
        %1135 = vmatprep.subr.bf16.mxu0 0
        %1136 = vmatpush1.bf16.msra.mxu0 %v1114
        %1137 = vmatprep.subr.bf16.mxu0 0
        %1138 = vmatpush1.bf16.msra.mxu0 %v1113
        %1139 = vmatprep.subr.bf16.mxu0 0
        %1140 = vmatpush1.bf16.msra.mxu0 %v1112
        %1141 = vmatprep.subr.bf16.mxu0 0
        %1142 = vmatpush1.bf16.msra.mxu0 %v1111
        %1143 = vmatprep.subr.bf16.mxu0 0
        %1144 = vmatpush2.bf16.msra.mxu0 0
        %1145 = vmatprep.subr.bf16.mxu0 0
        %1146 = vmatpush2.bf16.msra.mxu0 0
        %1147 = vmatprep.subr.bf16.mxu0 0
        %1148 = vmatpush2.bf16.msra.mxu0 0
        %1149 = vmatprep.subr.bf16.mxu0 0
        %1150 = vmatpush2.bf16.msra.mxu0 0
        %1151 = vmatprep.subr.bf16.mxu0 0
        %1152 = vmatpush2.bf16.msra.mxu0 0
        %1153 = vmatprep.subr.bf16.mxu0 0
        %1154 = vmatpush2.bf16.msra.mxu0 0
        %1155 = vmatprep.subr.bf16.mxu0 0
        %1156 = vmatpush2.bf16.msra.mxu0 0
        %1157 = vmatprep.subr.bf16.mxu0 0
        %1158 = vmatpush2.bf16.msra.mxu0 0
        %1159 = vmatprep.mubr.bf16.mxu0 0
        %1160 = vmatmul.mubr.bf16.gmra.mxu0 %v1052
        %v1161 = vpop.f32.mrf.mxu0
        %v1162 = vadd.f32 %v1077, %v1161
        %v1163 = vpop.f32.mrf.mxu0
        %v1164 = vpop.f32.mrf.mxu0
        %v1165 = vadd.f32 %v1077, %v1164
        %v1166 = vpop.f32.mrf.mxu0
        %1167 = vmatprep.mubr.bf16.mxu0 0
        %1168 = vmatmul.mubr.bf16.gmra.mxu0 %v1053
        %v1169 = vpop.f32.mrf.mxu0
        %v1170 = vadd.f32 %v1077, %v1169
        %v1171 = vpop.f32.mrf.mxu0
        %v1172 = vpop.f32.mrf.mxu0
        %v1173 = vadd.f32 %v1077, %v1172
        %v1174 = vpop.f32.mrf.mxu0
        %1175 = vdwg.mxu0
        %v1176 = vadd.f32 %v842, %v1162
        %v1177 = vadd.f32 %v843, %v1165
        %v1178 = vadd.f32 %v844, %v1170
        %v1179 = vadd.f32 %v845, %v1173
        %v1180 = vpack.c.bf16 %v1177, %v1176
        %v1181 = vpack.c.bf16 %v1179, %v1178
        %s1182 = scalar_lea.vmem [#allocation2], 128
        %v1183 = vld [vmem:[%s1182] sm:$0xf]
        %v1184 = vld [vmem:[%s1182 + $0x4] sm:$0xf]
        %v1185 = vld [vmem:[%s1182 + $0x8] sm:$0xf]
        %v1186 = vld [vmem:[%s1182 + $0xc] sm:$0xf]
        %v1187 = vld [vmem:[%s1182 + $0x10] sm:$0xf]
        %v1188 = vld [vmem:[%s1182 + $0x14] sm:$0xf]
        %v1189 = vld [vmem:[%s1182 + $0x18] sm:$0xf]
        %v1190 = vld [vmem:[%s1182 + $0x1c] sm:$0xf]
        %v1191 = vld [vmem:[%s1182 + $0x20] sm:$0xf]
        %v1192 = vld [vmem:[%s1182 + $0x24] sm:$0xf]
        %v1193 = vld [vmem:[%s1182 + $0x28] sm:$0xf]
        %v1194 = vld [vmem:[%s1182 + $0x2c] sm:$0xf]
        %v1195 = vld [vmem:[%s1182 + $0x30] sm:$0xf]
        %v1196 = vld [vmem:[%s1182 + $0x34] sm:$0xf]
        %v1197 = vld [vmem:[%s1182 + $0x38] sm:$0xf]
        %v1198 = vld [vmem:[%s1182 + $0x3c] sm:$0xf]
        %v1215 = vunpack.c.l.b16 %v1183
        %v1216 = vunpack.c.l.b16 %v1184
        %v1217 = vunpack.c.l.b16 %v1185
        %v1218 = vunpack.c.l.b16 %v1186
        %v1219 = vunpack.c.l.b16 %v1187
        %v1220 = vunpack.c.l.b16 %v1188
        %v1221 = vunpack.c.l.b16 %v1189
        %v1222 = vunpack.c.l.b16 %v1190
        %v1223 = vunpack.c.l.b16 %v1191
        %v1224 = vunpack.c.l.b16 %v1192
        %v1225 = vunpack.c.l.b16 %v1193
        %v1226 = vunpack.c.l.b16 %v1194
        %v1227 = vunpack.c.l.b16 %v1195
        %v1228 = vunpack.c.l.b16 %v1196
        %v1229 = vunpack.c.l.b16 %v1197
        %v1230 = vunpack.c.l.b16 %v1198
        %v1231 = vpack.c.b16 %v1216, %v1215
        %v1232 = vpack.c.b16 %v1218, %v1217
        %v1233 = vpack.c.b16 %v1220, %v1219
        %v1234 = vpack.c.b16 %v1222, %v1221
        %v1235 = vpack.c.b16 %v1224, %v1223
        %v1236 = vpack.c.b16 %v1226, %v1225
        %v1237 = vpack.c.b16 %v1228, %v1227
        %v1238 = vpack.c.b16 %v1230, %v1229
        %1247 = vmatprep.subr.bf16.mxu0 0
        %1248 = vmatpush1.bf16.msra.mxu0 %v1238
        %1249 = vmatprep.subr.bf16.mxu0 0
        %1250 = vmatpush1.bf16.msra.mxu0 %v1237
        %1251 = vmatprep.subr.bf16.mxu0 0
        %1252 = vmatpush1.bf16.msra.mxu0 %v1236
        %1253 = vmatprep.subr.bf16.mxu0 0
        %1254 = vmatpush1.bf16.msra.mxu0 %v1235
        %1255 = vmatprep.subr.bf16.mxu0 0
        %1256 = vmatpush1.bf16.msra.mxu0 %v1234
        %1257 = vmatprep.subr.bf16.mxu0 0
        %1258 = vmatpush1.bf16.msra.mxu0 %v1233
        %1259 = vmatprep.subr.bf16.mxu0 0
        %1260 = vmatpush1.bf16.msra.mxu0 %v1232
        %1261 = vmatprep.subr.bf16.mxu0 0
        %1262 = vmatpush1.bf16.msra.mxu0 %v1231
        %1263 = vmatprep.subr.bf16.mxu0 0
        %1264 = vmatpush2.bf16.msra.mxu0 0
        %1265 = vmatprep.subr.bf16.mxu0 0
        %1266 = vmatpush2.bf16.msra.mxu0 0
        %1267 = vmatprep.subr.bf16.mxu0 0
        %1268 = vmatpush2.bf16.msra.mxu0 0
        %1269 = vmatprep.subr.bf16.mxu0 0
        %1270 = vmatpush2.bf16.msra.mxu0 0
        %1271 = vmatprep.subr.bf16.mxu0 0
        %1272 = vmatpush2.bf16.msra.mxu0 0
        %1273 = vmatprep.subr.bf16.mxu0 0
        %1274 = vmatpush2.bf16.msra.mxu0 0
        %1275 = vmatprep.subr.bf16.mxu0 0
        %1276 = vmatpush2.bf16.msra.mxu0 0
        %1277 = vmatprep.subr.bf16.mxu0 0
        %1278 = vmatpush2.bf16.msra.mxu0 0
        %1279 = vmatprep.mubr.bf16.mxu0 0
        %1280 = vmatmul.mubr.bf16.gmra.mxu0 %v1180
        %v1281 = vpop.f32.mrf.mxu0
        %v1282 = vadd.f32 0.0, %v1281
        %v1283 = vpop.f32.mrf.mxu0
        %v1284 = vpop.f32.mrf.mxu0
        %v1285 = vadd.f32 0.0, %v1284
        %v1286 = vpop.f32.mrf.mxu0
        %1287 = vmatprep.mubr.bf16.mxu0 0
        %1288 = vmatmul.mubr.bf16.gmra.mxu0 %v1181
        %v1289 = vpop.f32.mrf.mxu0
        %v1290 = vadd.f32 0.0, %v1289
        %v1291 = vpop.f32.mrf.mxu0
        %v1292 = vpop.f32.mrf.mxu0
        %v1293 = vadd.f32 0.0, %v1292
        %v1294 = vpop.f32.mrf.mxu0
        %1295 = vdwg.mxu0
        %1296 = vrot.lane.b32.xlu0 %v1282, 96
        %v1297 = vpop.permute.xlu0 %1296
        %1298 = vrot.lane.b32.xlu0 %v1285, 96
        %v1299 = vpop.permute.xlu0 %1298
        %1300 = vrot.lane.b32.xlu0 %v1290, 96
        %v1301 = vpop.permute.xlu0 %1300
        %1302 = vrot.lane.b32.xlu0 %v1293, 96
        %v1303 = vpop.permute.xlu0 %1302
        %v1304 = vrot.slane %v1282, 4
        %v1305 = vrot.slane %v1285, 4
        %v1306 = vrot.slane %v1290, 4
        %v1307 = vrot.slane %v1293, 4
        %vm1308 = vcmp.lt.s32.totalorder %v382, 4
        %v1309 = vsel %vm1308, %v1306, %v1307
        %v1310 = vsel %vm1308, %v1305, %v1306
        %v1311 = vsel %vm1308, %v1304, %v1305
        %v1312 = vsel %vm1308, %v1307, %v1304
        %vm1313 = vcmp.ge.s32.totalorder %v430, 4
        %vm1314 = vcmp.ge.s32.totalorder %v431, 4
        %vm1315 = vcmp.ge.s32.totalorder %v432, 4
        %vm1316 = vcmp.ge.s32.totalorder %v433, 4
        %v1317 = vsel %vm1313, 1, 0
        %v1318 = vsel %vm1314, 1, 0
        %v1319 = vsel %vm1315, 1, 0
        %v1320 = vsel %vm1316, 1, 0
        %vm1321 = vcmp.eq.s32.totalorder %v1317, 1
        %vm1322 = vcmp.eq.s32.totalorder %v1318, 1
        %vm1323 = vcmp.eq.s32.totalorder %v1319, 1
        %vm1324 = vcmp.eq.s32.totalorder %v1320, 1
        %v1325 = vsel %vm1321, %v1312, 0.0
        %v1326 = vsel %vm1322, %v1311, 0.0
        %v1327 = vsel %vm1323, %v1310, 0.0
        %v1328 = vsel %vm1324, %v1309, 0.0
        %v1329 = vadd.f32 %v1297, %v1325
        %v1330 = vadd.f32 %v1299, %v1326
        %v1331 = vadd.f32 %v1301, %v1327
        %v1332 = vadd.f32 %v1303, %v1328
        %1333 = vrot.lane.b32.xlu0 %v1282, 64
        %v1334 = vpop.permute.xlu0 %1333
        %1335 = vrot.lane.b32.xlu0 %v1285, 64
        %v1336 = vpop.permute.xlu0 %1335
        %1337 = vrot.lane.b32.xlu0 %v1290, 64
        %v1338 = vpop.permute.xlu0 %1337
        %1339 = vrot.lane.b32.xlu0 %v1293, 64
        %v1340 = vpop.permute.xlu0 %1339
        %v1341 = vrot.slane %v1334, 4
        %v1342 = vrot.slane %v1336, 4
        %v1343 = vrot.slane %v1338, 4
        %v1344 = vrot.slane %v1340, 4
        %v1345 = vsel %vm1308, %v1343, %v1344
        %v1346 = vsel %vm1308, %v1342, %v1343
        %v1347 = vsel %vm1308, %v1341, %v1342
        %v1348 = vsel %vm1308, %v1344, %v1341
        %vm1349 = vcmp.lt.s32.totalorder %v430, 12
        %vm1350 = vcmp.lt.s32.totalorder %v431, 12
        %vm1351 = vcmp.lt.s32.totalorder %v432, 12
        %vm1352 = vcmp.lt.s32.totalorder %v433, 12
        %v1353 = vsel %vm1349, 1, 0
        %v1354 = vsel %vm1350, 1, 0
        %v1355 = vsel %vm1351, 1, 0
        %v1356 = vsel %vm1352, 1, 0
        %vm1357 = vcmp.eq.s32.totalorder %v1353, 1
        %vm1358 = vcmp.eq.s32.totalorder %v1354, 1
        %vm1359 = vcmp.eq.s32.totalorder %v1355, 1
        %vm1360 = vcmp.eq.s32.totalorder %v1356, 1
        %v1361 = vsel %vm1357, %v1347, 0.0
        %v1362 = vsel %vm1358, %v1346, 0.0
        %v1363 = vsel %vm1359, %v1345, 0.0
        %v1364 = vsel %vm1360, %v1348, 0.0
        %v1365 = vadd.f32 %v1329, %v1361
        %v1366 = vadd.f32 %v1330, %v1362
        %v1367 = vadd.f32 %v1331, %v1363
        %v1368 = vadd.f32 %v1332, %v1364
        %s1369 = scalar_lea.vmem %s4, 2
        %v1370 = vld [vmem:[%s1369] sm:$0x1]
        %v1372 = vlaneseq
        %v1373 = vshrl.u32 %v1372, 7
        %v1374 = vsub.s32 0, %v1373
        %v1375 = vrot.slane %v1370, %v1374
        %v1377 = vadd.f32 %v1365, %v1375
        %v1378 = vadd.f32 %v1366, %v1375
        %v1379 = vadd.f32 %v1367, %v1375
        %v1380 = vadd.f32 %v1368, %v1375
        %v1381 = vmax.f32 %v1377, 0.0
        %v1382 = vmax.f32 %v1378, 0.0
        %v1383 = vmax.f32 %v1379, 0.0
        %v1384 = vmax.f32 %v1380, 0.0
        %v1385 = vpack.c.bf16 %v1382, %v1381
        %v1386 = vpack.c.bf16 %v1384, %v1383
        %s1387 = scalar_lea.vmem [#allocation4], 128
        %v1388 = vld [vmem:[%s1387] sm:$0xf]
        %v1389 = vld [vmem:[%s1387 + $0x4] sm:$0xf]
        %v1390 = vld [vmem:[%s1387 + $0x8] sm:$0xf]
        %v1391 = vld [vmem:[%s1387 + $0xc] sm:$0xf]
        %v1392 = vld [vmem:[%s1387 + $0x10] sm:$0xf]
        %v1393 = vld [vmem:[%s1387 + $0x14] sm:$0xf]
        %v1394 = vld [vmem:[%s1387 + $0x18] sm:$0xf]
        %v1395 = vld [vmem:[%s1387 + $0x1c] sm:$0xf]
        %v1396 = vld [vmem:[%s1387 + $0x20] sm:$0xf]
        %v1397 = vld [vmem:[%s1387 + $0x24] sm:$0xf]
        %v1398 = vld [vmem:[%s1387 + $0x28] sm:$0xf]
        %v1399 = vld [vmem:[%s1387 + $0x2c] sm:$0xf]
        %v1400 = vld [vmem:[%s1387 + $0x30] sm:$0xf]
        %v1401 = vld [vmem:[%s1387 + $0x34] sm:$0xf]
        %v1402 = vld [vmem:[%s1387 + $0x38] sm:$0xf]
        %v1403 = vld [vmem:[%s1387 + $0x3c] sm:$0xf]
        %s1404 = scalar_lea.vmem %s6, 2
        %v1405 = vld [vmem:[%s1404] sm:$0x1]
        %v1407 = vlaneseq
        %v1408 = vshrl.u32 %v1407, 7
        %v1409 = vsub.s32 0, %v1408
        %v1410 = vrot.slane %v1405, %v1409
        %v1428 = vunpack.c.l.b16 %v1388
        %v1429 = vunpack.c.l.b16 %v1389
        %v1430 = vunpack.c.l.b16 %v1390
        %v1431 = vunpack.c.l.b16 %v1391
        %v1432 = vunpack.c.l.b16 %v1392
        %v1433 = vunpack.c.l.b16 %v1393
        %v1434 = vunpack.c.l.b16 %v1394
        %v1435 = vunpack.c.l.b16 %v1395
        %v1436 = vunpack.c.l.b16 %v1396
        %v1437 = vunpack.c.l.b16 %v1397
        %v1438 = vunpack.c.l.b16 %v1398
        %v1439 = vunpack.c.l.b16 %v1399
        %v1440 = vunpack.c.l.b16 %v1400
        %v1441 = vunpack.c.l.b16 %v1401
        %v1442 = vunpack.c.l.b16 %v1402
        %v1443 = vunpack.c.l.b16 %v1403
        %v1444 = vpack.c.b16 %v1429, %v1428
        %v1445 = vpack.c.b16 %v1431, %v1430
        %v1446 = vpack.c.b16 %v1433, %v1432
        %v1447 = vpack.c.b16 %v1435, %v1434
        %v1448 = vpack.c.b16 %v1437, %v1436
        %v1449 = vpack.c.b16 %v1439, %v1438
        %v1450 = vpack.c.b16 %v1441, %v1440
        %v1451 = vpack.c.b16 %v1443, %v1442
        %1460 = vmatprep.subr.bf16.mxu0 0
        %1461 = vmatpush1.bf16.msra.mxu0 %v1451
        %1462 = vmatprep.subr.bf16.mxu0 0
        %1463 = vmatpush1.bf16.msra.mxu0 %v1450
        %1464 = vmatprep.subr.bf16.mxu0 0
        %1465 = vmatpush1.bf16.msra.mxu0 %v1449
        %1466 = vmatprep.subr.bf16.mxu0 0
        %1467 = vmatpush1.bf16.msra.mxu0 %v1448
        %1468 = vmatprep.subr.bf16.mxu0 0
        %1469 = vmatpush1.bf16.msra.mxu0 %v1447
        %1470 = vmatprep.subr.bf16.mxu0 0
        %1471 = vmatpush1.bf16.msra.mxu0 %v1446
        %1472 = vmatprep.subr.bf16.mxu0 0
        %1473 = vmatpush1.bf16.msra.mxu0 %v1445
        %1474 = vmatprep.subr.bf16.mxu0 0
        %1475 = vmatpush1.bf16.msra.mxu0 %v1444
        %1476 = vmatprep.subr.bf16.mxu0 0
        %1477 = vmatpush2.bf16.msra.mxu0 0
        %1478 = vmatprep.subr.bf16.mxu0 0
        %1479 = vmatpush2.bf16.msra.mxu0 0
        %1480 = vmatprep.subr.bf16.mxu0 0
        %1481 = vmatpush2.bf16.msra.mxu0 0
        %1482 = vmatprep.subr.bf16.mxu0 0
        %1483 = vmatpush2.bf16.msra.mxu0 0
        %1484 = vmatprep.subr.bf16.mxu0 0
        %1485 = vmatpush2.bf16.msra.mxu0 0
        %1486 = vmatprep.subr.bf16.mxu0 0
        %1487 = vmatpush2.bf16.msra.mxu0 0
        %1488 = vmatprep.subr.bf16.mxu0 0
        %1489 = vmatpush2.bf16.msra.mxu0 0
        %1490 = vmatprep.subr.bf16.mxu0 0
        %1491 = vmatpush2.bf16.msra.mxu0 0
        %1492 = vmatprep.mubr.bf16.mxu0 0
        %1493 = vmatmul.mubr.bf16.gmra.mxu0 %v1385
        %v1494 = vpop.f32.mrf.mxu0
        %v1495 = vadd.f32 %v1410, %v1494
        %v1496 = vpop.f32.mrf.mxu0
        %v1497 = vpop.f32.mrf.mxu0
        %v1498 = vadd.f32 %v1410, %v1497
        %v1499 = vpop.f32.mrf.mxu0
        %1500 = vmatprep.mubr.bf16.mxu0 0
        %1501 = vmatmul.mubr.bf16.gmra.mxu0 %v1386
        %v1502 = vpop.f32.mrf.mxu0
        %v1503 = vadd.f32 %v1410, %v1502
        %v1504 = vpop.f32.mrf.mxu0
        %v1505 = vpop.f32.mrf.mxu0
        %v1506 = vadd.f32 %v1410, %v1505
        %v1507 = vpop.f32.mrf.mxu0
        %1508 = vdwg.mxu0
        %v1509 = vadd.f32 %v1176, %v1495
        %v1510 = vadd.f32 %v1177, %v1498
        %v1511 = vadd.f32 %v1178, %v1503
        %v1512 = vadd.f32 %v1179, %v1506
        %v1513 = vpack.c.bf16 %v1510, %v1509
        %v1514 = vpack.c.bf16 %v1512, %v1511
        %s1515 = scalar_lea.vmem [#allocation2], 192
        %v1516 = vld [vmem:[%s1515] sm:$0xf]
        %v1517 = vld [vmem:[%s1515 + $0x4] sm:$0xf]
        %v1518 = vld [vmem:[%s1515 + $0x8] sm:$0xf]
        %v1519 = vld [vmem:[%s1515 + $0xc] sm:$0xf]
        %v1520 = vld [vmem:[%s1515 + $0x10] sm:$0xf]
        %v1521 = vld [vmem:[%s1515 + $0x14] sm:$0xf]
        %v1522 = vld [vmem:[%s1515 + $0x18] sm:$0xf]
        %v1523 = vld [vmem:[%s1515 + $0x1c] sm:$0xf]
        %v1524 = vld [vmem:[%s1515 + $0x20] sm:$0xf]
        %v1525 = vld [vmem:[%s1515 + $0x24] sm:$0xf]
        %v1526 = vld [vmem:[%s1515 + $0x28] sm:$0xf]
        %v1527 = vld [vmem:[%s1515 + $0x2c] sm:$0xf]
        %v1528 = vld [vmem:[%s1515 + $0x30] sm:$0xf]
        %v1529 = vld [vmem:[%s1515 + $0x34] sm:$0xf]
        %v1530 = vld [vmem:[%s1515 + $0x38] sm:$0xf]
        %v1531 = vld [vmem:[%s1515 + $0x3c] sm:$0xf]
        %v1548 = vunpack.c.l.b16 %v1516
        %v1549 = vunpack.c.l.b16 %v1517
        %v1550 = vunpack.c.l.b16 %v1518
        %v1551 = vunpack.c.l.b16 %v1519
        %v1552 = vunpack.c.l.b16 %v1520
        %v1553 = vunpack.c.l.b16 %v1521
        %v1554 = vunpack.c.l.b16 %v1522
        %v1555 = vunpack.c.l.b16 %v1523
        %v1556 = vunpack.c.l.b16 %v1524
        %v1557 = vunpack.c.l.b16 %v1525
        %v1558 = vunpack.c.l.b16 %v1526
        %v1559 = vunpack.c.l.b16 %v1527
        %v1560 = vunpack.c.l.b16 %v1528
        %v1561 = vunpack.c.l.b16 %v1529
        %v1562 = vunpack.c.l.b16 %v1530
        %v1563 = vunpack.c.l.b16 %v1531
        %v1564 = vpack.c.b16 %v1549, %v1548
        %v1565 = vpack.c.b16 %v1551, %v1550
        %v1566 = vpack.c.b16 %v1553, %v1552
        %v1567 = vpack.c.b16 %v1555, %v1554
        %v1568 = vpack.c.b16 %v1557, %v1556
        %v1569 = vpack.c.b16 %v1559, %v1558
        %v1570 = vpack.c.b16 %v1561, %v1560
        %v1571 = vpack.c.b16 %v1563, %v1562
        %1580 = vmatprep.subr.bf16.mxu0 0
        %1581 = vmatpush1.bf16.msra.mxu0 %v1571
        %1582 = vmatprep.subr.bf16.mxu0 0
        %1583 = vmatpush1.bf16.msra.mxu0 %v1570
        %1584 = vmatprep.subr.bf16.mxu0 0
        %1585 = vmatpush1.bf16.msra.mxu0 %v1569
        %1586 = vmatprep.subr.bf16.mxu0 0
        %1587 = vmatpush1.bf16.msra.mxu0 %v1568
        %1588 = vmatprep.subr.bf16.mxu0 0
        %1589 = vmatpush1.bf16.msra.mxu0 %v1567
        %1590 = vmatprep.subr.bf16.mxu0 0
        %1591 = vmatpush1.bf16.msra.mxu0 %v1566
        %1592 = vmatprep.subr.bf16.mxu0 0
        %1593 = vmatpush1.bf16.msra.mxu0 %v1565
        %1594 = vmatprep.subr.bf16.mxu0 0
        %1595 = vmatpush1.bf16.msra.mxu0 %v1564
        %1596 = vmatprep.subr.bf16.mxu0 0
        %1597 = vmatpush2.bf16.msra.mxu0 0
        %1598 = vmatprep.subr.bf16.mxu0 0
        %1599 = vmatpush2.bf16.msra.mxu0 0
        %1600 = vmatprep.subr.bf16.mxu0 0
        %1601 = vmatpush2.bf16.msra.mxu0 0
        %1602 = vmatprep.subr.bf16.mxu0 0
        %1603 = vmatpush2.bf16.msra.mxu0 0
        %1604 = vmatprep.subr.bf16.mxu0 0
        %1605 = vmatpush2.bf16.msra.mxu0 0
        %1606 = vmatprep.subr.bf16.mxu0 0
        %1607 = vmatpush2.bf16.msra.mxu0 0
        %1608 = vmatprep.subr.bf16.mxu0 0
        %1609 = vmatpush2.bf16.msra.mxu0 0
        %1610 = vmatprep.subr.bf16.mxu0 0
        %1611 = vmatpush2.bf16.msra.mxu0 0
        %1612 = vmatprep.mubr.bf16.mxu0 0
        %1613 = vmatmul.mubr.bf16.gmra.mxu0 %v1513
        %v1614 = vpop.f32.mrf.mxu0
        %v1615 = vadd.f32 0.0, %v1614
        %v1616 = vpop.f32.mrf.mxu0
        %v1617 = vpop.f32.mrf.mxu0
        %v1618 = vadd.f32 0.0, %v1617
        %v1619 = vpop.f32.mrf.mxu0
        %1620 = vmatprep.mubr.bf16.mxu0 0
        %1621 = vmatmul.mubr.bf16.gmra.mxu0 %v1514
        %v1622 = vpop.f32.mrf.mxu0
        %v1623 = vadd.f32 0.0, %v1622
        %v1624 = vpop.f32.mrf.mxu0
        %v1625 = vpop.f32.mrf.mxu0
        %v1626 = vadd.f32 0.0, %v1625
        %v1627 = vpop.f32.mrf.mxu0
        %1628 = vdwg.mxu0
        %1629 = vrot.lane.b32.xlu0 %v1615, 96
        %v1630 = vpop.permute.xlu0 %1629
        %1631 = vrot.lane.b32.xlu0 %v1618, 96
        %v1632 = vpop.permute.xlu0 %1631
        %1633 = vrot.lane.b32.xlu0 %v1623, 96
        %v1634 = vpop.permute.xlu0 %1633
        %1635 = vrot.lane.b32.xlu0 %v1626, 96
        %v1636 = vpop.permute.xlu0 %1635
        %vm1637 = vcmp.ge.s32.totalorder %v430, 8
        %vm1638 = vcmp.ge.s32.totalorder %v431, 8
        %vm1639 = vcmp.ge.s32.totalorder %v432, 8
        %vm1640 = vcmp.ge.s32.totalorder %v433, 8
        %v1641 = vsel %vm1637, 1, 0
        %v1642 = vsel %vm1638, 1, 0
        %v1643 = vsel %vm1639, 1, 0
        %v1644 = vsel %vm1640, 1, 0
        %vm1645 = vcmp.eq.s32.totalorder %v1641, 1
        %vm1646 = vcmp.eq.s32.totalorder %v1642, 1
        %vm1647 = vcmp.eq.s32.totalorder %v1643, 1
        %vm1648 = vcmp.eq.s32.totalorder %v1644, 1
        %v1649 = vsel %vm1645, %v1626, 0.0
        %v1650 = vsel %vm1646, %v1615, 0.0
        %v1651 = vsel %vm1647, %v1618, 0.0
        %v1652 = vsel %vm1648, %v1623, 0.0
        %v1653 = vadd.f32 %v1630, %v1649
        %v1654 = vadd.f32 %v1632, %v1650
        %v1655 = vadd.f32 %v1634, %v1651
        %v1656 = vadd.f32 %v1636, %v1652
        %1657 = vrot.lane.b32.xlu0 %v1615, 64
        %v1658 = vpop.permute.xlu0 %1657
        %1659 = vrot.lane.b32.xlu0 %v1618, 64
        %v1660 = vpop.permute.xlu0 %1659
        %1661 = vrot.lane.b32.xlu0 %v1623, 64
        %v1662 = vpop.permute.xlu0 %1661
        %1663 = vrot.lane.b32.xlu0 %v1626, 64
        %v1664 = vpop.permute.xlu0 %1663
        %vm1665 = vcmp.lt.s32.totalorder %v430, 8
        %vm1666 = vcmp.lt.s32.totalorder %v431, 8
        %vm1667 = vcmp.lt.s32.totalorder %v432, 8
        %vm1668 = vcmp.lt.s32.totalorder %v433, 8
        %v1669 = vsel %vm1665, 1, 0
        %v1670 = vsel %vm1666, 1, 0
        %v1671 = vsel %vm1667, 1, 0
        %v1672 = vsel %vm1668, 1, 0
        %vm1673 = vcmp.eq.s32.totalorder %v1669, 1
        %vm1674 = vcmp.eq.s32.totalorder %v1670, 1
        %vm1675 = vcmp.eq.s32.totalorder %v1671, 1
        %vm1676 = vcmp.eq.s32.totalorder %v1672, 1
        %v1677 = vsel %vm1673, %v1660, 0.0
        %v1678 = vsel %vm1674, %v1662, 0.0
        %v1679 = vsel %vm1675, %v1664, 0.0
        %v1680 = vsel %vm1676, %v1658, 0.0
        %v1681 = vadd.f32 %v1653, %v1677
        %v1682 = vadd.f32 %v1654, %v1678
        %v1683 = vadd.f32 %v1655, %v1679
        %v1684 = vadd.f32 %v1656, %v1680
        %s1685 = scalar_lea.vmem %s4, 3
        %v1686 = vld [vmem:[%s1685] sm:$0x1]
        %v1688 = vlaneseq
        %v1689 = vshrl.u32 %v1688, 7
        %v1690 = vsub.s32 0, %v1689
        %v1691 = vrot.slane %v1686, %v1690
        %v1693 = vadd.f32 %v1681, %v1691
        %v1694 = vadd.f32 %v1682, %v1691
        %v1695 = vadd.f32 %v1683, %v1691
        %v1696 = vadd.f32 %v1684, %v1691
        %v1697 = vmax.f32 %v1693, 0.0
        %v1698 = vmax.f32 %v1694, 0.0
        %v1699 = vmax.f32 %v1695, 0.0
        %v1700 = vmax.f32 %v1696, 0.0
        %v1701 = vpack.c.bf16 %v1698, %v1697
        %v1702 = vpack.c.bf16 %v1700, %v1699
        %s1703 = scalar_lea.vmem [#allocation4], 192
        %v1704 = vld [vmem:[%s1703] sm:$0xf]
        %v1705 = vld [vmem:[%s1703 + $0x4] sm:$0xf]
        %v1706 = vld [vmem:[%s1703 + $0x8] sm:$0xf]
        %v1707 = vld [vmem:[%s1703 + $0xc] sm:$0xf]
        %v1708 = vld [vmem:[%s1703 + $0x10] sm:$0xf]
        %v1709 = vld [vmem:[%s1703 + $0x14] sm:$0xf]
        %v1710 = vld [vmem:[%s1703 + $0x18] sm:$0xf]
        %v1711 = vld [vmem:[%s1703 + $0x1c] sm:$0xf]
        %v1712 = vld [vmem:[%s1703 + $0x20] sm:$0xf]
        %v1713 = vld [vmem:[%s1703 + $0x24] sm:$0xf]
        %v1714 = vld [vmem:[%s1703 + $0x28] sm:$0xf]
        %v1715 = vld [vmem:[%s1703 + $0x2c] sm:$0xf]
        %v1716 = vld [vmem:[%s1703 + $0x30] sm:$0xf]
        %v1717 = vld [vmem:[%s1703 + $0x34] sm:$0xf]
        %v1718 = vld [vmem:[%s1703 + $0x38] sm:$0xf]
        %v1719 = vld [vmem:[%s1703 + $0x3c] sm:$0xf]
        %s1720 = scalar_lea.vmem %s6, 3
        %v1721 = vld [vmem:[%s1720] sm:$0x1]
        %v1723 = vlaneseq
        %v1724 = vshrl.u32 %v1723, 7
        %v1725 = vsub.s32 0, %v1724
        %v1726 = vrot.slane %v1721, %v1725
        %v1744 = vunpack.c.l.b16 %v1704
        %v1745 = vunpack.c.l.b16 %v1705
        %v1746 = vunpack.c.l.b16 %v1706
        %v1747 = vunpack.c.l.b16 %v1707
        %v1748 = vunpack.c.l.b16 %v1708
        %v1749 = vunpack.c.l.b16 %v1709
        %v1750 = vunpack.c.l.b16 %v1710
        %v1751 = vunpack.c.l.b16 %v1711
        %v1752 = vunpack.c.l.b16 %v1712
        %v1753 = vunpack.c.l.b16 %v1713
        %v1754 = vunpack.c.l.b16 %v1714
        %v1755 = vunpack.c.l.b16 %v1715
        %v1756 = vunpack.c.l.b16 %v1716
        %v1757 = vunpack.c.l.b16 %v1717
        %v1758 = vunpack.c.l.b16 %v1718
        %v1759 = vunpack.c.l.b16 %v1719
        %v1760 = vpack.c.b16 %v1745, %v1744
        %v1761 = vpack.c.b16 %v1747, %v1746
        %v1762 = vpack.c.b16 %v1749, %v1748
        %v1763 = vpack.c.b16 %v1751, %v1750
        %v1764 = vpack.c.b16 %v1753, %v1752
        %v1765 = vpack.c.b16 %v1755, %v1754
        %v1766 = vpack.c.b16 %v1757, %v1756
        %v1767 = vpack.c.b16 %v1759, %v1758
        %1776 = vmatprep.subr.bf16.mxu0 0
        %1777 = vmatpush1.bf16.msra.mxu0 %v1767
        %1778 = vmatprep.subr.bf16.mxu0 0
        %1779 = vmatpush1.bf16.msra.mxu0 %v1766
        %1780 = vmatprep.subr.bf16.mxu0 0
        %1781 = vmatpush1.bf16.msra.mxu0 %v1765
        %1782 = vmatprep.subr.bf16.mxu0 0
        %1783 = vmatpush1.bf16.msra.mxu0 %v1764
        %1784 = vmatprep.subr.bf16.mxu0 0
        %1785 = vmatpush1.bf16.msra.mxu0 %v1763
        %1786 = vmatprep.subr.bf16.mxu0 0
        %1787 = vmatpush1.bf16.msra.mxu0 %v1762
        %1788 = vmatprep.subr.bf16.mxu0 0
        %1789 = vmatpush1.bf16.msra.mxu0 %v1761
        %1790 = vmatprep.subr.bf16.mxu0 0
        %1791 = vmatpush1.bf16.msra.mxu0 %v1760
        %1792 = vmatprep.subr.bf16.mxu0 0
        %1793 = vmatpush2.bf16.msra.mxu0 0
        %1794 = vmatprep.subr.bf16.mxu0 0
        %1795 = vmatpush2.bf16.msra.mxu0 0
        %1796 = vmatprep.subr.bf16.mxu0 0
        %1797 = vmatpush2.bf16.msra.mxu0 0
        %1798 = vmatprep.subr.bf16.mxu0 0
        %1799 = vmatpush2.bf16.msra.mxu0 0
        %1800 = vmatprep.subr.bf16.mxu0 0
        %1801 = vmatpush2.bf16.msra.mxu0 0
        %1802 = vmatprep.subr.bf16.mxu0 0
        %1803 = vmatpush2.bf16.msra.mxu0 0
        %1804 = vmatprep.subr.bf16.mxu0 0
        %1805 = vmatpush2.bf16.msra.mxu0 0
        %1806 = vmatprep.subr.bf16.mxu0 0
        %1807 = vmatpush2.bf16.msra.mxu0 0
        %1808 = vmatprep.mubr.bf16.mxu0 0
        %1809 = vmatmul.mubr.bf16.gmra.mxu0 %v1701
        %v1810 = vpop.f32.mrf.mxu0
        %v1811 = vadd.f32 %v1726, %v1810
        %v1812 = vpop.f32.mrf.mxu0
        %v1813 = vpop.f32.mrf.mxu0
        %v1814 = vadd.f32 %v1726, %v1813
        %v1815 = vpop.f32.mrf.mxu0
        %1816 = vmatprep.mubr.bf16.mxu0 0
        %1817 = vmatmul.mubr.bf16.gmra.mxu0 %v1702
        %v1818 = vpop.f32.mrf.mxu0
        %v1819 = vadd.f32 %v1726, %v1818
        %v1820 = vpop.f32.mrf.mxu0
        %v1821 = vpop.f32.mrf.mxu0
        %v1822 = vadd.f32 %v1726, %v1821
        %v1823 = vpop.f32.mrf.mxu0
        %1824 = vdwg.mxu0
        %v1825 = vadd.f32 %v1509, %v1811
        %v1826 = vadd.f32 %v1510, %v1814
        %v1827 = vadd.f32 %v1511, %v1819
        %v1828 = vadd.f32 %v1512, %v1822
        %v1829 = vpack.c.bf16 %v1826, %v1825
        %v1830 = vpack.c.bf16 %v1828, %v1827
        %v1831 = vld [vmem:[#allocation6] sm:$0xf]
        %v1832 = vld [vmem:[#allocation6 + $0x4] sm:$0xf]
        %v1833 = vld [vmem:[#allocation6 + $0x8] sm:$0xf]
        %v1834 = vld [vmem:[#allocation6 + $0xc] sm:$0xf]
        %v1835 = vld [vmem:[#allocation6 + $0x10] sm:$0xf]
        %v1836 = vld [vmem:[#allocation6 + $0x14] sm:$0xf]
        %v1837 = vld [vmem:[#allocation6 + $0x18] sm:$0xf]
        %v1838 = vld [vmem:[#allocation6 + $0x1c] sm:$0xf]
        %v1839 = vld [vmem:[#allocation6 + $0x20] sm:$0xf]
        %v1840 = vld [vmem:[#allocation6 + $0x24] sm:$0xf]
        %v1841 = vld [vmem:[#allocation6 + $0x28] sm:$0xf]
        %v1842 = vld [vmem:[#allocation6 + $0x2c] sm:$0xf]
        %v1843 = vld [vmem:[#allocation6 + $0x30] sm:$0xf]
        %v1844 = vld [vmem:[#allocation6 + $0x34] sm:$0xf]
        %v1845 = vld [vmem:[#allocation6 + $0x38] sm:$0xf]
        %v1846 = vld [vmem:[#allocation6 + $0x3c] sm:$0xf]
        %v1847 = vld [vmem:[%s8] sm:$0x1]
        %v1849 = vlaneseq
        %v1850 = vshrl.u32 %v1849, 7
        %v1851 = vsub.s32 0, %v1850
        %v1852 = vrot.slane %v1847, %v1851
        %v1870 = vunpack.c.l.b16 %v1831
        %v1871 = vunpack.c.l.b16 %v1832
        %v1872 = vunpack.c.l.b16 %v1833
        %v1873 = vunpack.c.l.b16 %v1834
        %v1874 = vunpack.c.l.b16 %v1835
        %v1875 = vunpack.c.l.b16 %v1836
        %v1876 = vunpack.c.l.b16 %v1837
        %v1877 = vunpack.c.l.b16 %v1838
        %v1878 = vunpack.c.l.b16 %v1839
        %v1879 = vunpack.c.l.b16 %v1840
        %v1880 = vunpack.c.l.b16 %v1841
        %v1881 = vunpack.c.l.b16 %v1842
        %v1882 = vunpack.c.l.b16 %v1843
        %v1883 = vunpack.c.l.b16 %v1844
        %v1884 = vunpack.c.l.b16 %v1845
        %v1885 = vunpack.c.l.b16 %v1846
        %v1886 = vpack.c.b16 %v1871, %v1870
        %v1887 = vpack.c.b16 %v1873, %v1872
        %v1888 = vpack.c.b16 %v1875, %v1874
        %v1889 = vpack.c.b16 %v1877, %v1876
        %v1890 = vpack.c.b16 %v1879, %v1878
        %v1891 = vpack.c.b16 %v1881, %v1880
        %v1892 = vpack.c.b16 %v1883, %v1882
        %v1893 = vpack.c.b16 %v1885, %v1884
        %1902 = vmatprep.subr.bf16.mxu0 0
        %1903 = vmatpush1.bf16.msra.mxu0 %v1893
        %1904 = vmatprep.subr.bf16.mxu0 0
        %1905 = vmatpush1.bf16.msra.mxu0 %v1892
        %1906 = vmatprep.subr.bf16.mxu0 0
        %1907 = vmatpush1.bf16.msra.mxu0 %v1891
        %1908 = vmatprep.subr.bf16.mxu0 0
        %1909 = vmatpush1.bf16.msra.mxu0 %v1890
        %1910 = vmatprep.subr.bf16.mxu0 0
        %1911 = vmatpush1.bf16.msra.mxu0 %v1889
        %1912 = vmatprep.subr.bf16.mxu0 0
        %1913 = vmatpush1.bf16.msra.mxu0 %v1888
        %1914 = vmatprep.subr.bf16.mxu0 0
        %1915 = vmatpush1.bf16.msra.mxu0 %v1887
        %1916 = vmatprep.subr.bf16.mxu0 0
        %1917 = vmatpush1.bf16.msra.mxu0 %v1886
        %1918 = vmatprep.subr.bf16.mxu0 0
        %1919 = vmatpush2.bf16.msra.mxu0 0
        %1920 = vmatprep.subr.bf16.mxu0 0
        %1921 = vmatpush2.bf16.msra.mxu0 0
        %1922 = vmatprep.subr.bf16.mxu0 0
        %1923 = vmatpush2.bf16.msra.mxu0 0
        %1924 = vmatprep.subr.bf16.mxu0 0
        %1925 = vmatpush2.bf16.msra.mxu0 0
        %1926 = vmatprep.subr.bf16.mxu0 0
        %1927 = vmatpush2.bf16.msra.mxu0 0
        %1928 = vmatprep.subr.bf16.mxu0 0
        %1929 = vmatpush2.bf16.msra.mxu0 0
        %1930 = vmatprep.subr.bf16.mxu0 0
        %1931 = vmatpush2.bf16.msra.mxu0 0
        %1932 = vmatprep.subr.bf16.mxu0 0
        %1933 = vmatpush2.bf16.msra.mxu0 0
        %1934 = vmatprep.mubr.bf16.mxu0 0
        %1935 = vmatmul.mubr.bf16.gmra.mxu0 %v1829
        %v1936 = vpop.f32.mrf.mxu0
        %v1937 = vadd.f32 %v1852, %v1936
        %v1938 = vpop.f32.mrf.mxu0
        %v1939 = vpop.f32.mrf.mxu0
        %v1940 = vadd.f32 %v1852, %v1939
        %v1941 = vpop.f32.mrf.mxu0
        %1942 = vmatprep.mubr.bf16.mxu0 0
        %1943 = vmatmul.mubr.bf16.gmra.mxu0 %v1830
        %v1944 = vpop.f32.mrf.mxu0
        %v1945 = vadd.f32 %v1852, %v1944
        %v1946 = vpop.f32.mrf.mxu0
        %v1947 = vpop.f32.mrf.mxu0
        %v1948 = vadd.f32 %v1852, %v1947
        %v1949 = vpop.f32.mrf.mxu0
        %1950 = vdwg.mxu0
        %1951 = vst.msk [vmem:[%s378] sm:$0xff] %vm456, %v1937
        %1952 = vst.msk [vmem:[%s378 + $0x8] sm:$0xff] %vm456, %v1940
        %1953 = vst.msk [vmem:[%s378 + $0x10] sm:$0xff] %vm456, %v1945
        %1954 = vst.msk [vmem:[%s378 + $0x18] sm:$0xff] %vm456, %v1948
        %s1955 = smul.u32 4, %s22
        %p1956 = scmp.lt.s32.totalorder %s1955, 7
        %s1957 = scalar_select %p1956, %s1955, 7
        %s1958 = smul.addr %s1957, 8
        %s1959 = scalar_lea.vmem %s9, %s1958
        // Predicated region
        $region69: #{tpu_custom_call.1} parent=55 // pred_check
          %p1960 = pneg %p234
        $region70: #{tpu_custom_call.1} parent=55 // pred_check_branch
          %1962 = sbr.rel (%p1960) target = $region72
        $region71: #{tpu_custom_call.1} parent=55 // pred_region
          %s1963 = smul.u32 4, %s22
        $region72: #{tpu_custom_call.1} parent=55 // pred_fallthru
          _
      $region56: #{tpu_custom_call.1} parent=5 // pred_fallthru
        _
      %p1964 = scmp.le.s32.totalorder 2, %s17
      // Predicated region
      $region73: #{tpu_custom_call.1} parent=5 // pred_check
        %p1965 = pneg %p1964
      $region74: #{tpu_custom_call.1} parent=5 // pred_check_branch
        %1967 = sbr.rel (%p1965) target = $region76
      $region75: #{tpu_custom_call.1} parent=5 // pred_region
        %s1968 = ssub.s32 %s17, 2
        // Predicated region
        $region77: #{tpu_custom_call.1} parent=75 // pred_check
          %p1969 = pneg %p240
        $region78: #{tpu_custom_call.1} parent=75 // pred_check_branch
          %1971 = sbr.rel (%p1969) target = $region80
        $region79: #{tpu_custom_call.1} parent=75 // pred_region
          %s1972 = smul.u32 4, %s23
          %p1973 = scmp.lt.s32.totalorder %s1972, 7
          %s1974 = scalar_select %p1973, %s1972, 7
          %s1975 = smul.addr %s1974, 8
          %s1976 = scalar_lea.vmem %s9, %s1975
        $region80: #{tpu_custom_call.1} parent=75 // pred_fallthru
          _
      $region76: #{tpu_custom_call.1} parent=5 // pred_fallthru
        _
    $region6: #{tpu_custom_call.1} parent=1 // loop_footer
      %s21 = sadd.s32 1, %s17
    $region7: #{tpu_custom_call.1} parent=1 // loop_footer_branch
      %16 = sbr.rel target = $region3
    $region8: #{tpu_custom_call.1} parent=1 // loop_exit
      _
    %1977 = vsyncpa [#allocation3], 1
    %s1978 = scalar_lea.sflag [#allocation3], 1
    %1979 = vsyncpa %s1978, 1
    %1980 = vsyncpa [#allocation5], 1

// kernel: tpu_custom_call.1
$region0: #{tpu_custom_call.1}
  #allocation0 [shape = 'u32[]', space=smem, size = 0x4, offset = 0x4, fixed_abs, tag = 'smem constant byte address 0x4 - core index']
  #allocation1 [shape = 'u32[144,128]{1,0:T(1,128)}', space=vmem, size = 0x12000, scoped, tag = 'internal scratch']
  %s0 = inlined_call_operand.vmem [shape: bf16[64,8], index: 0, kind: input, shape index: {}]
  %s1 = inlined_call_operand.vmem [shape: bf16[8,128], index: 1, kind: input, shape index: {}]
  %s2 = inlined_call_operand.vmem [shape: f32[1,128], index: 2, kind: input, shape index: {}]
  %s3 = inlined_call_operand.hbm [shape: bf16[4,128,128], index: 3, kind: input, shape index: {}]
  %s4 = inlined_call_operand.vmem [shape: f32[4,1,128], index: 4, kind: input, shape index: {}]
  %s5 = inlined_call_operand.hbm [shape: bf16[4,128,128], index: 5, kind: input, shape index: {}]
  %s6 = inlined_call_operand.vmem [shape: f32[4,1,128], index: 6, kind: input, shape index: {}]
  %s7 = inlined_call_operand.hbm [shape: bf16[128,128], index: 7, kind: input, shape index: {}]
  %s8 = inlined_call_operand.vmem [shape: f32[1,128], index: 8, kind: input, shape index: {}]
  %s9 = inlined_call_operand.vmem [shape: f32[64,8], index: 9, kind: output, shape index: {}]
  %s10 = sld [smem:[#allocation0]]
  $region81: #{tpu_custom_call.1} parent=0
    _
  %s12 = ssub.s32 1, %s10
  %s13 = scalar_select 0, %s12, %s10
  $region1: #{tpu_custom_call.1} parent=0
    #allocation2 [shape = 'u8[131072]{0}', space=vmem, size = 0x20000, scoped, tag = 'input window, operand 3, single buffered']
    #allocation3 [shape = 's32[2]{0}', space=sflag, size = 0x8, scoped, tag = 'scoped memory for tpu_custom_call.1']
    #allocation4 [shape = 'u8[131072]{0}', space=vmem, size = 0x20000, scoped, tag = 'input window, operand 5, single buffered']
    #allocation5 [shape = 's32[1]{0}', space=sflag, size = 0x4, scoped, tag = 'scoped memory for tpu_custom_call.1']
    #allocation6 [shape = 'u8[32768]{0}', space=vmem, size = 0x8000, scoped, tag = 'input window, operand 7, single buffered']
    %14 = vsyncpa [#allocation3], 0
    %15 = vsyncpa [#allocation5], 0
    loop: start=0, step=1, limit=4
    $region2: #{tpu_custom_call.1} parent=1 // loop_pre_header
      _
    $region3: #{tpu_custom_call.1} parent=1 // loop_header
      %s17 = sphi 0, %s21
      %p18 = scmp.ge.s32.totalorder %s17, 4
      %s27 = sphi 0, %s29
      %s30 = sphi 0, %s27
      %s31 = sphi 0, %s30
      %s47 = sphi 0, %s31
      %s51 = sphi 0, %s51
      %s53 = sphi 0, %s51
      %s54 = sphi 0, %s53
      %s68 = sphi 0, %s54
      %s72 = sphi 0, %s72
      %s74 = sphi 0, %s72
      %s75 = sphi 0, %s74
      %s89 = sphi 0, %s75
      %s93 = sphi 0, %s93
      %s95 = sphi 0, %s93
      %s96 = sphi 0, %s95
      %s110 = sphi 0, %s96
      %s114 = sphi 0, %s114
      %s116 = sphi 0, %s114
      %s117 = sphi 0, %s116
      %s131 = sphi 0, %s117
      %s135 = sphi 0, %s135
      %s137 = sphi 0, %s135
      %s138 = sphi 0, %s137
      %s152 = sphi 0, %s138
      %s156 = sphi 0, %s156
      %s158 = sphi 0, %s156
      %s159 = sphi 0, %s158
      %s173 = sphi 0, %s159
      %s177 = sphi 0, %s177
      %s179 = sphi 0, %s177
      %s180 = sphi 0, %s179
      %s194 = sphi 0, %s180
      %s198 = sphi 0, %s198
      %s200 = sphi 0, %s198
      %s201 = sphi 0, %s200
      %s215 = sphi 0, %s201
      %s221 = sphi 0, %s223
      %s224 = sphi 0, %s221
      %s225 = sphi 0, %s224
      %s241 = sphi 0, %s225
    $region4: #{tpu_custom_call.1} parent=1 // loop_header_branch
      %20 = sbr.rel (%p18) target = $region8
    $region5: #{tpu_custom_call.1} parent=1 // loop_body
      %s22 = ssub.s32 %s17, 1
      %s23 = ssub.s32 %s17, 2
      %s24 = sadd.s32 %s17, 1
      %s25 = ssub.s32 %s17, %s24
      %p26 = scmp.eq.s32.totalorder %s25, 0
      %s28 = sadd.s32 %s27, 1
      %s29 = scalar_select %p26, %s27, %s28
      %p32 = pneg %p26
      %p33 = scmp.eq.s32.totalorder %s17, 1
      %p34 = por %p32, %p33
      %p35 = scmp.ne.s32.totalorder %s27, %s30
      %p36 = scmp.eq.s32.totalorder %s17, 0
      %p37 = por %p35, %p36
      %p38 = scmp.ne.s32.totalorder %s27, %s30
      %p39 = scmp.eq.s32.totalorder %s22, 1
      %p40 = por %p38, %p39
      %p41 = scmp.ne.s32.totalorder %s30, %s31
      %p42 = scmp.eq.s32.totalorder %s22, 0
      %p43 = por %p41, %p42
      %p44 = scmp.ne.s32.totalorder %s30, %s31
      %p45 = scmp.eq.s32.totalorder %s23, 1
      %p46 = por %p44, %p45
      %p48 = scmp.ne.s32.totalorder %s31, %s47
      %p49 = scmp.eq.s32.totalorder %s23, 0
      %p50 = por %p48, %p49
      %s52 = sadd.s32 %s51, 1
      %p55 = scmp.eq.s32.totalorder %s17, 1
      %p56 = scmp.ne.s32.totalorder %s51, %s53
      %p57 = scmp.eq.s32.totalorder %s17, 0
      %p58 = por %p56, %p57
      %p59 = scmp.ne.s32.totalorder %s51, %s53
      %p60 = scmp.eq.s32.totalorder %s22, 1
      %p61 = por %p59, %p60
      %p62 = scmp.ne.s32.totalorder %s53, %s54
      %p63 = scmp.eq.s32.totalorder %s22, 0
      %p64 = por %p62, %p63
      %p65 = scmp.ne.s32.totalorder %s53, %s54
      %p66 = scmp.eq.s32.totalorder %s23, 1
      %p67 = por %p65, %p66
      %p69 = scmp.ne.s32.totalorder %s54, %s68
      %p70 = scmp.eq.s32.totalorder %s23, 0
      %p71 = por %p69, %p70
      %s73 = sadd.s32 %s72, 1
      %p76 = scmp.eq.s32.totalorder %s17, 1
      %p77 = scmp.ne.s32.totalorder %s72, %s74
      %p78 = scmp.eq.s32.totalorder %s17, 0
      %p79 = por %p77, %p78
      %p80 = scmp.ne.s32.totalorder %s72, %s74
      %p81 = scmp.eq.s32.totalorder %s22, 1
      %p82 = por %p80, %p81
      %p83 = scmp.ne.s32.totalorder %s74, %s75
      %p84 = scmp.eq.s32.totalorder %s22, 0
      %p85 = por %p83, %p84
      %p86 = scmp.ne.s32.totalorder %s74, %s75
      %p87 = scmp.eq.s32.totalorder %s23, 1
      %p88 = por %p86, %p87
      %p90 = scmp.ne.s32.totalorder %s75, %s89
      %p91 = scmp.eq.s32.totalorder %s23, 0
      %p92 = por %p90, %p91
      %s94 = sadd.s32 %s93, 1
      %p97 = scmp.eq.s32.totalorder %s17, 1
      %p98 = scmp.ne.s32.totalorder %s93, %s95
      %p99 = scmp.eq.s32.totalorder %s17, 0
      %p100 = por %p98, %p99
      %p101 = scmp.ne.s32.totalorder %s93, %s95
      %p102 = scmp.eq.s32.totalorder %s22, 1
      %p103 = por %p101, %p102
      %p104 = scmp.ne.s32.totalorder %s95, %s96
      %p105 = scmp.eq.s32.totalorder %s22, 0
      %p106 = por %p104, %p105
      %p107 = scmp.ne.s32.totalorder %s95, %s96
      %p108 = scmp.eq.s32.totalorder %s23, 1
      %p109 = por %p107, %p108
      %p111 = scmp.ne.s32.totalorder %s96, %s110
      %p112 = scmp.eq.s32.totalorder %s23, 0
      %p113 = por %p111, %p112
      %s115 = sadd.s32 %s114, 1
      %p118 = scmp.eq.s32.totalorder %s17, 1
      %p119 = scmp.ne.s32.totalorder %s114, %s116
      %p120 = scmp.eq.s32.totalorder %s17, 0
      %p121 = por %p119, %p120
      %p122 = scmp.ne.s32.totalorder %s114, %s116
      %p123 = scmp.eq.s32.totalorder %s22, 1
      %p124 = por %p122, %p123
      %p125 = scmp.ne.s32.totalorder %s116, %s117
      %p126 = scmp.eq.s32.totalorder %s22, 0
      %p127 = por %p125, %p126
      %p128 = scmp.ne.s32.totalorder %s116, %s117
      %p129 = scmp.eq.s32.totalorder %s23, 1
      %p130 = por %p128, %p129
      %p132 = scmp.ne.s32.totalorder %s117, %s131
      %p133 = scmp.eq.s32.totalorder %s23, 0
      %p134 = por %p132, %p133
      %s136 = sadd.s32 %s135, 1
      %p139 = scmp.eq.s32.totalorder %s17, 1
      %p140 = scmp.ne.s32.totalorder %s135, %s137
      %p141 = scmp.eq.s32.totalorder %s17, 0
      %p142 = por %p140, %p141
      %p143 = scmp.ne.s32.totalorder %s135, %s137
      %p144 = scmp.eq.s32.totalorder %s22, 1
      %p145 = por %p143, %p144
      %p146 = scmp.ne.s32.totalorder %s137, %s138
      %p147 = scmp.eq.s32.totalorder %s22, 0
      %p148 = por %p146, %p147
      %p149 = scmp.ne.s32.totalorder %s137, %s138
      %p150 = scmp.eq.s32.totalorder %s23, 1
      %p151 = por %p149, %p150
      %p153 = scmp.ne.s32.totalorder %s138, %s152
      %p154 = scmp.eq.s32.totalorder %s23, 0
      %p155 = por %p153, %p154
      %s157 = sadd.s32 %s156, 1
      %p160 = scmp.eq.s32.totalorder %s17, 1
      %p161 = scmp.ne.s32.totalorder %s156, %s158
      %p162 = scmp.eq.s32.totalorder %s17, 0
      %p163 = por %p161, %p162
      %p164 = scmp.ne.s32.totalorder %s156, %s158
      %p165 = scmp.eq.s32.totalorder %s22, 1
      %p166 = por %p164, %p165
      %p167 = scmp.ne.s32.totalorder %s158, %s159
      %p168 = scmp.eq.s32.totalorder %s22, 0
      %p169 = por %p167, %p168
      %p170 = scmp.ne.s32.totalorder %s158, %s159
      %p171 = scmp.eq.s32.totalorder %s23, 1
      %p172 = por %p170, %p171
      %p174 = scmp.ne.s32.totalorder %s159, %s173
      %p175 = scmp.eq.s32.totalorder %s23, 0
      %p176 = por %p174, %p175
      %s178 = sadd.s32 %s177, 1
      %p181 = scmp.eq.s32.totalorder %s17, 1
      %p182 = scmp.ne.s32.totalorder %s177, %s179
      %p183 = scmp.eq.s32.totalorder %s17, 0
      %p184 = por %p182, %p183
      %p185 = scmp.ne.s32.totalorder %s177, %s179
      %p186 = scmp.eq.s32.totalorder %s22, 1
      %p187 = por %p185, %p186
      %p188 = scmp.ne.s32.totalorder %s179, %s180
      %p189 = scmp.eq.s32.totalorder %s22, 0
      %p190 = por %p188, %p189
      %p191 = scmp.ne.s32.totalorder %s179, %s180
      %p192 = scmp.eq.s32.totalorder %s23, 1
      %p193 = por %p191, %p192
      %p195 = scmp.ne.s32.totalorder %s180, %s194
      %p196 = scmp.eq.s32.totalorder %s23, 0
      %p197 = por %p195, %p196
      %s199 = sadd.s32 %s198, 1
      %p202 = scmp.eq.s32.totalorder %s17, 1
      %p203 = scmp.ne.s32.totalorder %s198, %s200
      %p204 = scmp.eq.s32.totalorder %s17, 0
      %p205 = por %p203, %p204
      %p206 = scmp.ne.s32.totalorder %s198, %s200
      %p207 = scmp.eq.s32.totalorder %s22, 1
      %p208 = por %p206, %p207
      %p209 = scmp.ne.s32.totalorder %s200, %s201
      %p210 = scmp.eq.s32.totalorder %s22, 0
      %p211 = por %p209, %p210
      %p212 = scmp.ne.s32.totalorder %s200, %s201
      %p213 = scmp.eq.s32.totalorder %s23, 1
      %p214 = por %p212, %p213
      %p216 = scmp.ne.s32.totalorder %s201, %s215
      %p217 = scmp.eq.s32.totalorder %s23, 0
      %p218 = por %p216, %p217
      %s219 = ssub.s32 %s17, %s24
      %p220 = scmp.eq.s32.totalorder %s219, 0
      %s222 = sadd.s32 %s221, 1
      %s223 = scalar_select %p220, %s221, %s222
      %p226 = pneg %p220
      %p227 = scmp.eq.s32.totalorder %s17, 1
      %p228 = por %p226, %p227
      %p229 = scmp.ne.s32.totalorder %s221, %s224
      %p230 = scmp.eq.s32.totalorder %s17, 0
      %p231 = por %p229, %p230
      %p232 = scmp.ne.s32.totalorder %s221, %s224
      %p233 = scmp.eq.s32.totalorder %s22, 1
      %p234 = por %p232, %p233
      %p235 = scmp.ne.s32.totalorder %s224, %s225
      %p236 = scmp.eq.s32.totalorder %s22, 0
      %p237 = por %p235, %p236
      %p238 = scmp.ne.s32.totalorder %s224, %s225
      %p239 = scmp.eq.s32.totalorder %s23, 1
      %p240 = por %p238, %p239
      %p242 = scmp.ne.s32.totalorder %s225, %s241
      %p243 = scmp.eq.s32.totalorder %s23, 0
      %p244 = por %p242, %p243
      %p245 = scmp.le.s32.totalorder 1, %s17
      %p246 = scmp.lt.s32.totalorder %s17, 3
      %p247 = pnand %p245, %p246
      %p248 = pneg %p247
      // Predicated region
      $region9: #{tpu_custom_call.1} parent=5 // pred_check
        _
      $region10: #{tpu_custom_call.1} parent=5 // pred_check_branch
        %250 = sbr.rel (%p247) target = $region12
      $region11: #{tpu_custom_call.1} parent=5 // pred_region
        %s251 = ssub.s32 %s17, 1
        // Predicated region
        $region13: #{tpu_custom_call.1} parent=11 // pred_check
          %p252 = pneg %p64
        $region14: #{tpu_custom_call.1} parent=11 // pred_check_branch
          %254 = sbr.rel (%p252) target = $region16
        $region15: #{tpu_custom_call.1} parent=11 // pred_region
          _
        $region16: #{tpu_custom_call.1} parent=11 // pred_fallthru
          _
        // Predicated region
        $region17: #{tpu_custom_call.1} parent=11 // pred_check
          %p255 = pneg %p85
        $region18: #{tpu_custom_call.1} parent=11 // pred_check_branch
          %257 = sbr.rel (%p255) target = $region20
        $region19: #{tpu_custom_call.1} parent=11 // pred_region
          _
        $region20: #{tpu_custom_call.1} parent=11 // pred_fallthru
          _
        // Predicated region
        $region21: #{tpu_custom_call.1} parent=11 // pred_check
          %p258 = pneg %p106
        $region22: #{tpu_custom_call.1} parent=11 // pred_check_branch
          %260 = sbr.rel (%p258) target = $region24
        $region23: #{tpu_custom_call.1} parent=11 // pred_region
          %s262 = ssub.s32 4096, 4096
          %263 = vsyncadd [#allocation3], %s262
          %s264 = sshll.u32 [#allocation2], 4
          %s265 = int_to_ptr.vmem [resolvable:$true] %s264
          %270 = dma.hbm_to_vmem [thread:$0]  %s3, 4096, %s265, [#allocation3], 64, 64, 4
        $region24: #{tpu_custom_call.1} parent=11 // pred_fallthru
          _
        // Predicated region
        $region25: #{tpu_custom_call.1} parent=11 // pred_check
          %p271 = pneg %p127
        $region26: #{tpu_custom_call.1} parent=11 // pred_check_branch
          %273 = sbr.rel (%p271) target = $region28
        $region27: #{tpu_custom_call.1} parent=11 // pred_region
          _
        $region28: #{tpu_custom_call.1} parent=11 // pred_fallthru
          _
        // Predicated region
        $region29: #{tpu_custom_call.1} parent=11 // pred_check
          %p274 = pneg %p148
        $region30: #{tpu_custom_call.1} parent=11 // pred_check_branch
          %276 = sbr.rel (%p274) target = $region32
        $region31: #{tpu_custom_call.1} parent=11 // pred_region
          %s278 = ssub.s32 4096, 4096
          %279 = vsyncadd [#allocation5], %s278
          %s280 = sshll.u32 [#allocation4], 4
          %s281 = int_to_ptr.vmem [resolvable:$true] %s280
          %286 = dma.hbm_to_vmem [thread:$0]  %s5, 4096, %s281, [#allocation5], 64, 64, 4
        $region32: #{tpu_custom_call.1} parent=11 // pred_fallthru
          _
        // Predicated region
        $region33: #{tpu_custom_call.1} parent=11 // pred_check
          %p287 = pneg %p169
        $region34: #{tpu_custom_call.1} parent=11 // pred_check_branch
          %289 = sbr.rel (%p287) target = $region36
        $region35: #{tpu_custom_call.1} parent=11 // pred_region
          _
        $region36: #{tpu_custom_call.1} parent=11 // pred_fallthru
          _
        // Predicated region
        $region37: #{tpu_custom_call.1} parent=11 // pred_check
          %p290 = pneg %p190
        $region38: #{tpu_custom_call.1} parent=11 // pred_check_branch
          %292 = sbr.rel (%p290) target = $region40
        $region39: #{tpu_custom_call.1} parent=11 // pred_region
          %s294 = ssub.s32 1024, 1024
          %295 = vsyncadd [#allocation5], %s294
          %s296 = sshll.u32 [#allocation6], 4
          %s297 = int_to_ptr.vmem [resolvable:$true] %s296
          %302 = dma.hbm_to_vmem [thread:$0]  %s7, 1024, %s297, [#allocation5], 64, 64, 4
        $region40: #{tpu_custom_call.1} parent=11 // pred_fallthru
          _
        // Predicated region
        $region41: #{tpu_custom_call.1} parent=11 // pred_check
          %p303 = pneg %p211
        $region42: #{tpu_custom_call.1} parent=11 // pred_check_branch
          %305 = sbr.rel (%p303) target = $region44
        $region43: #{tpu_custom_call.1} parent=11 // pred_region
          _
        $region44: #{tpu_custom_call.1} parent=11 // pred_fallthru
          _
      $region12: #{tpu_custom_call.1} parent=5 // pred_fallthru
        _
      %p306 = scmp.lt.s32.totalorder %s17, 2
      // Predicated region
      $region45: #{tpu_custom_call.1} parent=5 // pred_check
        %p307 = pneg %p306
      $region46: #{tpu_custom_call.1} parent=5 // pred_check_branch
        %309 = sbr.rel (%p307) target = $region48
      $region47: #{tpu_custom_call.1} parent=5 // pred_region
        // Predicated region
        $region49: #{tpu_custom_call.1} parent=47 // pred_check
          %p310 = pneg %p37
        $region50: #{tpu_custom_call.1} parent=47 // pred_check_branch
          %312 = sbr.rel (%p310) target = $region52
        $region51: #{tpu_custom_call.1} parent=47 // pred_region
          %s313 = smul.u32 4, %s17
          %p314 = scmp.lt.s32.totalorder %s313, 7
          %s315 = scalar_select %p314, %s313, 7
          %s316 = smul.addr %s315, 4
          %s317 = scalar_lea.vmem %s0, %s316
          %s318 = smul.u32 4, %s17
        $region52: #{tpu_custom_call.1} parent=47 // pred_fallthru
          _
      $region48: #{tpu_custom_call.1} parent=5 // pred_fallthru
        _
      %p319 = scmp.le.s32.totalorder 1, %s17
      %p320 = scmp.lt.s32.totalorder %s17, 3
      %p321 = pnand %p319, %p320
      %p322 = pneg %p321
      // Predicated region
      $region53: #{tpu_custom_call.1} parent=5 // pred_check
        _
      $region54: #{tpu_custom_call.1} parent=5 // pred_check_branch
        %324 = sbr.rel (%p321) target = $region56
      $region55: #{tpu_custom_call.1} parent=5 // pred_region
        %s325 = ssub.s32 %s17, 1
        // Predicated region
        $region57: #{tpu_custom_call.1} parent=55 // pred_check
          %p326 = pneg %p106
        $region58: #{tpu_custom_call.1} parent=55 // pred_check_branch
          %328 = sbr.rel (%p326) target = $region60
        $region59: #{tpu_custom_call.1} parent=55 // pred_region
          %329 = dma.done [#allocation3], 4096
        $region60: #{tpu_custom_call.1} parent=55 // pred_fallthru
          _
        // Predicated region
        $region61: #{tpu_custom_call.1} parent=55 // pred_check
          %p330 = pneg %p148
        $region62: #{tpu_custom_call.1} parent=55 // pred_check_branch
          %332 = sbr.rel (%p330) target = $region64
        $region63: #{tpu_custom_call.1} parent=55 // pred_region
          %333 = dma.done [#allocation5], 4096
        $region64: #{tpu_custom_call.1} parent=55 // pred_fallthru
          _
        // Predicated region
        $region65: #{tpu_custom_call.1} parent=55 // pred_check
          %p334 = pneg %p190
        $region66: #{tpu_custom_call.1} parent=55 // pred_check_branch
          %336 = sbr.rel (%p334) target = $region68
        $region67: #{tpu_custom_call.1} parent=55 // pred_region
          %337 = dma.done [#allocation5], 1024
        $region68: #{tpu_custom_call.1} parent=55 // pred_fallthru
          _
        %s338 = smul.u32 4, %s22
        %p339 = scmp.lt.s32.totalorder %s338, 7
        %s340 = scalar_select %p339, %s338, 7
        %s341 = smul.addr %s340, 4
        %s342 = scalar_lea.vmem %s0, %s341
        %p343 = pneg %p43
        %p344 = pneg %p40
        %p345 = pneg %p64
        %p346 = pneg %p61
        %p347 = pneg %p85
        %p348 = pneg %p82
        %p349 = pneg %p106
        %p350 = pneg %p103
        %p351 = pneg %p127
        %p352 = pneg %p124
        %p353 = pneg %p148
        %p354 = pneg %p145
        %p355 = pneg %p169
        %p356 = pneg %p166
        %p357 = pneg %p190
        %p358 = pneg %p187
        %p359 = pneg %p211
        %p360 = pneg %p208
        %p361 = pneg %p237
        %p362 = pneg %p234
        %s363 = smul.u32 4, %s22
        %p364 = scmp.lt.s32.totalorder %s363, 7
        %s365 = scalar_select %p364, %s363, 7
        %s366 = smul.addr %s365, 8
        %s367 = scalar_lea.vmem %s9, %s366
        %s368 = smul.u32 4, %s22
        %p369 = scmp.lt.s32.totalorder %s368, 7
        %s370 = scalar_select %p369, %s368, 7
        %s371 = smul.addr %s370, 4
        %s372 = scalar_lea.vmem %s0, %s371
        %s373 = smul.u32 4, %s22
        %s374 = smul.u32 4, %s22
        %p375 = scmp.lt.s32.totalorder %s374, 7
        %s376 = scalar_select %p375, %s374, 7
        %s377 = smul.addr %s376, 8
        %s378 = scalar_lea.vmem %s9, %s377
        %s379 = smul.u32 4, %s22
        %v381 = vlaneseq
        %v382 = vshrl.u32 %v381, 7
        %v383 = vadd.s32 %v382, 8
        %v384 = vadd.s32 %v382, 16
        %v385 = vadd.s32 %v382, 24
        %vm386 = vcmp.lt.s32.totalorder %v382, 0
        %v387 = vsub.s32 0, %v382
        %v388 = vsel %vm386, %v387, %v382
        %v389 = vshrl.u32 %v388, 4
        %v390 = vand.u32 %v388, 15
        %v391 = vsub.s32 0, %v390
        %v392 = vsel %vm386, %v391, %v390
        %vm393 = vcmp.lt.s32.totalorder %v383, 0
        %v394 = vsub.s32 0, %v383
        %v395 = vsel %vm393, %v394, %v383
        %v396 = vshrl.u32 %v395, 4
        %v397 = vand.u32 %v395, 15
        %v398 = vsub.s32 0, %v397
        %v399 = vsel %vm393, %v398, %v397
        %vm400 = vcmp.lt.s32.totalorder %v384, 0
        %v401 = vsub.s32 0, %v384
        %v402 = vsel %vm400, %v401, %v384
        %v403 = vshrl.u32 %v402, 4
        %v404 = vand.u32 %v402, 15
        %v405 = vsub.s32 0, %v404
        %v406 = vsel %vm400, %v405, %v404
        %vm407 = vcmp.lt.s32.totalorder %v385, 0
        %v408 = vsub.s32 0, %v385
        %v409 = vsel %vm407, %v408, %v385
        %v410 = vshrl.u32 %v409, 4
        %v411 = vand.u32 %v409, 15
        %v412 = vsub.s32 0, %v411
        %v413 = vsel %vm407, %v412, %v411
        %vm414 = vcmp.ne.s32.totalorder %v392, 0
        %vm415 = vcmp.ne.s32.totalorder %v399, 0
        %vm416 = vcmp.ne.s32.totalorder %v406, 0
        %vm417 = vcmp.ne.s32.totalorder %v413, 0
        %vm418 = vcmp.lt.s32.totalorder %v392, 0
        %vm419 = vcmp.lt.s32.totalorder %v399, 0
        %vm420 = vcmp.lt.s32.totalorder %v406, 0
        %vm421 = vcmp.lt.s32.totalorder %v413, 0
        %vm422 = vmand %vm418, %vm414
        %vm423 = vmand %vm419, %vm415
        %vm424 = vmand %vm420, %vm416
        %vm425 = vmand %vm421, %vm417
        %v426 = vadd.s32 %v392, 16
        %v427 = vadd.s32 %v399, 16
        %v428 = vadd.s32 %v406, 16
        %v429 = vadd.s32 %v413, 16
        %v430 = vsel %vm422, %v426, %v392
        %v431 = vsel %vm423, %v427, %v399
        %v432 = vsel %vm424, %v428, %v406
        %v433 = vsel %vm425, %v429, %v413
        %v434 = vld [vmem:[%s372] sm:$0xf]
        %v435 = vld [vmem:[%s372 + $0x4] sm:$0xf]
        %v436 = vld [vmem:[%s372 + $0x8] sm:$0xf]
        %v437 = vld [vmem:[%s372 + $0xc] sm:$0xf]
        %v438 = vld [vmem:[%s1] sm:$0xf]
        %v439 = vld [vmem:[%s2] sm:$0x1]
        %v441 = vlaneseq
        %v442 = vshrl.u32 %v441, 7
        %v443 = vsub.s32 0, %v442
        %v444 = vrot.slane %v439, %v443
        %v450 = vunpack.c.l.b16 %v434
        %v451 = vunpack.c.l.b16 %v435
        %v452 = vunpack.c.l.b16 %v436
        %v453 = vunpack.c.l.b16 %v437
        %v454 = vpack.c.b16 %v451, %v450
        %v455 = vpack.c.b16 %v453, %v452
        %vm456 = vcmask 64512
        %v458 = vsel %vm456, %v454, 0
        %v461 = vsel %vm456, %v455, 0
        %vm463 = vcmask 1043456
        %v465 = vsel %vm463, %v438, 0
        %467 = vmatprep.subr.bf16.mxu0 0
        %468 = vmatpush1.bf16.msra.mxu0 0
        %469 = vmatprep.subr.bf16.mxu0 0
        %470 = vmatpush1.bf16.msra.mxu0 0
        %471 = vmatprep.subr.bf16.mxu0 0
        %472 = vmatpush1.bf16.msra.mxu0 0
        %473 = vmatprep.subr.bf16.mxu0 0
        %474 = vmatpush1.bf16.msra.mxu0 0
        %475 = vmatprep.subr.bf16.mxu0 0
        %476 = vmatpush1.bf16.msra.mxu0 0
        %477 = vmatprep.subr.bf16.mxu0 0
        %478 = vmatpush1.bf16.msra.mxu0 0
        %479 = vmatprep.subr.bf16.mxu0 0
        %480 = vmatpush1.bf16.msra.mxu0 0
        %481 = vmatprep.subr.bf16.mxu0 0
        %482 = vmatpush1.bf16.msra.mxu0 %v465
        %483 = vmatprep.subr.bf16.mxu0 0
        %484 = vmatpush2.bf16.msra.mxu0 0
        %485 = vmatprep.subr.bf16.mxu0 0
        %486 = vmatpush2.bf16.msra.mxu0 0
        %487 = vmatprep.subr.bf16.mxu0 0
        %488 = vmatpush2.bf16.msra.mxu0 0
        %489 = vmatprep.subr.bf16.mxu0 0
        %490 = vmatpush2.bf16.msra.mxu0 0
        %491 = vmatprep.subr.bf16.mxu0 0
        %492 = vmatpush2.bf16.msra.mxu0 0
        %493 = vmatprep.subr.bf16.mxu0 0
        %494 = vmatpush2.bf16.msra.mxu0 0
        %495 = vmatprep.subr.bf16.mxu0 0
        %496 = vmatpush2.bf16.msra.mxu0 0
        %497 = vmatprep.subr.bf16.mxu0 0
        %498 = vmatpush2.bf16.msra.mxu0 0
        %499 = vmatprep.mubr.bf16.mxu0 0
        %500 = vmatmul.mubr.bf16.gmra.mxu0 %v458
        %v501 = vpop.f32.mrf.mxu0
        %v502 = vadd.f32 %v444, %v501
        %v503 = vpop.f32.mrf.mxu0
        %v504 = vpop.f32.mrf.mxu0
        %v505 = vadd.f32 %v444, %v504
        %v506 = vpop.f32.mrf.mxu0
        %507 = vmatprep.mubr.bf16.mxu0 0
        %508 = vmatmul.mubr.bf16.gmra.mxu0 %v461
        %v509 = vpop.f32.mrf.mxu0
        %v510 = vadd.f32 %v444, %v509
        %v511 = vpop.f32.mrf.mxu0
        %v512 = vpop.f32.mrf.mxu0
        %v513 = vadd.f32 %v444, %v512
        %v514 = vpop.f32.mrf.mxu0
        %515 = vdwg.mxu0
        %v516 = vpack.c.bf16 %v505, %v502
        %v517 = vpack.c.bf16 %v513, %v510
        %v518 = vld [vmem:[#allocation2] sm:$0xf]
        %v519 = vld [vmem:[#allocation2 + $0x4] sm:$0xf]
        %v520 = vld [vmem:[#allocation2 + $0x8] sm:$0xf]
        %v521 = vld [vmem:[#allocation2 + $0xc] sm:$0xf]
        %v522 = vld [vmem:[#allocation2 + $0x10] sm:$0xf]
        %v523 = vld [vmem:[#allocation2 + $0x14] sm:$0xf]
        %v524 = vld [vmem:[#allocation2 + $0x18] sm:$0xf]
        %v525 = vld [vmem:[#allocation2 + $0x1c] sm:$0xf]
        %v526 = vld [vmem:[#allocation2 + $0x20] sm:$0xf]
        %v527 = vld [vmem:[#allocation2 + $0x24] sm:$0xf]
        %v528 = vld [vmem:[#allocation2 + $0x28] sm:$0xf]
        %v529 = vld [vmem:[#allocation2 + $0x2c] sm:$0xf]
        %v530 = vld [vmem:[#allocation2 + $0x30] sm:$0xf]
        %v531 = vld [vmem:[#allocation2 + $0x34] sm:$0xf]
        %v532 = vld [vmem:[#allocation2 + $0x38] sm:$0xf]
        %v533 = vld [vmem:[#allocation2 + $0x3c] sm:$0xf]
        %v550 = vunpack.c.l.b16 %v518
        %v551 = vunpack.c.l.b16 %v519
        %v552 = vunpack.c.l.b16 %v520
        %v553 = vunpack.c.l.b16 %v521
        %v554 = vunpack.c.l.b16 %v522
        %v555 = vunpack.c.l.b16 %v523
        %v556 = vunpack.c.l.b16 %v524
        %v557 = vunpack.c.l.b16 %v525
        %v558 = vunpack.c.l.b16 %v526
        %v559 = vunpack.c.l.b16 %v527
        %v560 = vunpack.c.l.b16 %v528
        %v561 = vunpack.c.l.b16 %v529
        %v562 = vunpack.c.l.b16 %v530
        %v563 = vunpack.c.l.b16 %v531
        %v564 = vunpack.c.l.b16 %v532
        %v565 = vunpack.c.l.b16 %v533
        %v566 = vpack.c.b16 %v551, %v550
        %v567 = vpack.c.b16 %v553, %v552
        %v568 = vpack.c.b16 %v555, %v554
        %v569 = vpack.c.b16 %v557, %v556
        %v570 = vpack.c.b16 %v559, %v558
        %v571 = vpack.c.b16 %v561, %v560
        %v572 = vpack.c.b16 %v563, %v562
        %v573 = vpack.c.b16 %v565, %v564
        %582 = vmatprep.subr.bf16.mxu0 0
        %583 = vmatpush1.bf16.msra.mxu0 %v573
        %584 = vmatprep.subr.bf16.mxu0 0
        %585 = vmatpush1.bf16.msra.mxu0 %v572
        %586 = vmatprep.subr.bf16.mxu0 0
        %587 = vmatpush1.bf16.msra.mxu0 %v571
        %588 = vmatprep.subr.bf16.mxu0 0
        %589 = vmatpush1.bf16.msra.mxu0 %v570
        %590 = vmatprep.subr.bf16.mxu0 0
        %591 = vmatpush1.bf16.msra.mxu0 %v569
        %592 = vmatprep.subr.bf16.mxu0 0
        %593 = vmatpush1.bf16.msra.mxu0 %v568
        %594 = vmatprep.subr.bf16.mxu0 0
        %595 = vmatpush1.bf16.msra.mxu0 %v567
        %596 = vmatprep.subr.bf16.mxu0 0
        %597 = vmatpush1.bf16.msra.mxu0 %v566
        %598 = vmatprep.subr.bf16.mxu0 0
        %599 = vmatpush2.bf16.msra.mxu0 0
        %600 = vmatprep.subr.bf16.mxu0 0
        %601 = vmatpush2.bf16.msra.mxu0 0
        %602 = vmatprep.subr.bf16.mxu0 0
        %603 = vmatpush2.bf16.msra.mxu0 0
        %604 = vmatprep.subr.bf16.mxu0 0
        %605 = vmatpush2.bf16.msra.mxu0 0
        %606 = vmatprep.subr.bf16.mxu0 0
        %607 = vmatpush2.bf16.msra.mxu0 0
        %608 = vmatprep.subr.bf16.mxu0 0
        %609 = vmatpush2.bf16.msra.mxu0 0
        %610 = vmatprep.subr.bf16.mxu0 0
        %611 = vmatpush2.bf16.msra.mxu0 0
        %612 = vmatprep.subr.bf16.mxu0 0
        %613 = vmatpush2.bf16.msra.mxu0 0
        %614 = vmatprep.mubr.bf16.mxu0 0
        %615 = vmatmul.mubr.bf16.gmra.mxu0 %v516
        %v616 = vpop.f32.mrf.mxu0
        %v617 = vadd.f32 0.0, %v616
        %v618 = vpop.f32.mrf.mxu0
        %v619 = vpop.f32.mrf.mxu0
        %v620 = vadd.f32 0.0, %v619
        %v621 = vpop.f32.mrf.mxu0
        %622 = vmatprep.mubr.bf16.mxu0 0
        %623 = vmatmul.mubr.bf16.gmra.mxu0 %v517
        %v624 = vpop.f32.mrf.mxu0
        %v625 = vadd.f32 0.0, %v624
        %v626 = vpop.f32.mrf.mxu0
        %v627 = vpop.f32.mrf.mxu0
        %v628 = vadd.f32 0.0, %v627
        %v629 = vpop.f32.mrf.mxu0
        %630 = vdwg.mxu0
        %631 = vrot.lane.b32.xlu0 %v617, 96
        %v632 = vpop.permute.xlu0 %631
        %633 = vrot.lane.b32.xlu0 %v620, 96
        %v634 = vpop.permute.xlu0 %633
        %635 = vrot.lane.b32.xlu0 %v625, 96
        %v636 = vpop.permute.xlu0 %635
        %637 = vrot.lane.b32.xlu0 %v628, 96
        %v638 = vpop.permute.xlu0 %637
        %v639 = vrot.slane %v617, 7
        %v640 = vrot.slane %v620, 7
        %v641 = vrot.slane %v625, 7
        %v642 = vrot.slane %v628, 7
        %vm643 = vcmp.lt.s32.totalorder %v382, 1
        %v644 = vsel %vm643, %v641, %v642
        %v645 = vsel %vm643, %v640, %v641
        %v646 = vsel %vm643, %v639, %v640
        %v647 = vsel %vm643, %v642, %v639
        %vm648 = vcmp.ge.s32.totalorder %v430, 1
        %vm649 = vcmp.ge.s32.totalorder %v431, 1
        %vm650 = vcmp.ge.s32.totalorder %v432, 1
        %vm651 = vcmp.ge.s32.totalorder %v433, 1
        %v652 = vsel %vm648, 1, 0
        %v653 = vsel %vm649, 1, 0
        %v654 = vsel %vm650, 1, 0
        %v655 = vsel %vm651, 1, 0
        %vm656 = vcmp.eq.s32.totalorder %v652, 1
        %vm657 = vcmp.eq.s32.totalorder %v653, 1
        %vm658 = vcmp.eq.s32.totalorder %v654, 1
        %vm659 = vcmp.eq.s32.totalorder %v655, 1
        %v660 = vsel %vm656, %v647, 0.0
        %v661 = vsel %vm657, %v646, 0.0
        %v662 = vsel %vm658, %v645, 0.0
        %v663 = vsel %vm659, %v644, 0.0
        %v664 = vadd.f32 %v632, %v660
        %v665 = vadd.f32 %v634, %v661
        %v666 = vadd.f32 %v636, %v662
        %v667 = vadd.f32 %v638, %v663
        %668 = vrot.lane.b32.xlu0 %v617, 64
        %v669 = vpop.permute.xlu0 %668
        %670 = vrot.lane.b32.xlu0 %v620, 64
        %v671 = vpop.permute.xlu0 %670
        %672 = vrot.lane.b32.xlu0 %v625, 64
        %v673 = vpop.permute.xlu0 %672
        %674 = vrot.lane.b32.xlu0 %v628, 64
        %v675 = vpop.permute.xlu0 %674
        %v676 = vrot.slane %v669, 1
        %v677 = vrot.slane %v671, 1
        %v678 = vrot.slane %v673, 1
        %v679 = vrot.slane %v675, 1
        %vm680 = vcmp.lt.s32.totalorder %v382, 7
        %v681 = vsel %vm680, %v678, %v679
        %v682 = vsel %vm680, %v677, %v678
        %v683 = vsel %vm680, %v676, %v677
        %v684 = vsel %vm680, %v679, %v676
        %vm685 = vcmp.lt.s32.totalorder %v430, 15
        %vm686 = vcmp.lt.s32.totalorder %v431, 15
        %vm687 = vcmp.lt.s32.totalorder %v432, 15
        %vm688 = vcmp.lt.s32.totalorder %v433, 15
        %v689 = vsel %vm685, 1, 0
        %v690 = vsel %vm686, 1, 0
        %v691 = vsel %vm687, 1, 0
        %v692 = vsel %vm688, 1, 0
        %vm693 = vcmp.eq.s32.totalorder %v689, 1
        %vm694 = vcmp.eq.s32.totalorder %v690, 1
        %vm695 = vcmp.eq.s32.totalorder %v691, 1
        %vm696 = vcmp.eq.s32.totalorder %v692, 1
        %v697 = vsel %vm693, %v683, 0.0
        %v698 = vsel %vm694, %v682, 0.0
        %v699 = vsel %vm695, %v681, 0.0
        %v700 = vsel %vm696, %v684, 0.0
        %v701 = vadd.f32 %v664, %v697
        %v702 = vadd.f32 %v665, %v698
        %v703 = vadd.f32 %v666, %v699
        %v704 = vadd.f32 %v667, %v700
        %v705 = vld [vmem:[%s4] sm:$0x1]
        %v707 = vlaneseq
        %v708 = vshrl.u32 %v707, 7
        %v709 = vsub.s32 0, %v708
        %v710 = vrot.slane %v705, %v709
        %v712 = vadd.f32 %v701, %v710
        %v713 = vadd.f32 %v702, %v710
        %v714 = vadd.f32 %v703, %v710
        %v715 = vadd.f32 %v704, %v710
        %v716 = vmax.f32 %v712, 0.0
        %v717 = vmax.f32 %v713, 0.0
        %v718 = vmax.f32 %v714, 0.0
        %v719 = vmax.f32 %v715, 0.0
        %v720 = vpack.c.bf16 %v717, %v716
        %v721 = vpack.c.bf16 %v719, %v718
        %v722 = vld [vmem:[#allocation4] sm:$0xf]
        %v723 = vld [vmem:[#allocation4 + $0x4] sm:$0xf]
        %v724 = vld [vmem:[#allocation4 + $0x8] sm:$0xf]
        %v725 = vld [vmem:[#allocation4 + $0xc] sm:$0xf]
        %v726 = vld [vmem:[#allocation4 + $0x10] sm:$0xf]
        %v727 = vld [vmem:[#allocation4 + $0x14] sm:$0xf]
        %v728 = vld [vmem:[#allocation4 + $0x18] sm:$0xf]
        %v729 = vld [vmem:[#allocation4 + $0x1c] sm:$0xf]
        %v730 = vld [vmem:[#allocation4 + $0x20] sm:$0xf]
        %v731 = vld [vmem:[#allocation4 + $0x24] sm:$0xf]
        %v732 = vld [vmem:[#allocation4 + $0x28] sm:$0xf]
        %v733 = vld [vmem:[#allocation4 + $0x2c] sm:$0xf]
        %v734 = vld [vmem:[#allocation4 + $0x30] sm:$0xf]
        %v735 = vld [vmem:[#allocation4 + $0x34] sm:$0xf]
        %v736 = vld [vmem:[#allocation4 + $0x38] sm:$0xf]
        %v737 = vld [vmem:[#allocation4 + $0x3c] sm:$0xf]
        %v738 = vld [vmem:[%s6] sm:$0x1]
        %v740 = vlaneseq
        %v741 = vshrl.u32 %v740, 7
        %v742 = vsub.s32 0, %v741
        %v743 = vrot.slane %v738, %v742
        %v761 = vunpack.c.l.b16 %v722
        %v762 = vunpack.c.l.b16 %v723
        %v763 = vunpack.c.l.b16 %v724
        %v764 = vunpack.c.l.b16 %v725
        %v765 = vunpack.c.l.b16 %v726
        %v766 = vunpack.c.l.b16 %v727
        %v767 = vunpack.c.l.b16 %v728
        %v768 = vunpack.c.l.b16 %v729
        %v769 = vunpack.c.l.b16 %v730
        %v770 = vunpack.c.l.b16 %v731
        %v771 = vunpack.c.l.b16 %v732
        %v772 = vunpack.c.l.b16 %v733
        %v773 = vunpack.c.l.b16 %v734
        %v774 = vunpack.c.l.b16 %v735
        %v775 = vunpack.c.l.b16 %v736
        %v776 = vunpack.c.l.b16 %v737
        %v777 = vpack.c.b16 %v762, %v761
        %v778 = vpack.c.b16 %v764, %v763
        %v779 = vpack.c.b16 %v766, %v765
        %v780 = vpack.c.b16 %v768, %v767
        %v781 = vpack.c.b16 %v770, %v769
        %v782 = vpack.c.b16 %v772, %v771
        %v783 = vpack.c.b16 %v774, %v773
        %v784 = vpack.c.b16 %v776, %v775
        %793 = vmatprep.subr.bf16.mxu0 0
        %794 = vmatpush1.bf16.msra.mxu0 %v784
        %795 = vmatprep.subr.bf16.mxu0 0
        %796 = vmatpush1.bf16.msra.mxu0 %v783
        %797 = vmatprep.subr.bf16.mxu0 0
        %798 = vmatpush1.bf16.msra.mxu0 %v782
        %799 = vmatprep.subr.bf16.mxu0 0
        %800 = vmatpush1.bf16.msra.mxu0 %v781
        %801 = vmatprep.subr.bf16.mxu0 0
        %802 = vmatpush1.bf16.msra.mxu0 %v780
        %803 = vmatprep.subr.bf16.mxu0 0
        %804 = vmatpush1.bf16.msra.mxu0 %v779
        %805 = vmatprep.subr.bf16.mxu0 0
        %806 = vmatpush1.bf16.msra.mxu0 %v778
        %807 = vmatprep.subr.bf16.mxu0 0
        %808 = vmatpush1.bf16.msra.mxu0 %v777
        %809 = vmatprep.subr.bf16.mxu0 0
        %810 = vmatpush2.bf16.msra.mxu0 0
        %811 = vmatprep.subr.bf16.mxu0 0
        %812 = vmatpush2.bf16.msra.mxu0 0
        %813 = vmatprep.subr.bf16.mxu0 0
        %814 = vmatpush2.bf16.msra.mxu0 0
        %815 = vmatprep.subr.bf16.mxu0 0
        %816 = vmatpush2.bf16.msra.mxu0 0
        %817 = vmatprep.subr.bf16.mxu0 0
        %818 = vmatpush2.bf16.msra.mxu0 0
        %819 = vmatprep.subr.bf16.mxu0 0
        %820 = vmatpush2.bf16.msra.mxu0 0
        %821 = vmatprep.subr.bf16.mxu0 0
        %822 = vmatpush2.bf16.msra.mxu0 0
        %823 = vmatprep.subr.bf16.mxu0 0
        %824 = vmatpush2.bf16.msra.mxu0 0
        %825 = vmatprep.mubr.bf16.mxu0 0
        %826 = vmatmul.mubr.bf16.gmra.mxu0 %v720
        %v827 = vpop.f32.mrf.mxu0
        %v828 = vadd.f32 %v743, %v827
        %v829 = vpop.f32.mrf.mxu0
        %v830 = vpop.f32.mrf.mxu0
        %v831 = vadd.f32 %v743, %v830
        %v832 = vpop.f32.mrf.mxu0
        %833 = vmatprep.mubr.bf16.mxu0 0
        %834 = vmatmul.mubr.bf16.gmra.mxu0 %v721
        %v835 = vpop.f32.mrf.mxu0
        %v836 = vadd.f32 %v743, %v835
        %v837 = vpop.f32.mrf.mxu0
        %v838 = vpop.f32.mrf.mxu0
        %v839 = vadd.f32 %v743, %v838
        %v840 = vpop.f32.mrf.mxu0
        %841 = vdwg.mxu0
        %v842 = vadd.f32 %v502, %v828
        %v843 = vadd.f32 %v505, %v831
        %v844 = vadd.f32 %v510, %v836
        %v845 = vadd.f32 %v513, %v839
        %v846 = vpack.c.bf16 %v843, %v842
        %v847 = vpack.c.bf16 %v845, %v844
        %s848 = scalar_lea.vmem [#allocation2], 64
        %v849 = vld [vmem:[%s848] sm:$0xf]
        %v850 = vld [vmem:[%s848 + $0x4] sm:$0xf]
        %v851 = vld [vmem:[%s848 + $0x8] sm:$0xf]
        %v852 = vld [vmem:[%s848 + $0xc] sm:$0xf]
        %v853 = vld [vmem:[%s848 + $0x10] sm:$0xf]
        %v854 = vld [vmem:[%s848 + $0x14] sm:$0xf]
        %v855 = vld [vmem:[%s848 + $0x18] sm:$0xf]
        %v856 = vld [vmem:[%s848 + $0x1c] sm:$0xf]
        %v857 = vld [vmem:[%s848 + $0x20] sm:$0xf]
        %v858 = vld [vmem:[%s848 + $0x24] sm:$0xf]
        %v859 = vld [vmem:[%s848 + $0x28] sm:$0xf]
        %v860 = vld [vmem:[%s848 + $0x2c] sm:$0xf]
        %v861 = vld [vmem:[%s848 + $0x30] sm:$0xf]
        %v862 = vld [vmem:[%s848 + $0x34] sm:$0xf]
        %v863 = vld [vmem:[%s848 + $0x38] sm:$0xf]
        %v864 = vld [vmem:[%s848 + $0x3c] sm:$0xf]
        %v881 = vunpack.c.l.b16 %v849
        %v882 = vunpack.c.l.b16 %v850
        %v883 = vunpack.c.l.b16 %v851
        %v884 = vunpack.c.l.b16 %v852
        %v885 = vunpack.c.l.b16 %v853
        %v886 = vunpack.c.l.b16 %v854
        %v887 = vunpack.c.l.b16 %v855
        %v888 = vunpack.c.l.b16 %v856
        %v889 = vunpack.c.l.b16 %v857
        %v890 = vunpack.c.l.b16 %v858
        %v891 = vunpack.c.l.b16 %v859
        %v892 = vunpack.c.l.b16 %v860
        %v893 = vunpack.c.l.b16 %v861
        %v894 = vunpack.c.l.b16 %v862
        %v895 = vunpack.c.l.b16 %v863
        %v896 = vunpack.c.l.b16 %v864
        %v897 = vpack.c.b16 %v882, %v881
        %v898 = vpack.c.b16 %v884, %v883
        %v899 = vpack.c.b16 %v886, %v885
        %v900 = vpack.c.b16 %v888, %v887
        %v901 = vpack.c.b16 %v890, %v889
        %v902 = vpack.c.b16 %v892, %v891
        %v903 = vpack.c.b16 %v894, %v893
        %v904 = vpack.c.b16 %v896, %v895
        %913 = vmatprep.subr.bf16.mxu0 0
        %914 = vmatpush1.bf16.msra.mxu0 %v904
        %915 = vmatprep.subr.bf16.mxu0 0
        %916 = vmatpush1.bf16.msra.mxu0 %v903
        %917 = vmatprep.subr.bf16.mxu0 0
        %918 = vmatpush1.bf16.msra.mxu0 %v902
        %919 = vmatprep.subr.bf16.mxu0 0
        %920 = vmatpush1.bf16.msra.mxu0 %v901
        %921 = vmatprep.subr.bf16.mxu0 0
        %922 = vmatpush1.bf16.msra.mxu0 %v900
        %923 = vmatprep.subr.bf16.mxu0 0
        %924 = vmatpush1.bf16.msra.mxu0 %v899
        %925 = vmatprep.subr.bf16.mxu0 0
        %926 = vmatpush1.bf16.msra.mxu0 %v898
        %927 = vmatprep.subr.bf16.mxu0 0
        %928 = vmatpush1.bf16.msra.mxu0 %v897
        %929 = vmatprep.subr.bf16.mxu0 0
        %930 = vmatpush2.bf16.msra.mxu0 0
        %931 = vmatprep.subr.bf16.mxu0 0
        %932 = vmatpush2.bf16.msra.mxu0 0
        %933 = vmatprep.subr.bf16.mxu0 0
        %934 = vmatpush2.bf16.msra.mxu0 0
        %935 = vmatprep.subr.bf16.mxu0 0
        %936 = vmatpush2.bf16.msra.mxu0 0
        %937 = vmatprep.subr.bf16.mxu0 0
        %938 = vmatpush2.bf16.msra.mxu0 0
        %939 = vmatprep.subr.bf16.mxu0 0
        %940 = vmatpush2.bf16.msra.mxu0 0
        %941 = vmatprep.subr.bf16.mxu0 0
        %942 = vmatpush2.bf16.msra.mxu0 0
        %943 = vmatprep.subr.bf16.mxu0 0
        %944 = vmatpush2.bf16.msra.mxu0 0
        %945 = vmatprep.mubr.bf16.mxu0 0
        %946 = vmatmul.mubr.bf16.gmra.mxu0 %v846
        %v947 = vpop.f32.mrf.mxu0
        %v948 = vadd.f32 0.0, %v947
        %v949 = vpop.f32.mrf.mxu0
        %v950 = vpop.f32.mrf.mxu0
        %v951 = vadd.f32 0.0, %v950
        %v952 = vpop.f32.mrf.mxu0
        %953 = vmatprep.mubr.bf16.mxu0 0
        %954 = vmatmul.mubr.bf16.gmra.mxu0 %v847
        %v955 = vpop.f32.mrf.mxu0
        %v956 = vadd.f32 0.0, %v955
        %v957 = vpop.f32.mrf.mxu0
        %v958 = vpop.f32.mrf.mxu0
        %v959 = vadd.f32 0.0, %v958
        %v960 = vpop.f32.mrf.mxu0
        %961 = vdwg.mxu0
        %962 = vrot.lane.b32.xlu0 %v948, 96
        %v963 = vpop.permute.xlu0 %962
        %964 = vrot.lane.b32.xlu0 %v951, 96
        %v965 = vpop.permute.xlu0 %964
        %966 = vrot.lane.b32.xlu0 %v956, 96
        %v967 = vpop.permute.xlu0 %966
        %968 = vrot.lane.b32.xlu0 %v959, 96
        %v969 = vpop.permute.xlu0 %968
        %v970 = vrot.slane %v948, 6
        %v971 = vrot.slane %v951, 6
        %v972 = vrot.slane %v956, 6
        %v973 = vrot.slane %v959, 6
        %vm974 = vcmp.lt.s32.totalorder %v382, 2
        %v975 = vsel %vm974, %v972, %v973
        %v976 = vsel %vm974, %v971, %v972
        %v977 = vsel %vm974, %v970, %v971
        %v978 = vsel %vm974, %v973, %v970
        %vm979 = vcmp.ge.s32.totalorder %v430, 2
        %vm980 = vcmp.ge.s32.totalorder %v431, 2
        %vm981 = vcmp.ge.s32.totalorder %v432, 2
        %vm982 = vcmp.ge.s32.totalorder %v433, 2
        %v983 = vsel %vm979, 1, 0
        %v984 = vsel %vm980, 1, 0
        %v985 = vsel %vm981, 1, 0
        %v986 = vsel %vm982, 1, 0
        %vm987 = vcmp.eq.s32.totalorder %v983, 1
        %vm988 = vcmp.eq.s32.totalorder %v984, 1
        %vm989 = vcmp.eq.s32.totalorder %v985, 1
        %vm990 = vcmp.eq.s32.totalorder %v986, 1
        %v991 = vsel %vm987, %v978, 0.0
        %v992 = vsel %vm988, %v977, 0.0
        %v993 = vsel %vm989, %v976, 0.0
        %v994 = vsel %vm990, %v975, 0.0
        %v995 = vadd.f32 %v963, %v991
        %v996 = vadd.f32 %v965, %v992
        %v997 = vadd.f32 %v967, %v993
        %v998 = vadd.f32 %v969, %v994
        %999 = vrot.lane.b32.xlu0 %v948, 64
        %v1000 = vpop.permute.xlu0 %999
        %1001 = vrot.lane.b32.xlu0 %v951, 64
        %v1002 = vpop.permute.xlu0 %1001
        %1003 = vrot.lane.b32.xlu0 %v956, 64
        %v1004 = vpop.permute.xlu0 %1003
        %1005 = vrot.lane.b32.xlu0 %v959, 64
        %v1006 = vpop.permute.xlu0 %1005
        %v1007 = vrot.slane %v1000, 2
        %v1008 = vrot.slane %v1002, 2
        %v1009 = vrot.slane %v1004, 2
        %v1010 = vrot.slane %v1006, 2
        %vm1011 = vcmp.lt.s32.totalorder %v382, 6
        %v1012 = vsel %vm1011, %v1009, %v1010
        %v1013 = vsel %vm1011, %v1008, %v1009
        %v1014 = vsel %vm1011, %v1007, %v1008
        %v1015 = vsel %vm1011, %v1010, %v1007
        %vm1016 = vcmp.lt.s32.totalorder %v430, 14
        %vm1017 = vcmp.lt.s32.totalorder %v431, 14
        %vm1018 = vcmp.lt.s32.totalorder %v432, 14
        %vm1019 = vcmp.lt.s32.totalorder %v433, 14
        %v1020 = vsel %vm1016, 1, 0
        %v1021 = vsel %vm1017, 1, 0
        %v1022 = vsel %vm1018, 1, 0
        %v1023 = vsel %vm1019, 1, 0
        %vm1024 = vcmp.eq.s32.totalorder %v1020, 1
        %vm1025 = vcmp.eq.s32.totalorder %v1021, 1
        %vm1026 = vcmp.eq.s32.totalorder %v1022, 1
        %vm1027 = vcmp.eq.s32.totalorder %v1023, 1
        %v1028 = vsel %vm1024, %v1014, 0.0
        %v1029 = vsel %vm1025, %v1013, 0.0
        %v1030 = vsel %vm1026, %v1012, 0.0
        %v1031 = vsel %vm1027, %v1015, 0.0
        %v1032 = vadd.f32 %v995, %v1028
        %v1033 = vadd.f32 %v996, %v1029
        %v1034 = vadd.f32 %v997, %v1030
        %v1035 = vadd.f32 %v998, %v1031
        %s1036 = scalar_lea.vmem %s4, 1
        %v1037 = vld [vmem:[%s1036] sm:$0x1]
        %v1039 = vlaneseq
        %v1040 = vshrl.u32 %v1039, 7
        %v1041 = vsub.s32 0, %v1040
        %v1042 = vrot.slane %v1037, %v1041
        %v1044 = vadd.f32 %v1032, %v1042
        %v1045 = vadd.f32 %v1033, %v1042
        %v1046 = vadd.f32 %v1034, %v1042
        %v1047 = vadd.f32 %v1035, %v1042
        %v1048 = vmax.f32 %v1044, 0.0
        %v1049 = vmax.f32 %v1045, 0.0
        %v1050 = vmax.f32 %v1046, 0.0
        %v1051 = vmax.f32 %v1047, 0.0
        %v1052 = vpack.c.bf16 %v1049, %v1048
        %v1053 = vpack.c.bf16 %v1051, %v1050
        %s1054 = scalar_lea.vmem [#allocation4], 64
        %v1055 = vld [vmem:[%s1054] sm:$0xf]
        %v1056 = vld [vmem:[%s1054 + $0x4] sm:$0xf]
        %v1057 = vld [vmem:[%s1054 + $0x8] sm:$0xf]
        %v1058 = vld [vmem:[%s1054 + $0xc] sm:$0xf]
        %v1059 = vld [vmem:[%s1054 + $0x10] sm:$0xf]
        %v1060 = vld [vmem:[%s1054 + $0x14] sm:$0xf]
        %v1061 = vld [vmem:[%s1054 + $0x18] sm:$0xf]
        %v1062 = vld [vmem:[%s1054 + $0x1c] sm:$0xf]
        %v1063 = vld [vmem:[%s1054 + $0x20] sm:$0xf]
        %v1064 = vld [vmem:[%s1054 + $0x24] sm:$0xf]
        %v1065 = vld [vmem:[%s1054 + $0x28] sm:$0xf]
        %v1066 = vld [vmem:[%s1054 + $0x2c] sm:$0xf]
        %v1067 = vld [vmem:[%s1054 + $0x30] sm:$0xf]
        %v1068 = vld [vmem:[%s1054 + $0x34] sm:$0xf]
        %v1069 = vld [vmem:[%s1054 + $0x38] sm:$0xf]
        %v1070 = vld [vmem:[%s1054 + $0x3c] sm:$0xf]
        %s1071 = scalar_lea.vmem %s6, 1
        %v1072 = vld [vmem:[%s1071] sm:$0x1]
        %v1074 = vlaneseq
        %v1075 = vshrl.u32 %v1074, 7
        %v1076 = vsub.s32 0, %v1075
        %v1077 = vrot.slane %v1072, %v1076
        %v1095 = vunpack.c.l.b16 %v1055
        %v1096 = vunpack.c.l.b16 %v1056
        %v1097 = vunpack.c.l.b16 %v1057
        %v1098 = vunpack.c.l.b16 %v1058
        %v1099 = vunpack.c.l.b16 %v1059
        %v1100 = vunpack.c.l.b16 %v1060
        %v1101 = vunpack.c.l.b16 %v1061
        %v1102 = vunpack.c.l.b16 %v1062
        %v1103 = vunpack.c.l.b16 %v1063
        %v1104 = vunpack.c.l.b16 %v1064
        %v1105 = vunpack.c.l.b16 %v1065
        %v1106 = vunpack.c.l.b16 %v1066
        %v1107 = vunpack.c.l.b16 %v1067
        %v1108 = vunpack.c.l.b16 %v1068
        %v1109 = vunpack.c.l.b16 %v1069
        %v1110 = vunpack.c.l.b16 %v1070
        %v1111 = vpack.c.b16 %v1096, %v1095
        %v1112 = vpack.c.b16 %v1098, %v1097
        %v1113 = vpack.c.b16 %v1100, %v1099
        %v1114 = vpack.c.b16 %v1102, %v1101
        %v1115 = vpack.c.b16 %v1104, %v1103
        %v1116 = vpack.c.b16 %v1106, %v1105
        %v1117 = vpack.c.b16 %v1108, %v1107
        %v1118 = vpack.c.b16 %v1110, %v1109
        %1127 = vmatprep.subr.bf16.mxu0 0
        %1128 = vmatpush1.bf16.msra.mxu0 %v1118
        %1129 = vmatprep.subr.bf16.mxu0 0
        %1130 = vmatpush1.bf16.msra.mxu0 %v1117
        %1131 = vmatprep.subr.bf16.mxu0 0
        %1132 = vmatpush1.bf16.msra.mxu0 %v1116
        %1133 = vmatprep.subr.bf16.mxu0 0
        %1134 = vmatpush1.bf16.msra.mxu0 %v1115
        %1135 = vmatprep.subr.bf16.mxu0 0
        %1136 = vmatpush1.bf16.msra.mxu0 %v1114
        %1137 = vmatprep.subr.bf16.mxu0 0
        %1138 = vmatpush1.bf16.msra.mxu0 %v1113
        %1139 = vmatprep.subr.bf16.mxu0 0
        %1140 = vmatpush1.bf16.msra.mxu0 %v1112
        %1141 = vmatprep.subr.bf16.mxu0 0
        %1142 = vmatpush1.bf16.msra.mxu0 %v1111
        %1143 = vmatprep.subr.bf16.mxu0 0
        %1144 = vmatpush2.bf16.msra.mxu0 0
        %1145 = vmatprep.subr.bf16.mxu0 0
        %1146 = vmatpush2.bf16.msra.mxu0 0
        %1147 = vmatprep.subr.bf16.mxu0 0
        %1148 = vmatpush2.bf16.msra.mxu0 0
        %1149 = vmatprep.subr.bf16.mxu0 0
        %1150 = vmatpush2.bf16.msra.mxu0 0
        %1151 = vmatprep.subr.bf16.mxu0 0
        %1152 = vmatpush2.bf16.msra.mxu0 0
        %1153 = vmatprep.subr.bf16.mxu0 0
        %1154 = vmatpush2.bf16.msra.mxu0 0
        %1155 = vmatprep.subr.bf16.mxu0 0
        %1156 = vmatpush2.bf16.msra.mxu0 0
        %1157 = vmatprep.subr.bf16.mxu0 0
        %1158 = vmatpush2.bf16.msra.mxu0 0
        %1159 = vmatprep.mubr.bf16.mxu0 0
        %1160 = vmatmul.mubr.bf16.gmra.mxu0 %v1052
        %v1161 = vpop.f32.mrf.mxu0
        %v1162 = vadd.f32 %v1077, %v1161
        %v1163 = vpop.f32.mrf.mxu0
        %v1164 = vpop.f32.mrf.mxu0
        %v1165 = vadd.f32 %v1077, %v1164
        %v1166 = vpop.f32.mrf.mxu0
        %1167 = vmatprep.mubr.bf16.mxu0 0
        %1168 = vmatmul.mubr.bf16.gmra.mxu0 %v1053
        %v1169 = vpop.f32.mrf.mxu0
        %v1170 = vadd.f32 %v1077, %v1169
        %v1171 = vpop.f32.mrf.mxu0
        %v1172 = vpop.f32.mrf.mxu0
        %v1173 = vadd.f32 %v1077, %v1172
        %v1174 = vpop.f32.mrf.mxu0
        %1175 = vdwg.mxu0
        %v1176 = vadd.f32 %v842, %v1162
        %v1177 = vadd.f32 %v843, %v1165
        %v1178 = vadd.f32 %v844, %v1170
        %v1179 = vadd.f32 %v845, %v1173
        %v1180 = vpack.c.bf16 %v1177, %v1176
        %v1181 = vpack.c.bf16 %v1179, %v1178
        %s1182 = scalar_lea.vmem [#allocation2], 128
        %v1183 = vld [vmem:[%s1182] sm:$0xf]
        %v1184 = vld [vmem:[%s1182 + $0x4] sm:$0xf]
        %v1185 = vld [vmem:[%s1182 + $0x8] sm:$0xf]
        %v1186 = vld [vmem:[%s1182 + $0xc] sm:$0xf]
        %v1187 = vld [vmem:[%s1182 + $0x10] sm:$0xf]
        %v1188 = vld [vmem:[%s1182 + $0x14] sm:$0xf]
        %v1189 = vld [vmem:[%s1182 + $0x18] sm:$0xf]
        %v1190 = vld [vmem:[%s1182 + $0x1c] sm:$0xf]
        %v1191 = vld [vmem:[%s1182 + $0x20] sm:$0xf]
        %v1192 = vld [vmem:[%s1182 + $0x24] sm:$0xf]
        %v1193 = vld [vmem:[%s1182 + $0x28] sm:$0xf]
        %v1194 = vld [vmem:[%s1182 + $0x2c] sm:$0xf]
        %v1195 = vld [vmem:[%s1182 + $0x30] sm:$0xf]
        %v1196 = vld [vmem:[%s1182 + $0x34] sm:$0xf]
        %v1197 = vld [vmem:[%s1182 + $0x38] sm:$0xf]
        %v1198 = vld [vmem:[%s1182 + $0x3c] sm:$0xf]
        %v1215 = vunpack.c.l.b16 %v1183
        %v1216 = vunpack.c.l.b16 %v1184
        %v1217 = vunpack.c.l.b16 %v1185
        %v1218 = vunpack.c.l.b16 %v1186
        %v1219 = vunpack.c.l.b16 %v1187
        %v1220 = vunpack.c.l.b16 %v1188
        %v1221 = vunpack.c.l.b16 %v1189
        %v1222 = vunpack.c.l.b16 %v1190
        %v1223 = vunpack.c.l.b16 %v1191
        %v1224 = vunpack.c.l.b16 %v1192
        %v1225 = vunpack.c.l.b16 %v1193
        %v1226 = vunpack.c.l.b16 %v1194
        %v1227 = vunpack.c.l.b16 %v1195
        %v1228 = vunpack.c.l.b16 %v1196
        %v1229 = vunpack.c.l.b16 %v1197
        %v1230 = vunpack.c.l.b16 %v1198
        %v1231 = vpack.c.b16 %v1216, %v1215
        %v1232 = vpack.c.b16 %v1218, %v1217
        %v1233 = vpack.c.b16 %v1220, %v1219
        %v1234 = vpack.c.b16 %v1222, %v1221
        %v1235 = vpack.c.b16 %v1224, %v1223
        %v1236 = vpack.c.b16 %v1226, %v1225
        %v1237 = vpack.c.b16 %v1228, %v1227
        %v1238 = vpack.c.b16 %v1230, %v1229
        %1247 = vmatprep.subr.bf16.mxu0 0
        %1248 = vmatpush1.bf16.msra.mxu0 %v1238
        %1249 = vmatprep.subr.bf16.mxu0 0
        %1250 = vmatpush1.bf16.msra.mxu0 %v1237
        %1251 = vmatprep.subr.bf16.mxu0 0
        %1252 = vmatpush1.bf16.msra.mxu0 %v1236
        %1253 = vmatprep.subr.bf16.mxu0 0
        %1254 = vmatpush1.bf16.msra.mxu0 %v1235
        %1255 = vmatprep.subr.bf16.mxu0 0
        %1256 = vmatpush1.bf16.msra.mxu0 %v1234
        %1257 = vmatprep.subr.bf16.mxu0 0
        %1258 = vmatpush1.bf16.msra.mxu0 %v1233
        %1259 = vmatprep.subr.bf16.mxu0 0
        %1260 = vmatpush1.bf16.msra.mxu0 %v1232
        %1261 = vmatprep.subr.bf16.mxu0 0
        %1262 = vmatpush1.bf16.msra.mxu0 %v1231
        %1263 = vmatprep.subr.bf16.mxu0 0
        %1264 = vmatpush2.bf16.msra.mxu0 0
        %1265 = vmatprep.subr.bf16.mxu0 0
        %1266 = vmatpush2.bf16.msra.mxu0 0
        %1267 = vmatprep.subr.bf16.mxu0 0
        %1268 = vmatpush2.bf16.msra.mxu0 0
        %1269 = vmatprep.subr.bf16.mxu0 0
        %1270 = vmatpush2.bf16.msra.mxu0 0
        %1271 = vmatprep.subr.bf16.mxu0 0
        %1272 = vmatpush2.bf16.msra.mxu0 0
        %1273 = vmatprep.subr.bf16.mxu0 0
        %1274 = vmatpush2.bf16.msra.mxu0 0
        %1275 = vmatprep.subr.bf16.mxu0 0
        %1276 = vmatpush2.bf16.msra.mxu0 0
        %1277 = vmatprep.subr.bf16.mxu0 0
        %1278 = vmatpush2.bf16.msra.mxu0 0
        %1279 = vmatprep.mubr.bf16.mxu0 0
        %1280 = vmatmul.mubr.bf16.gmra.mxu0 %v1180
        %v1281 = vpop.f32.mrf.mxu0
        %v1282 = vadd.f32 0.0, %v1281
        %v1283 = vpop.f32.mrf.mxu0
        %v1284 = vpop.f32.mrf.mxu0
        %v1285 = vadd.f32 0.0, %v1284
        %v1286 = vpop.f32.mrf.mxu0
        %1287 = vmatprep.mubr.bf16.mxu0 0
        %1288 = vmatmul.mubr.bf16.gmra.mxu0 %v1181
        %v1289 = vpop.f32.mrf.mxu0
        %v1290 = vadd.f32 0.0, %v1289
        %v1291 = vpop.f32.mrf.mxu0
        %v1292 = vpop.f32.mrf.mxu0
        %v1293 = vadd.f32 0.0, %v1292
        %v1294 = vpop.f32.mrf.mxu0
        %1295 = vdwg.mxu0
        %1296 = vrot.lane.b32.xlu0 %v1282, 96
        %v1297 = vpop.permute.xlu0 %1296
        %1298 = vrot.lane.b32.xlu0 %v1285, 96
        %v1299 = vpop.permute.xlu0 %1298
        %1300 = vrot.lane.b32.xlu0 %v1290, 96
        %v1301 = vpop.permute.xlu0 %1300
        %1302 = vrot.lane.b32.xlu0 %v1293, 96
        %v1303 = vpop.permute.xlu0 %1302
        %v1304 = vrot.slane %v1282, 4
        %v1305 = vrot.slane %v1285, 4
        %v1306 = vrot.slane %v1290, 4
        %v1307 = vrot.slane %v1293, 4
        %vm1308 = vcmp.lt.s32.totalorder %v382, 4
        %v1309 = vsel %vm1308, %v1306, %v1307
        %v1310 = vsel %vm1308, %v1305, %v1306
        %v1311 = vsel %vm1308, %v1304, %v1305
        %v1312 = vsel %vm1308, %v1307, %v1304
        %vm1313 = vcmp.ge.s32.totalorder %v430, 4
        %vm1314 = vcmp.ge.s32.totalorder %v431, 4
        %vm1315 = vcmp.ge.s32.totalorder %v432, 4
        %vm1316 = vcmp.ge.s32.totalorder %v433, 4
        %v1317 = vsel %vm1313, 1, 0
        %v1318 = vsel %vm1314, 1, 0
        %v1319 = vsel %vm1315, 1, 0
        %v1320 = vsel %vm1316, 1, 0
        %vm1321 = vcmp.eq.s32.totalorder %v1317, 1
        %vm1322 = vcmp.eq.s32.totalorder %v1318, 1
        %vm1323 = vcmp.eq.s32.totalorder %v1319, 1
        %vm1324 = vcmp.eq.s32.totalorder %v1320, 1
        %v1325 = vsel %vm1321, %v1312, 0.0
        %v1326 = vsel %vm1322, %v1311, 0.0
        %v1327 = vsel %vm1323, %v1310, 0.0
        %v1328 = vsel %vm1324, %v1309, 0.0
        %v1329 = vadd.f32 %v1297, %v1325
        %v1330 = vadd.f32 %v1299, %v1326
        %v1331 = vadd.f32 %v1301, %v1327
        %v1332 = vadd.f32 %v1303, %v1328
        %1333 = vrot.lane.b32.xlu0 %v1282, 64
        %v1334 = vpop.permute.xlu0 %1333
        %1335 = vrot.lane.b32.xlu0 %v1285, 64
        %v1336 = vpop.permute.xlu0 %1335
        %1337 = vrot.lane.b32.xlu0 %v1290, 64
        %v1338 = vpop.permute.xlu0 %1337
        %1339 = vrot.lane.b32.xlu0 %v1293, 64
        %v1340 = vpop.permute.xlu0 %1339
        %v1341 = vrot.slane %v1334, 4
        %v1342 = vrot.slane %v1336, 4
        %v1343 = vrot.slane %v1338, 4
        %v1344 = vrot.slane %v1340, 4
        %v1345 = vsel %vm1308, %v1343, %v1344
        %v1346 = vsel %vm1308, %v1342, %v1343
        %v1347 = vsel %vm1308, %v1341, %v1342
        %v1348 = vsel %vm1308, %v1344, %v1341
        %vm1349 = vcmp.lt.s32.totalorder %v430, 12
        %vm1350 = vcmp.lt.s32.totalorder %v431, 12
        %vm1351 = vcmp.lt.s32.totalorder %v432, 12
        %vm1352 = vcmp.lt.s32.totalorder %v433, 12
        %v1353 = vsel %vm1349, 1, 0
        %v1354 = vsel %vm1350, 1, 0
        %v1355 = vsel %vm1351, 1, 0
        %v1356 = vsel %vm1352, 1, 0
        %vm1357 = vcmp.eq.s32.totalorder %v1353, 1
        %vm1358 = vcmp.eq.s32.totalorder %v1354, 1
        %vm1359 = vcmp.eq.s32.totalorder %v1355, 1
        %vm1360 = vcmp.eq.s32.totalorder %v1356, 1
        %v1361 = vsel %vm1357, %v1347, 0.0
        %v1362 = vsel %vm1358, %v1346, 0.0
        %v1363 = vsel %vm1359, %v1345, 0.0
        %v1364 = vsel %vm1360, %v1348, 0.0
        %v1365 = vadd.f32 %v1329, %v1361
        %v1366 = vadd.f32 %v1330, %v1362
        %v1367 = vadd.f32 %v1331, %v1363
        %v1368 = vadd.f32 %v1332, %v1364
        %s1369 = scalar_lea.vmem %s4, 2
        %v1370 = vld [vmem:[%s1369] sm:$0x1]
        %v1372 = vlaneseq
        %v1373 = vshrl.u32 %v1372, 7
        %v1374 = vsub.s32 0, %v1373
        %v1375 = vrot.slane %v1370, %v1374
        %v1377 = vadd.f32 %v1365, %v1375
        %v1378 = vadd.f32 %v1366, %v1375
        %v1379 = vadd.f32 %v1367, %v1375
        %v1380 = vadd.f32 %v1368, %v1375
        %v1381 = vmax.f32 %v1377, 0.0
        %v1382 = vmax.f32 %v1378, 0.0
        %v1383 = vmax.f32 %v1379, 0.0
        %v1384 = vmax.f32 %v1380, 0.0
        %v1385 = vpack.c.bf16 %v1382, %v1381
        %v1386 = vpack.c.bf16 %v1384, %v1383
        %s1387 = scalar_lea.vmem [#allocation4], 128
        %v1388 = vld [vmem:[%s1387] sm:$0xf]
        %v1389 = vld [vmem:[%s1387 + $0x4] sm:$0xf]
        %v1390 = vld [vmem:[%s1387 + $0x8] sm:$0xf]
        %v1391 = vld [vmem:[%s1387 + $0xc] sm:$0xf]
        %v1392 = vld [vmem:[%s1387 + $0x10] sm:$0xf]
        %v1393 = vld [vmem:[%s1387 + $0x14] sm:$0xf]
        %v1394 = vld [vmem:[%s1387 + $0x18] sm:$0xf]
        %v1395 = vld [vmem:[%s1387 + $0x1c] sm:$0xf]
        %v1396 = vld [vmem:[%s1387 + $0x20] sm:$0xf]
        %v1397 = vld [vmem:[%s1387 + $0x24] sm:$0xf]
        %v1398 = vld [vmem:[%s1387 + $0x28] sm:$0xf]
        %v1399 = vld [vmem:[%s1387 + $0x2c] sm:$0xf]
        %v1400 = vld [vmem:[%s1387 + $0x30] sm:$0xf]
        %v1401 = vld [vmem:[%s1387 + $0x34] sm:$0xf]
        %v1402 = vld [vmem:[%s1387 + $0x38] sm:$0xf]
        %v1403 = vld [vmem:[%s1387 + $0x3c] sm:$0xf]
        %s1404 = scalar_lea.vmem %s6, 2
        %v1405 = vld [vmem:[%s1404] sm:$0x1]
        %v1407 = vlaneseq
        %v1408 = vshrl.u32 %v1407, 7
        %v1409 = vsub.s32 0, %v1408
        %v1410 = vrot.slane %v1405, %v1409
        %v1428 = vunpack.c.l.b16 %v1388
        %v1429 = vunpack.c.l.b16 %v1389
        %v1430 = vunpack.c.l.b16 %v1390
        %v1431 = vunpack.c.l.b16 %v1391
        %v1432 = vunpack.c.l.b16 %v1392
        %v1433 = vunpack.c.l.b16 %v1393
        %v1434 = vunpack.c.l.b16 %v1394
        %v1435 = vunpack.c.l.b16 %v1395
        %v1436 = vunpack.c.l.b16 %v1396
        %v1437 = vunpack.c.l.b16 %v1397
        %v1438 = vunpack.c.l.b16 %v1398
        %v1439 = vunpack.c.l.b16 %v1399
        %v1440 = vunpack.c.l.b16 %v1400
        %v1441 = vunpack.c.l.b16 %v1401
        %v1442 = vunpack.c.l.b16 %v1402
        %v1443 = vunpack.c.l.b16 %v1403
        %v1444 = vpack.c.b16 %v1429, %v1428
        %v1445 = vpack.c.b16 %v1431, %v1430
        %v1446 = vpack.c.b16 %v1433, %v1432
        %v1447 = vpack.c.b16 %v1435, %v1434
        %v1448 = vpack.c.b16 %v1437, %v1436
        %v1449 = vpack.c.b16 %v1439, %v1438
        %v1450 = vpack.c.b16 %v1441, %v1440
        %v1451 = vpack.c.b16 %v1443, %v1442
        %1460 = vmatprep.subr.bf16.mxu0 0
        %1461 = vmatpush1.bf16.msra.mxu0 %v1451
        %1462 = vmatprep.subr.bf16.mxu0 0
        %1463 = vmatpush1.bf16.msra.mxu0 %v1450
        %1464 = vmatprep.subr.bf16.mxu0 0
        %1465 = vmatpush1.bf16.msra.mxu0 %v1449
        %1466 = vmatprep.subr.bf16.mxu0 0
        %1467 = vmatpush1.bf16.msra.mxu0 %v1448
        %1468 = vmatprep.subr.bf16.mxu0 0
        %1469 = vmatpush1.bf16.msra.mxu0 %v1447
        %1470 = vmatprep.subr.bf16.mxu0 0
        %1471 = vmatpush1.bf16.msra.mxu0 %v1446
        %1472 = vmatprep.subr.bf16.mxu0 0
        %1473 = vmatpush1.bf16.msra.mxu0 %v1445
        %1474 = vmatprep.subr.bf16.mxu0 0
        %1475 = vmatpush1.bf16.msra.mxu0 %v1444
        %1476 = vmatprep.subr.bf16.mxu0 0
        %1477 = vmatpush2.bf16.msra.mxu0 0
        %1478 = vmatprep.subr.bf16.mxu0 0
        %1479 = vmatpush2.bf16.msra.mxu0 0
        %1480 = vmatprep.subr.bf16.mxu0 0
        %1481 = vmatpush2.bf16.msra.mxu0 0
        %1482 = vmatprep.subr.bf16.mxu0 0
        %1483 = vmatpush2.bf16.msra.mxu0 0
        %1484 = vmatprep.subr.bf16.mxu0 0
        %1485 = vmatpush2.bf16.msra.mxu0 0
        %1486 = vmatprep.subr.bf16.mxu0 0
        %1487 = vmatpush2.bf16.msra.mxu0 0
        %1488 = vmatprep.subr.bf16.mxu0 0
        %1489 = vmatpush2.bf16.msra.mxu0 0
        %1490 = vmatprep.subr.bf16.mxu0 0
        %1491 = vmatpush2.bf16.msra.mxu0 0
        %1492 = vmatprep.mubr.bf16.mxu0 0
        %1493 = vmatmul.mubr.bf16.gmra.mxu0 %v1385
        %v1494 = vpop.f32.mrf.mxu0
        %v1495 = vadd.f32 %v1410, %v1494
        %v1496 = vpop.f32.mrf.mxu0
        %v1497 = vpop.f32.mrf.mxu0
        %v1498 = vadd.f32 %v1410, %v1497
        %v1499 = vpop.f32.mrf.mxu0
        %1500 = vmatprep.mubr.bf16.mxu0 0
        %1501 = vmatmul.mubr.bf16.gmra.mxu0 %v1386
        %v1502 = vpop.f32.mrf.mxu0
        %v1503 = vadd.f32 %v1410, %v1502
        %v1504 = vpop.f32.mrf.mxu0
        %v1505 = vpop.f32.mrf.mxu0
        %v1506 = vadd.f32 %v1410, %v1505
        %v1507 = vpop.f32.mrf.mxu0
        %1508 = vdwg.mxu0
        %v1509 = vadd.f32 %v1176, %v1495
        %v1510 = vadd.f32 %v1177, %v1498
        %v1511 = vadd.f32 %v1178, %v1503
        %v1512 = vadd.f32 %v1179, %v1506
        %v1513 = vpack.c.bf16 %v1510, %v1509
        %v1514 = vpack.c.bf16 %v1512, %v1511
        %s1515 = scalar_lea.vmem [#allocation2], 192
        %v1516 = vld [vmem:[%s1515] sm:$0xf]
        %v1517 = vld [vmem:[%s1515 + $0x4] sm:$0xf]
        %v1518 = vld [vmem:[%s1515 + $0x8] sm:$0xf]
        %v1519 = vld [vmem:[%s1515 + $0xc] sm:$0xf]
        %v1520 = vld [vmem:[%s1515 + $0x10] sm:$0xf]
        %v1521 = vld [vmem:[%s1515 + $0x14] sm:$0xf]
        %v1522 = vld [vmem:[%s1515 + $0x18] sm:$0xf]
        %v1523 = vld [vmem:[%s1515 + $0x1c] sm:$0xf]
        %v1524 = vld [vmem:[%s1515 + $0x20] sm:$0xf]
        %v1525 = vld [vmem:[%s1515 + $0x24] sm:$0xf]
        %v1526 = vld [vmem:[%s1515 + $0x28] sm:$0xf]
        %v1527 = vld [vmem:[%s1515 + $0x2c] sm:$0xf]
        %v1528 = vld [vmem:[%s1515 + $0x30] sm:$0xf]
        %v1529 = vld [vmem:[%s1515 + $0x34] sm:$0xf]
        %v1530 = vld [vmem:[%s1515 + $0x38] sm:$0xf]
        %v1531 = vld [vmem:[%s1515 + $0x3c] sm:$0xf]
        %v1548 = vunpack.c.l.b16 %v1516
        %v1549 = vunpack.c.l.b16 %v1517
        %v1550 = vunpack.c.l.b16 %v1518
        %v1551 = vunpack.c.l.b16 %v1519
        %v1552 = vunpack.c.l.b16 %v1520
        %v1553 = vunpack.c.l.b16 %v1521
        %v1554 = vunpack.c.l.b16 %v1522
        %v1555 = vunpack.c.l.b16 %v1523
        %v1556 = vunpack.c.l.b16 %v1524
        %v1557 = vunpack.c.l.b16 %v1525
        %v1558 = vunpack.c.l.b16 %v1526
        %v1559 = vunpack.c.l.b16 %v1527
        %v1560 = vunpack.c.l.b16 %v1528
        %v1561 = vunpack.c.l.b16 %v1529
        %v1562 = vunpack.c.l.b16 %v1530
        %v1563 = vunpack.c.l.b16 %v1531
        %v1564 = vpack.c.b16 %v1549, %v1548
        %v1565 = vpack.c.b16 %v1551, %v1550
        %v1566 = vpack.c.b16 %v1553, %v1552
        %v1567 = vpack.c.b16 %v1555, %v1554
        %v1568 = vpack.c.b16 %v1557, %v1556
        %v1569 = vpack.c.b16 %v1559, %v1558
        %v1570 = vpack.c.b16 %v1561, %v1560
        %v1571 = vpack.c.b16 %v1563, %v1562
        %1580 = vmatprep.subr.bf16.mxu0 0
        %1581 = vmatpush1.bf16.msra.mxu0 %v1571
        %1582 = vmatprep.subr.bf16.mxu0 0
        %1583 = vmatpush1.bf16.msra.mxu0 %v1570
        %1584 = vmatprep.subr.bf16.mxu0 0
        %1585 = vmatpush1.bf16.msra.mxu0 %v1569
        %1586 = vmatprep.subr.bf16.mxu0 0
        %1587 = vmatpush1.bf16.msra.mxu0 %v1568
        %1588 = vmatprep.subr.bf16.mxu0 0
        %1589 = vmatpush1.bf16.msra.mxu0 %v1567
        %1590 = vmatprep.subr.bf16.mxu0 0
        %1591 = vmatpush1.bf16.msra.mxu0 %v1566
        %1592 = vmatprep.subr.bf16.mxu0 0
        %1593 = vmatpush1.bf16.msra.mxu0 %v1565
        %1594 = vmatprep.subr.bf16.mxu0 0
        %1595 = vmatpush1.bf16.msra.mxu0 %v1564
        %1596 = vmatprep.subr.bf16.mxu0 0
        %1597 = vmatpush2.bf16.msra.mxu0 0
        %1598 = vmatprep.subr.bf16.mxu0 0
        %1599 = vmatpush2.bf16.msra.mxu0 0
        %1600 = vmatprep.subr.bf16.mxu0 0
        %1601 = vmatpush2.bf16.msra.mxu0 0
        %1602 = vmatprep.subr.bf16.mxu0 0
        %1603 = vmatpush2.bf16.msra.mxu0 0
        %1604 = vmatprep.subr.bf16.mxu0 0
        %1605 = vmatpush2.bf16.msra.mxu0 0
        %1606 = vmatprep.subr.bf16.mxu0 0
        %1607 = vmatpush2.bf16.msra.mxu0 0
        %1608 = vmatprep.subr.bf16.mxu0 0
        %1609 = vmatpush2.bf16.msra.mxu0 0
        %1610 = vmatprep.subr.bf16.mxu0 0
        %1611 = vmatpush2.bf16.msra.mxu0 0
        %1612 = vmatprep.mubr.bf16.mxu0 0
        %1613 = vmatmul.mubr.bf16.gmra.mxu0 %v1513
        %v1614 = vpop.f32.mrf.mxu0
        %v1615 = vadd.f32 0.0, %v1614
        %v1616 = vpop.f32.mrf.mxu0
        %v1617 = vpop.f32.mrf.mxu0
        %v1618 = vadd.f32 0.0, %v1617
        %v1619 = vpop.f32.mrf.mxu0
        %1620 = vmatprep.mubr.bf16.mxu0 0
        %1621 = vmatmul.mubr.bf16.gmra.mxu0 %v1514
        %v1622 = vpop.f32.mrf.mxu0
        %v1623 = vadd.f32 0.0, %v1622
        %v1624 = vpop.f32.mrf.mxu0
        %v1625 = vpop.f32.mrf.mxu0
        %v1626 = vadd.f32 0.0, %v1625
        %v1627 = vpop.f32.mrf.mxu0
        %1628 = vdwg.mxu0
        %1629 = vrot.lane.b32.xlu0 %v1615, 96
        %v1630 = vpop.permute.xlu0 %1629
        %1631 = vrot.lane.b32.xlu0 %v1618, 96
        %v1632 = vpop.permute.xlu0 %1631
        %1633 = vrot.lane.b32.xlu0 %v1623, 96
        %v1634 = vpop.permute.xlu0 %1633
        %1635 = vrot.lane.b32.xlu0 %v1626, 96
        %v1636 = vpop.permute.xlu0 %1635
        %vm1637 = vcmp.ge.s32.totalorder %v430, 8
        %vm1638 = vcmp.ge.s32.totalorder %v431, 8
        %vm1639 = vcmp.ge.s32.totalorder %v432, 8
        %vm1640 = vcmp.ge.s32.totalorder %v433, 8
        %v1641 = vsel %vm1637, 1, 0
        %v1642 = vsel %vm1638, 1, 0
        %v1643 = vsel %vm1639, 1, 0
        %v1644 = vsel %vm1640, 1, 0
        %vm1645 = vcmp.eq.s32.totalorder %v1641, 1
        %vm1646 = vcmp.eq.s32.totalorder %v1642, 1
        %vm1647 = vcmp.eq.s32.totalorder %v1643, 1
        %vm1648 = vcmp.eq.s32.totalorder %v1644, 1
        %v1649 = vsel %vm1645, %v1626, 0.0
        %v1650 = vsel %vm1646, %v1615, 0.0
        %v1651 = vsel %vm1647, %v1618, 0.0
        %v1652 = vsel %vm1648, %v1623, 0.0
        %v1653 = vadd.f32 %v1630, %v1649
        %v1654 = vadd.f32 %v1632, %v1650
        %v1655 = vadd.f32 %v1634, %v1651
        %v1656 = vadd.f32 %v1636, %v1652
        %1657 = vrot.lane.b32.xlu0 %v1615, 64
        %v1658 = vpop.permute.xlu0 %1657
        %1659 = vrot.lane.b32.xlu0 %v1618, 64
        %v1660 = vpop.permute.xlu0 %1659
        %1661 = vrot.lane.b32.xlu0 %v1623, 64
        %v1662 = vpop.permute.xlu0 %1661
        %1663 = vrot.lane.b32.xlu0 %v1626, 64
        %v1664 = vpop.permute.xlu0 %1663
        %vm1665 = vcmp.lt.s32.totalorder %v430, 8
        %vm1666 = vcmp.lt.s32.totalorder %v431, 8
        %vm1667 = vcmp.lt.s32.totalorder %v432, 8
        %vm1668 = vcmp.lt.s32.totalorder %v433, 8
        %v1669 = vsel %vm1665, 1, 0
        %v1670 = vsel %vm1666, 1, 0
        %v1671 = vsel %vm1667, 1, 0
        %v1672 = vsel %vm1668, 1, 0
        %vm1673 = vcmp.eq.s32.totalorder %v1669, 1
        %vm1674 = vcmp.eq.s32.totalorder %v1670, 1
        %vm1675 = vcmp.eq.s32.totalorder %v1671, 1
        %vm1676 = vcmp.eq.s32.totalorder %v1672, 1
        %v1677 = vsel %vm1673, %v1660, 0.0
        %v1678 = vsel %vm1674, %v1662, 0.0
        %v1679 = vsel %vm1675, %v1664, 0.0
        %v1680 = vsel %vm1676, %v1658, 0.0
        %v1681 = vadd.f32 %v1653, %v1677
        %v1682 = vadd.f32 %v1654, %v1678
        %v1683 = vadd.f32 %v1655, %v1679
        %v1684 = vadd.f32 %v1656, %v1680
        %s1685 = scalar_lea.vmem %s4, 3
        %v1686 = vld [vmem:[%s1685] sm:$0x1]
        %v1688 = vlaneseq
        %v1689 = vshrl.u32 %v1688, 7
        %v1690 = vsub.s32 0, %v1689
        %v1691 = vrot.slane %v1686, %v1690
        %v1693 = vadd.f32 %v1681, %v1691
        %v1694 = vadd.f32 %v1682, %v1691
        %v1695 = vadd.f32 %v1683, %v1691
        %v1696 = vadd.f32 %v1684, %v1691
        %v1697 = vmax.f32 %v1693, 0.0
        %v1698 = vmax.f32 %v1694, 0.0
        %v1699 = vmax.f32 %v1695, 0.0
        %v1700 = vmax.f32 %v1696, 0.0
        %v1701 = vpack.c.bf16 %v1698, %v1697
        %v1702 = vpack.c.bf16 %v1700, %v1699
        %s1703 = scalar_lea.vmem [#allocation4], 192
        %v1704 = vld [vmem:[%s1703] sm:$0xf]
        %v1705 = vld [vmem:[%s1703 + $0x4] sm:$0xf]
        %v1706 = vld [vmem:[%s1703 + $0x8] sm:$0xf]
        %v1707 = vld [vmem:[%s1703 + $0xc] sm:$0xf]
        %v1708 = vld [vmem:[%s1703 + $0x10] sm:$0xf]
        %v1709 = vld [vmem:[%s1703 + $0x14] sm:$0xf]
        %v1710 = vld [vmem:[%s1703 + $0x18] sm:$0xf]
        %v1711 = vld [vmem:[%s1703 + $0x1c] sm:$0xf]
        %v1712 = vld [vmem:[%s1703 + $0x20] sm:$0xf]
        %v1713 = vld [vmem:[%s1703 + $0x24] sm:$0xf]
        %v1714 = vld [vmem:[%s1703 + $0x28] sm:$0xf]
        %v1715 = vld [vmem:[%s1703 + $0x2c] sm:$0xf]
        %v1716 = vld [vmem:[%s1703 + $0x30] sm:$0xf]
        %v1717 = vld [vmem:[%s1703 + $0x34] sm:$0xf]
        %v1718 = vld [vmem:[%s1703 + $0x38] sm:$0xf]
        %v1719 = vld [vmem:[%s1703 + $0x3c] sm:$0xf]
        %s1720 = scalar_lea.vmem %s6, 3
        %v1721 = vld [vmem:[%s1720] sm:$0x1]
        %v1723 = vlaneseq
        %v1724 = vshrl.u32 %v1723, 7
        %v1725 = vsub.s32 0, %v1724
        %v1726 = vrot.slane %v1721, %v1725
        %v1744 = vunpack.c.l.b16 %v1704
        %v1745 = vunpack.c.l.b16 %v1705
        %v1746 = vunpack.c.l.b16 %v1706
        %v1747 = vunpack.c.l.b16 %v1707
        %v1748 = vunpack.c.l.b16 %v1708
        %v1749 = vunpack.c.l.b16 %v1709
        %v1750 = vunpack.c.l.b16 %v1710
        %v1751 = vunpack.c.l.b16 %v1711
        %v1752 = vunpack.c.l.b16 %v1712
        %v1753 = vunpack.c.l.b16 %v1713
        %v1754 = vunpack.c.l.b16 %v1714
        %v1755 = vunpack.c.l.b16 %v1715
        %v1756 = vunpack.c.l.b16 %v1716
        %v1757 = vunpack.c.l.b16 %v1717
        %v1758 = vunpack.c.l.b16 %v1718
        %v1759 = vunpack.c.l.b16 %v1719
        %v1760 = vpack.c.b16 %v1745, %v1744
        %v1761 = vpack.c.b16 %v1747, %v1746
        %v1762 = vpack.c.b16 %v1749, %v1748
        %v1763 = vpack.c.b16 %v1751, %v1750
        %v1764 = vpack.c.b16 %v1753, %v1752
        %v1765 = vpack.c.b16 %v1755, %v1754
        %v1766 = vpack.c.b16 %v1757, %v1756
        %v1767 = vpack.c.b16 %v1759, %v1758
        %1776 = vmatprep.subr.bf16.mxu0 0
        %1777 = vmatpush1.bf16.msra.mxu0 %v1767
        %1778 = vmatprep.subr.bf16.mxu0 0
        %1779 = vmatpush1.bf16.msra.mxu0 %v1766
        %1780 = vmatprep.subr.bf16.mxu0 0
        %1781 = vmatpush1.bf16.msra.mxu0 %v1765
        %1782 = vmatprep.subr.bf16.mxu0 0
        %1783 = vmatpush1.bf16.msra.mxu0 %v1764
        %1784 = vmatprep.subr.bf16.mxu0 0
        %1785 = vmatpush1.bf16.msra.mxu0 %v1763
        %1786 = vmatprep.subr.bf16.mxu0 0
        %1787 = vmatpush1.bf16.msra.mxu0 %v1762
        %1788 = vmatprep.subr.bf16.mxu0 0
        %1789 = vmatpush1.bf16.msra.mxu0 %v1761
        %1790 = vmatprep.subr.bf16.mxu0 0
        %1791 = vmatpush1.bf16.msra.mxu0 %v1760
        %1792 = vmatprep.subr.bf16.mxu0 0
        %1793 = vmatpush2.bf16.msra.mxu0 0
        %1794 = vmatprep.subr.bf16.mxu0 0
        %1795 = vmatpush2.bf16.msra.mxu0 0
        %1796 = vmatprep.subr.bf16.mxu0 0
        %1797 = vmatpush2.bf16.msra.mxu0 0
        %1798 = vmatprep.subr.bf16.mxu0 0
        %1799 = vmatpush2.bf16.msra.mxu0 0
        %1800 = vmatprep.subr.bf16.mxu0 0
        %1801 = vmatpush2.bf16.msra.mxu0 0
        %1802 = vmatprep.subr.bf16.mxu0 0
        %1803 = vmatpush2.bf16.msra.mxu0 0
        %1804 = vmatprep.subr.bf16.mxu0 0
        %1805 = vmatpush2.bf16.msra.mxu0 0
        %1806 = vmatprep.subr.bf16.mxu0 0
        %1807 = vmatpush2.bf16.msra.mxu0 0
        %1808 = vmatprep.mubr.bf16.mxu0 0
        %1809 = vmatmul.mubr.bf16.gmra.mxu0 %v1701
        %v1810 = vpop.f32.mrf.mxu0
        %v1811 = vadd.f32 %v1726, %v1810
        %v1812 = vpop.f32.mrf.mxu0
        %v1813 = vpop.f32.mrf.mxu0
        %v1814 = vadd.f32 %v1726, %v1813
        %v1815 = vpop.f32.mrf.mxu0
        %1816 = vmatprep.mubr.bf16.mxu0 0
        %1817 = vmatmul.mubr.bf16.gmra.mxu0 %v1702
        %v1818 = vpop.f32.mrf.mxu0
        %v1819 = vadd.f32 %v1726, %v1818
        %v1820 = vpop.f32.mrf.mxu0
        %v1821 = vpop.f32.mrf.mxu0
        %v1822 = vadd.f32 %v1726, %v1821
        %v1823 = vpop.f32.mrf.mxu0
        %1824 = vdwg.mxu0
        %v1825 = vadd.f32 %v1509, %v1811
        %v1826 = vadd.f32 %v1510, %v1814
        %v1827 = vadd.f32 %v1511, %v1819
        %v1828 = vadd.f32 %v1512, %v1822
        %v1829 = vpack.c.bf16 %v1826, %v1825
        %v1830 = vpack.c.bf16 %v1828, %v1827
        %v1831 = vld [vmem:[#allocation6] sm:$0xf]
        %v1832 = vld [vmem:[#allocation6 + $0x4] sm:$0xf]
        %v1833 = vld [vmem:[#allocation6 + $0x8] sm:$0xf]
        %v1834 = vld [vmem:[#allocation6 + $0xc] sm:$0xf]
        %v1835 = vld [vmem:[#allocation6 + $0x10] sm:$0xf]
        %v1836 = vld [vmem:[#allocation6 + $0x14] sm:$0xf]
        %v1837 = vld [vmem:[#allocation6 + $0x18] sm:$0xf]
        %v1838 = vld [vmem:[#allocation6 + $0x1c] sm:$0xf]
        %v1839 = vld [vmem:[#allocation6 + $0x20] sm:$0xf]
        %v1840 = vld [vmem:[#allocation6 + $0x24] sm:$0xf]
        %v1841 = vld [vmem:[#allocation6 + $0x28] sm:$0xf]
        %v1842 = vld [vmem:[#allocation6 + $0x2c] sm:$0xf]
        %v1843 = vld [vmem:[#allocation6 + $0x30] sm:$0xf]
        %v1844 = vld [vmem:[#allocation6 + $0x34] sm:$0xf]
        %v1845 = vld [vmem:[#allocation6 + $0x38] sm:$0xf]
        %v1846 = vld [vmem:[#allocation6 + $0x3c] sm:$0xf]
        %v1847 = vld [vmem:[%s8] sm:$0x1]
        %v1849 = vlaneseq
        %v1850 = vshrl.u32 %v1849, 7
        %v1851 = vsub.s32 0, %v1850
        %v1852 = vrot.slane %v1847, %v1851
        %v1870 = vunpack.c.l.b16 %v1831
        %v1871 = vunpack.c.l.b16 %v1832
        %v1872 = vunpack.c.l.b16 %v1833
        %v1873 = vunpack.c.l.b16 %v1834
        %v1874 = vunpack.c.l.b16 %v1835
        %v1875 = vunpack.c.l.b16 %v1836
        %v1876 = vunpack.c.l.b16 %v1837
        %v1877 = vunpack.c.l.b16 %v1838
        %v1878 = vunpack.c.l.b16 %v1839
        %v1879 = vunpack.c.l.b16 %v1840
        %v1880 = vunpack.c.l.b16 %v1841
        %v1881 = vunpack.c.l.b16 %v1842
        %v1882 = vunpack.c.l.b16 %v1843
        %v1883 = vunpack.c.l.b16 %v1844
        %v1884 = vunpack.c.l.b16 %v1845
        %v1885 = vunpack.c.l.b16 %v1846
        %v1886 = vpack.c.b16 %v1871, %v1870
        %v1887 = vpack.c.b16 %v1873, %v1872
        %v1888 = vpack.c.b16 %v1875, %v1874
        %v1889 = vpack.c.b16 %v1877, %v1876
        %v1890 = vpack.c.b16 %v1879, %v1878
        %v1891 = vpack.c.b16 %v1881, %v1880
        %v1892 = vpack.c.b16 %v1883, %v1882
        %v1893 = vpack.c.b16 %v1885, %v1884
        %1902 = vmatprep.subr.bf16.mxu0 0
        %1903 = vmatpush1.bf16.msra.mxu0 %v1893
        %1904 = vmatprep.subr.bf16.mxu0 0
        %1905 = vmatpush1.bf16.msra.mxu0 %v1892
        %1906 = vmatprep.subr.bf16.mxu0 0
        %1907 = vmatpush1.bf16.msra.mxu0 %v1891
        %1908 = vmatprep.subr.bf16.mxu0 0
        %1909 = vmatpush1.bf16.msra.mxu0 %v1890
        %1910 = vmatprep.subr.bf16.mxu0 0
        %1911 = vmatpush1.bf16.msra.mxu0 %v1889
        %1912 = vmatprep.subr.bf16.mxu0 0
        %1913 = vmatpush1.bf16.msra.mxu0 %v1888
        %1914 = vmatprep.subr.bf16.mxu0 0
        %1915 = vmatpush1.bf16.msra.mxu0 %v1887
        %1916 = vmatprep.subr.bf16.mxu0 0
        %1917 = vmatpush1.bf16.msra.mxu0 %v1886
        %1918 = vmatprep.subr.bf16.mxu0 0
        %1919 = vmatpush2.bf16.msra.mxu0 0
        %1920 = vmatprep.subr.bf16.mxu0 0
        %1921 = vmatpush2.bf16.msra.mxu0 0
        %1922 = vmatprep.subr.bf16.mxu0 0
        %1923 = vmatpush2.bf16.msra.mxu0 0
        %1924 = vmatprep.subr.bf16.mxu0 0
        %1925 = vmatpush2.bf16.msra.mxu0 0
        %1926 = vmatprep.subr.bf16.mxu0 0
        %1927 = vmatpush2.bf16.msra.mxu0 0
        %1928 = vmatprep.subr.bf16.mxu0 0
        %1929 = vmatpush2.bf16.msra.mxu0 0
        %1930 = vmatprep.subr.bf16.mxu0 0
        %1931 = vmatpush2.bf16.msra.mxu0 0
        %1932 = vmatprep.subr.bf16.mxu0 0
        %1933 = vmatpush2.bf16.msra.mxu0 0
        %1934 = vmatprep.mubr.bf16.mxu0 0
        %1935 = vmatmul.mubr.bf16.gmra.mxu0 %v1829
        %v1936 = vpop.f32.mrf.mxu0
        %v1937 = vadd.f32 %v1852, %v1936
        %v1938 = vpop.f32.mrf.mxu0
        %v1939 = vpop.f32.mrf.mxu0
        %v1940 = vadd.f32 %v1852, %v1939
        %v1941 = vpop.f32.mrf.mxu0
        %1942 = vmatprep.mubr.bf16.mxu0 0
        %1943 = vmatmul.mubr.bf16.gmra.mxu0 %v1830
        %v1944 = vpop.f32.mrf.mxu0
        %v1945 = vadd.f32 %v1852, %v1944
        %v1946 = vpop.f32.mrf.mxu0
        %v1947 = vpop.f32.mrf.mxu0
        %v1948 = vadd.f32 %v1852, %v1947
        %v1949 = vpop.f32.mrf.mxu0
        %1950 = vdwg.mxu0
        %1951 = vst.msk [vmem:[%s378] sm:$0xff] %vm456, %v1937
        %1952 = vst.msk [vmem:[%s378 + $0x8] sm:$0xff] %vm456, %v1940
        %1953 = vst.msk [vmem:[%s378 + $0x10] sm:$0xff] %vm456, %v1945
        %1954 = vst.msk [vmem:[%s378 + $0x18] sm:$0xff] %vm456, %v1948
        %s1955 = smul.u32 4, %s22
        %p1956 = scmp.lt.s32.totalorder %s1955, 7
        %s1957 = scalar_select %p1956, %s1955, 7
        %s1958 = smul.addr %s1957, 8
        %s1959 = scalar_lea.vmem %s9, %s1958
        // Predicated region
        $region69: #{tpu_custom_call.1} parent=55 // pred_check
          %p1960 = pneg %p234
        $region70: #{tpu_custom_call.1} parent=55 // pred_check_branch
          %1962 = sbr.rel (%p1960) target = $region72
        $region71: #{tpu_custom_call.1} parent=55 // pred_region
          %s1963 = smul.u32 4, %s22
        $region72: #{tpu_custom_call.1} parent=55 // pred_fallthru
          _
      $region56: #{tpu_custom_call.1} parent=5 // pred_fallthru
        _
      %p1964 = scmp.le.s32.totalorder 2, %s17
      // Predicated region
      $region73: #{tpu_custom_call.1} parent=5 // pred_check
        %p1965 = pneg %p1964
      $region74: #{tpu_custom_call.1} parent=5 // pred_check_branch
        %1967 = sbr.rel (%p1965) target = $region76
      $region75: #{tpu_custom_call.1} parent=5 // pred_region
        %s1968 = ssub.s32 %s17, 2
        // Predicated region
        $region77: #{tpu_custom_call.1} parent=75 // pred_check
          %p1969 = pneg %p240
        $region78: #{tpu_custom_call.1} parent=75 // pred_check_branch
          %1971 = sbr.rel (%p1969) target = $region80
        $region79: #{tpu_custom_call.1} parent=75 // pred_region
          %s1972 = smul.u32 4, %s23
          %p1973 = scmp.lt.s32.totalorder %s1972, 7
          %s1974 = scalar_select %p1973, %s1972, 7
          %s1975 = smul.addr %s1974, 8
          %s1976 = scalar_lea.vmem %s9, %s1975
        $region80: #{tpu_custom_call.1} parent=75 // pred_fallthru
          _
      $region76: #{tpu_custom_call.1} parent=5 // pred_fallthru
        _
    $region6: #{tpu_custom_call.1} parent=1 // loop_footer
      %s21 = sadd.s32 1, %s17
    $region7: #{tpu_custom_call.1} parent=1 // loop_footer_branch
      %16 = sbr.rel target = $region3
    $region8: #{tpu_custom_call.1} parent=1 // loop_exit
      _
    %1977 = vsyncpa [#allocation3], 1
    %s1978 = scalar_lea.sflag [#allocation3], 1
    %1979 = vsyncpa %s1978, 1
    %1980 = vsyncpa [#allocation5], 1

</llo_original>
